<compile_context>
chip_gen: v6e
topology: v6e:2x2x1
jax: 0.10.0
libtpu: 0.0.40
codegen_flags: <defaults>
</compile_context>

<pallas_src>
import functools

import numpy as np
import jax
import jax.numpy as jnp
from jax.experimental import pallas as pl
from jax.experimental.pallas import tpu as pltpu


# ----------------------------- configs --------------------------------------
class Configs:
    seq_len = 8
    pred_len = 2
    top_k = 2
    d_model = 4
    d_ff = 8
    num_kernels = 2


# ------------------------- exact (erf) GELU ----------------------------------
_SQRT1_2 = 0.7071067811865476


def _erf_f32(x):
    # Abramowitz & Stegun 7.1.26, |abs err| <= 1.5e-7.
    # Deterministic, Mosaic-safe replacement for lax.erf.
    a1, a2, a3, a4, a5 = (0.254829592, -0.284496736, 1.421413741,
                          -1.453152027, 1.061405429)
    p = 0.3275911
    ax = jnp.abs(x)
    t = 1.0 / (1.0 + p * ax)
    poly = ((((a5 * t + a4) * t + a3) * t + a2) * t + a1) * t
    e = 1.0 - poly * jnp.exp(-ax * ax)
    return jnp.where(x >= 0, e, -e)


def _gelu_exact(x):
    # PyTorch nn.GELU() default: 0.5 * x * (1 + erf(x / sqrt(2)))
    return 0.5 * x * (1.0 + _erf_f32(x * _SQRT1_2))


# --------------------------- Pallas kernel -----------------------------------
def timesblock_kernel(*args, geom, K, pad, total, Cff, Cout):
    """Fully fused TimesBlock forward for one batch element.

    args (in order):
      xpf_i   : (1, Cin, S_i + H_i*W_i + S_i) zero-haloed flat image, branch i
      mask_i  : (K, 1, H_i*W_i)               column-validity lane masks, branch i
      x_ref   : (1, Cin, total)               residual input (channels-first)
      pw_ref  : (1, 1, k)                     softmax period weights
      w1,b1,w2,b2                             collapsed Inception params
      y_ref   : (1, Cin, total)               output
      mid_ref : (Cff, Lp_max)                 VMEM scratch for GELU activations
    """
    k = len(geom)
    xpf_refs = args[:k]
    mask_refs = args[k:2 * k]
    x_ref, pw_ref, w1_ref, b1_ref, w2_ref, b2_ref = args[2 * k:2 * k + 6]
    y_ref = args[2 * k + 6]
    mid_ref = args[2 * k + 7]

    acc = x_ref[0]                                            # residual seed

    for i, (H, W) in enumerate(geom):
        HW = H * W
        S = pad * W + pad
        xpf_ref = xpf_refs[i]
        mask_ref = mask_refs[i]

        def conv_taps(window, w_ref, cout):
            # K*K whole-image taps: each tap = ONE (cout,cin) x (cin,HW) matmul.
            out = None
            for dx in range(K):
                ox = dx - pad
                if abs(ox) >= W:          # column offset always out of range
                    continue
                part = None
                for dy in range(K):
                    oy = dy - pad
                    if abs(oy) >= H:      # row offset always out of range
                        continue
                    win = window(oy * W + ox)                       # (cin, HW)
                    d = jnp.dot(w_ref[dy, dx], win,
                                preferred_element_type=jnp.float32)  # (cout, HW)
                    part = d if part is None else part + d
                if part is None:
                    continue
                if ox != 0:
                    part = part * mask_ref[dx]  # lane mask: kill x-wrapped cols
                out = part if out is None else out + part
            if out is None:
                out = jnp.zeros((cout, HW), jnp.float32)
            return out

        # ---- conv1 + bias -> exact GELU -------------------------------------
        h1 = conv_taps(lambda s: xpf_ref[0, :, S + s:S + s + HW], w1_ref, Cff)
        act = _gelu_exact(h1 + b1_ref[...])                          # (Cff, HW)

        # ---- stage activations in zero-haloed flat VMEM scratch for conv2 ---
        if S > 0:
            # Only the tiny 2*S halo is re-zeroed (interior fully overwritten);
            # doing it every step keeps the kernel correct when the "parallel"
            # batch axis is split across TensorCores.
            mid_ref[:, :S] = jnp.zeros((Cff, S), jnp.float32)
            mid_ref[:, S + HW:S + HW + S] = jnp.zeros((Cff, S), jnp.float32)
        mid_ref[:, S:S + HW] = act

        # ---- conv2 + bias, crop tail padding, weight & accumulate -----------
        h2 = conv_taps(lambda s: mid_ref[:, S + s:S + s + HW], w2_ref, Cout)
        res = (h2 + b2_ref[...])[:, :total]                          # (Cout, total)
        acc = acc + pw_ref[0, :, i:i + 1] * res

    y_ref[0] = acc


# ----------------------------- wrappers --------------------------------------
def _col_masks(H, W, K, pad):
    """Column-validity masks per dx offset (static, built on host)."""
    w_ = np.arange(H * W) % W
    m = np.stack([((w_ + (dx - pad) >= 0) & (w_ + (dx - pad) < W))
                  .astype(np.float32) for dx in range(K)])
    return jnp.asarray(m[:, None, :])                                # (K, 1, HW)


@functools.partial(jax.jit, static_argnames=("geom", "K", "pad", "total"))
def _timesblock_fused(x_cf, pw, w1t, b1, w2t, b2, xpfs, masks,
                      *, geom, K, pad, total):
    """y = x + sum_i pw_i * conv2(gelu(conv1(reshape_to_period_i(x))))[:, :total]."""
    B, N, _ = x_cf.shape
    k = len(geom)
    Cff = w1t.shape[2]
    Lp_max = max(h * w + 2 * (pad * w + pad) for (h, w) in geom)

    kernel = functools.partial(timesblock_kernel, geom=geom, K=K, pad=pad,
                               total=total, Cff=Cff, Cout=N)

    in_specs = []
    for (h, w) in geom:
        Lp = h * w + 2 * (pad * w + pad)
        in_specs.append(pl.BlockSpec((1, N, Lp), lambda b: (b, 0, 0)))
    for (h, w) in geom:
        in_specs.append(pl.BlockSpec((K, 1, h * w), lambda b: (0, 0, 0)))
    in_specs += [
        pl.BlockSpec((1, N, total), lambda b: (b, 0, 0)),    # x (residual)
        pl.BlockSpec((1, 1, k), lambda b: (b, 0, 0)),        # softmax weights
        pl.BlockSpec(w1t.shape, lambda b: (0, 0, 0, 0)),
        pl.BlockSpec(b1.shape, lambda b: (0, 0)),
        pl.BlockSpec(w2t.shape, lambda b: (0, 0, 0, 0)),
        pl.BlockSpec(b2.shape, lambda b: (0, 0)),
    ]

    return pl.pallas_call(
        kernel,
        out_shape=jax.ShapeDtypeStruct((B, N, total), jnp.float32),
        grid=(B,),
        in_specs=in_specs,
        out_specs=pl.BlockSpec((1, N, total), lambda b: (b, 0, 0)),
        scratch_shapes=[pltpu.VMEM((Cff, Lp_max), jnp.float32)],
        compiler_params=pltpu.CompilerParams(
            dimension_semantics=("parallel",)),   # batch: shard across TCs (v7x)
    )(*xpfs, *masks, x_cf, pw, w1t, b1, w2t, b2)


def fft_for_period(x, k=2):
    """Mirror of FFT_for_Period.  Shapes downstream are data dependent, so the
    top-k indices come back to host (same as torch's .detach().cpu().numpy())."""
    xf = jnp.fft.rfft(x, axis=1)
    amp = jnp.abs(xf)                                   # (B, F, N)
    freq = amp.mean(axis=0).mean(axis=-1)               # (F,)
    freq = freq.at[0].set(0.0)
    _, top_idx = jax.lax.top_k(freq, k)
    top_idx = np.asarray(jax.device_get(top_idx))
    T = x.shape[1]
    period = np.array([T // int(i) if int(i) > 0 else 0 for i in top_idx])
    period_weight = amp.mean(axis=-1)[:, top_idx]       # (B, k)
    return period, period_weight


def init_inception_params(key, cin, cout, num_kernels, scale=0.1):
    """Collapse Inception_Block_V1 (mean over convs of size 1,3,..,2k-1) into one
    KxK conv; stored channels-first: w[dy, dx] has shape (cout, cin)."""
    K = 2 * num_kernels - 1
    wsum = jnp.zeros((K, K, cout, cin), jnp.float32)
    bsum = jnp.zeros((cout,), jnp.float32)
    for i in range(num_kernels):
        key, kw, kb = jax.random.split(key, 3)
        ks = 2 * i + 1
        w = jax.random.normal(kw, (ks, ks, cout, cin), jnp.float32) * scale
        b = jax.random.normal(kb, (cout,), jnp.float32) * scale
        p = (K - ks) // 2
        wsum = wsum + jnp.pad(w, ((p, p), (p, p), (0, 0), (0, 0)))
        bsum = bsum + b
    return wsum / num_kernels, (bsum / num_kernels).reshape(cout, 1), key


def times_block_forward(x, params, cfg):
    B, T, N = x.shape
    total = cfg.seq_len + cfg.pred_len
    k = cfg.top_k
    K = 2 * cfg.num_kernels - 1
    pad = (K - 1) // 2
    w1t, b1, w2t, b2 = params

    # TODO(synk): FFT + top-k period selection stays outside the kernel (shapes
    # are data dependent), mirroring torch's .detach().cpu().numpy().
    period_list, period_weight = fft_for_period(x, k)
    pw = jax.nn.softmax(period_weight.astype(jnp.float32), axis=1)    # (B, k)

    x_cf = jnp.transpose(x, (0, 2, 1))                                # (B, N, T)
    geom, xpfs, masks = [], [], []
    for i in range(k):
        period = max(int(period_list[i]), 1)
        length = total if total % period == 0 else (total // period + 1) * period
        H, W = length // period, period
        S = pad * W + pad
        geom.append((H, W))
        # [S zero halo][image rows incl. TimesNet tail padding to H*W][S zero halo]
        xpfs.append(jnp.pad(x_cf, ((0, 0), (0, 0), (S, S + (H * W - total)))))
        masks.append(_col_masks(H, W, K, pad))

    y_cf = _timesblock_fused(x_cf, pw.reshape(B, 1, k), w1t, b1, w2t, b2,
                             tuple(xpfs), tuple(masks),
                             geom=tuple(geom), K=K, pad=pad, total=total)
    return jnp.transpose(y_cf, (0, 2, 1))


# ---------------------- pure-JAX reference (validation) ----------------------
def times_block_reference(x, params, cfg):
    B, T, N = x.shape
    total = cfg.seq_len + cfg.pred_len
    k = cfg.top_k
    w1t, b1, w2t, b2 = params

    def conv_same(img_nchw, wt, bias):                 # wt: (K, K, cout, cin)
        w_hwio = jnp.transpose(wt, (0, 1, 3, 2))
        y = jax.lax.conv_general_dilated(
            img_nchw, w_hwio, window_strides=(1, 1), padding="SAME",
            dimension_numbers=("NCHW", "HWIO", "NCHW"),
            precision=jax.lax.Precision.HIGHEST)
        return y + bias.reshape(1, -1, 1, 1)

    period_list, period_weight = fft_for_period(x, k)
    res = []
    for i in range(k):
        period = max(int(period_list[i]), 1)
        length = total if total % period == 0 else (total // period + 1) * period
        out = jnp.pad(x, ((0, 0), (0, length - total), (0, 0)))
        img = jnp.transpose(out.reshape(B, length // period, period, N),
                            (0, 3, 1, 2))
        h = jax.nn.gelu(conv_same(img, w1t, b1), approximate=False)
        o = conv_same(h, w2t, b2)
        o = jnp.transpose(o, (0, 2, 3, 1)).reshape(B, length, N)[:, :total, :]
        res.append(o)
    res = jnp.stack(res, axis=-1)                                  # (B, T, N, k)
    pw = jax.nn.softmax(period_weight, axis=1)                     # (B, k)
    return jnp.sum(res * pw[:, None, None, :], axis=-1) + x


# ------------------------------- main -----------------------------------------
if __name__ == "__main__":
    cfg = Configs()
    key = jax.random.PRNGKey(0)
    key, kx = jax.random.split(key)
    B = 2
    T = cfg.seq_len + cfg.pred_len
    x = jax.random.normal(kx, (B, T, cfg.d_model), jnp.float32)

    w1t, b1, key = init_inception_params(key, cfg.d_model, cfg.d_ff, cfg.num_kernels)
    w2t, b2, key = init_inception_params(key, cfg.d_ff, cfg.d_model, cfg.num_kernels)
    params = (w1t, b1, w2t, b2)

    out = times_block_forward(x, params, cfg)
    out = jax.block_until_ready(out)
    assert out.shape == (B, T, cfg.d_model) and out.dtype == jnp.float32

    ref = times_block_reference(x, params, cfg)
    assert bool(jnp.all(jnp.isfinite(out)))
    assert bool(jnp.allclose(out, ref, atol=1e-2, rtol=1e-2)), \
        float(jnp.max(jnp.abs(out - ref)))
    print("KERNEL_OK")
</pallas_src>

<mosaic_0001>
module attributes {stable_mosaic.version = 11 : i64} {
  func.func @timesblock_kernel(%arg0: i32, %arg1: memref<1x4x22xf32, #tpu.memory_space<vmem>>, %arg2: memref<1x4x20xf32, #tpu.memory_space<vmem>>, %arg3: memref<3x1x10xf32, #tpu.memory_space<vmem>>, %arg4: memref<3x1x12xf32, #tpu.memory_space<vmem>>, %arg5: memref<1x4x10xf32, #tpu.memory_space<vmem>>, %arg6: memref<1x1x2xf32, #tpu.memory_space<vmem>>, %arg7: memref<3x3x8x4xf32, #tpu.memory_space<vmem>>, %arg8: memref<8x1xf32, #tpu.memory_space<vmem>>, %arg9: memref<3x3x4x8xf32, #tpu.memory_space<vmem>>, %arg10: memref<4x1xf32, #tpu.memory_space<vmem>>, %arg11: memref<1x4x10xf32, #tpu.memory_space<vmem>>, %arg12: memref<8x22xf32, #tpu.memory_space<vmem>>) attributes {dimension_semantics = [#tpu.dimension_semantics<parallel>], iteration_bounds = array<i64: 2>, scalar_prefetch = 0 : i64, scratch_operands = 1 : i64, tpu.core_type = #tpu.core_type<tc>, window_params = [{transform_indices = @transform_0, window_bounds = array<i64: 1, 4, 22>}, {transform_indices = @transform_1, window_bounds = array<i64: 1, 4, 20>}, {pipeline_mode = #tpu.pipeline_mode<synchronous>, transform_indices = @transform_2, window_bounds = array<i64: 3, 1, 10>}, {pipeline_mode = #tpu.pipeline_mode<synchronous>, transform_indices = @transform_3, window_bounds = array<i64: 3, 1, 12>}, {transform_indices = @transform_4, window_bounds = array<i64: 1, 4, 10>}, {transform_indices = @transform_5, window_bounds = array<i64: 1, 1, 2>}, {pipeline_mode = #tpu.pipeline_mode<synchronous>, transform_indices = @transform_6, window_bounds = array<i64: 3, 3, 8, 4>}, {pipeline_mode = #tpu.pipeline_mode<synchronous>, transform_indices = @transform_7, window_bounds = array<i64: 8, 1>}, {pipeline_mode = #tpu.pipeline_mode<synchronous>, transform_indices = @transform_8, window_bounds = array<i64: 3, 3, 4, 8>}, {pipeline_mode = #tpu.pipeline_mode<synchronous>, transform_indices = @transform_9, window_bounds = array<i64: 4, 1>}, {transform_indices = @transform_10, window_bounds = array<i64: 1, 4, 10>}]} {
    %c0 = arith.constant 0 : index
    %c0_0 = arith.constant 0 : index
    %c0_1 = arith.constant 0 : index
    %0 = vector.load %arg5[%c0, %c0_0, %c0_1] : memref<1x4x10xf32, #tpu.memory_space<vmem>>, vector<1x4x10xf32>
    %1 = vector.shape_cast %0 : vector<1x4x10xf32> to vector<4x10xf32>
    %c0_2 = arith.constant 0 : index
    %c0_3 = arith.constant 0 : index
    %c0_4 = arith.constant 0 : index
    %2 = vector.load %arg1[%c0_2, %c0_3, %c0_4] : memref<1x4x22xf32, #tpu.memory_space<vmem>>, vector<1x4x10xf32>
    %3 = vector.shape_cast %2 : vector<1x4x10xf32> to vector<4x10xf32>
    %c0_5 = arith.constant 0 : index
    %c0_6 = arith.constant 0 : index
    %c0_7 = arith.constant 0 : index
    %c0_8 = arith.constant 0 : index
    %4 = vector.load %arg7[%c0_5, %c0_6, %c0_7, %c0_8] : memref<3x3x8x4xf32, #tpu.memory_space<vmem>>, vector<1x1x8x4xf32>
    %5 = vector.shape_cast %4 : vector<1x1x8x4xf32> to vector<8x4xf32>
    %cst = arith.constant dense<0.000000e+00> : vector<8x10xf32>
    %6 = tpu.matmul %5, %3, %cst {dimension_numbers = #tpu.dot_dimension_numbers<[1], [0], [0], [1], [0, 0, 1, 1], [], []>} : vector<8x4xf32>, vector<4x10xf32>, vector<8x10xf32> -> vector<8x10xf32>
    %c0_9 = arith.constant 0 : index
    %c0_10 = arith.constant 0 : index
    %c5 = arith.constant 5 : index
    %7 = vector.load %arg1[%c0_9, %c0_10, %c5] : memref<1x4x22xf32, #tpu.memory_space<vmem>>, vector<1x4x10xf32>
    %8 = vector.shape_cast %7 : vector<1x4x10xf32> to vector<4x10xf32>
    %c1 = arith.constant 1 : index
    %c0_11 = arith.constant 0 : index
    %c0_12 = arith.constant 0 : index
    %c0_13 = arith.constant 0 : index
    %9 = vector.load %arg7[%c1, %c0_11, %c0_12, %c0_13] : memref<3x3x8x4xf32, #tpu.memory_space<vmem>>, vector<1x1x8x4xf32>
    %10 = vector.shape_cast %9 : vector<1x1x8x4xf32> to vector<8x4xf32>
    %cst_14 = arith.constant dense<0.000000e+00> : vector<8x10xf32>
    %11 = tpu.matmul %10, %8, %cst_14 {dimension_numbers = #tpu.dot_dimension_numbers<[1], [0], [0], [1], [0, 0, 1, 1], [], []>} : vector<8x4xf32>, vector<4x10xf32>, vector<8x10xf32> -> vector<8x10xf32>
    %12 = arith.addf %6, %11 : vector<8x10xf32>
    %c0_15 = arith.constant 0 : index
    %c0_16 = arith.constant 0 : index
    %c10 = arith.constant 10 : index
    %13 = vector.load %arg1[%c0_15, %c0_16, %c10] : memref<1x4x22xf32, #tpu.memory_space<vmem>>, vector<1x4x10xf32>
    %14 = vector.shape_cast %13 : vector<1x4x10xf32> to vector<4x10xf32>
    %c2 = arith.constant 2 : index
    %c0_17 = arith.constant 0 : index
    %c0_18 = arith.constant 0 : index
    %c0_19 = arith.constant 0 : index
    %15 = vector.load %arg7[%c2, %c0_17, %c0_18, %c0_19] : memref<3x3x8x4xf32, #tpu.memory_space<vmem>>, vector<1x1x8x4xf32>
    %16 = vector.shape_cast %15 : vector<1x1x8x4xf32> to vector<8x4xf32>
    %cst_20 = arith.constant dense<0.000000e+00> : vector<8x10xf32>
    %17 = tpu.matmul %16, %14, %cst_20 {dimension_numbers = #tpu.dot_dimension_numbers<[1], [0], [0], [1], [0, 0, 1, 1], [], []>} : vector<8x4xf32>, vector<4x10xf32>, vector<8x10xf32> -> vector<8x10xf32>
    %18 = arith.addf %12, %17 : vector<8x10xf32>
    %c0_21 = arith.constant 0 : index
    %c0_22 = arith.constant 0 : index
    %c0_23 = arith.constant 0 : index
    %19 = vector.load %arg3[%c0_21, %c0_22, %c0_23] : memref<3x1x10xf32, #tpu.memory_space<vmem>>, vector<1x1x10xf32>
    %20 = vector.shape_cast %19 : vector<1x1x10xf32> to vector<1x10xf32>
    %21 = vector.broadcast %20 : vector<1x10xf32> to vector<8x10xf32>
    %22 = arith.mulf %18, %21 : vector<8x10xf32>
    %c0_24 = arith.constant 0 : index
    %c0_25 = arith.constant 0 : index
    %c1_26 = arith.constant 1 : index
    %23 = vector.load %arg1[%c0_24, %c0_25, %c1_26] : memref<1x4x22xf32, #tpu.memory_space<vmem>>, vector<1x4x10xf32>
    %24 = vector.shape_cast %23 : vector<1x4x10xf32> to vector<4x10xf32>
    %c0_27 = arith.constant 0 : index
    %c1_28 = arith.constant 1 : index
    %c0_29 = arith.constant 0 : index
    %c0_30 = arith.constant 0 : index
    %25 = vector.load %arg7[%c0_27, %c1_28, %c0_29, %c0_30] : memref<3x3x8x4xf32, #tpu.memory_space<vmem>>, vector<1x1x8x4xf32>
    %26 = vector.shape_cast %25 : vector<1x1x8x4xf32> to vector<8x4xf32>
    %cst_31 = arith.constant dense<0.000000e+00> : vector<8x10xf32>
    %27 = tpu.matmul %26, %24, %cst_31 {dimension_numbers = #tpu.dot_dimension_numbers<[1], [0], [0], [1], [0, 0, 1, 1], [], []>} : vector<8x4xf32>, vector<4x10xf32>, vector<8x10xf32> -> vector<8x10xf32>
    %c0_32 = arith.constant 0 : index
    %c0_33 = arith.constant 0 : index
    %c6 = arith.constant 6 : index
    %28 = vector.load %arg1[%c0_32, %c0_33, %c6] : memref<1x4x22xf32, #tpu.memory_space<vmem>>, vector<1x4x10xf32>
    %29 = vector.shape_cast %28 : vector<1x4x10xf32> to vector<4x10xf32>
    %c1_34 = arith.constant 1 : index
    %c1_35 = arith.constant 1 : index
    %c0_36 = arith.constant 0 : index
    %c0_37 = arith.constant 0 : index
    %30 = vector.load %arg7[%c1_34, %c1_35, %c0_36, %c0_37] : memref<3x3x8x4xf32, #tpu.memory_space<vmem>>, vector<1x1x8x4xf32>
    %31 = vector.shape_cast %30 : vector<1x1x8x4xf32> to vector<8x4xf32>
    %cst_38 = arith.constant dense<0.000000e+00> : vector<8x10xf32>
    %32 = tpu.matmul %31, %29, %cst_38 {dimension_numbers = #tpu.dot_dimension_numbers<[1], [0], [0], [1], [0, 0, 1, 1], [], []>} : vector<8x4xf32>, vector<4x10xf32>, vector<8x10xf32> -> vector<8x10xf32>
    %33 = arith.addf %27, %32 : vector<8x10xf32>
    %c0_39 = arith.constant 0 : index
    %c0_40 = arith.constant 0 : index
    %c11 = arith.constant 11 : index
    %34 = vector.load %arg1[%c0_39, %c0_40, %c11] : memref<1x4x22xf32, #tpu.memory_space<vmem>>, vector<1x4x10xf32>
    %35 = vector.shape_cast %34 : vector<1x4x10xf32> to vector<4x10xf32>
    %c2_41 = arith.constant 2 : index
    %c1_42 = arith.constant 1 : index
    %c0_43 = arith.constant 0 : index
    %c0_44 = arith.constant 0 : index
    %36 = vector.load %arg7[%c2_41, %c1_42, %c0_43, %c0_44] : memref<3x3x8x4xf32, #tpu.memory_space<vmem>>, vector<1x1x8x4xf32>
    %37 = vector.shape_cast %36 : vector<1x1x8x4xf32> to vector<8x4xf32>
    %cst_45 = arith.constant dense<0.000000e+00> : vector<8x10xf32>
    %38 = tpu.matmul %37, %35, %cst_45 {dimension_numbers = #tpu.dot_dimension_numbers<[1], [0], [0], [1], [0, 0, 1, 1], [], []>} : vector<8x4xf32>, vector<4x10xf32>, vector<8x10xf32> -> vector<8x10xf32>
    %39 = arith.addf %33, %38 : vector<8x10xf32>
    %40 = arith.addf %22, %39 : vector<8x10xf32>
    %c0_46 = arith.constant 0 : index
    %c0_47 = arith.constant 0 : index
    %c2_48 = arith.constant 2 : index
    %41 = vector.load %arg1[%c0_46, %c0_47, %c2_48] : memref<1x4x22xf32, #tpu.memory_space<vmem>>, vector<1x4x10xf32>
    %42 = vector.shape_cast %41 : vector<1x4x10xf32> to vector<4x10xf32>
    %c0_49 = arith.constant 0 : index
    %c2_50 = arith.constant 2 : index
    %c0_51 = arith.constant 0 : index
    %c0_52 = arith.constant 0 : index
    %43 = vector.load %arg7[%c0_49, %c2_50, %c0_51, %c0_52] : memref<3x3x8x4xf32, #tpu.memory_space<vmem>>, vector<1x1x8x4xf32>
    %44 = vector.shape_cast %43 : vector<1x1x8x4xf32> to vector<8x4xf32>
    %cst_53 = arith.constant dense<0.000000e+00> : vector<8x10xf32>
    %45 = tpu.matmul %44, %42, %cst_53 {dimension_numbers = #tpu.dot_dimension_numbers<[1], [0], [0], [1], [0, 0, 1, 1], [], []>} : vector<8x4xf32>, vector<4x10xf32>, vector<8x10xf32> -> vector<8x10xf32>
    %c0_54 = arith.constant 0 : index
    %c0_55 = arith.constant 0 : index
    %c7 = arith.constant 7 : index
    %46 = vector.load %arg1[%c0_54, %c0_55, %c7] : memref<1x4x22xf32, #tpu.memory_space<vmem>>, vector<1x4x10xf32>
    %47 = vector.shape_cast %46 : vector<1x4x10xf32> to vector<4x10xf32>
    %c1_56 = arith.constant 1 : index
    %c2_57 = arith.constant 2 : index
    %c0_58 = arith.constant 0 : index
    %c0_59 = arith.constant 0 : index
    %48 = vector.load %arg7[%c1_56, %c2_57, %c0_58, %c0_59] : memref<3x3x8x4xf32, #tpu.memory_space<vmem>>, vector<1x1x8x4xf32>
    %49 = vector.shape_cast %48 : vector<1x1x8x4xf32> to vector<8x4xf32>
    %cst_60 = arith.constant dense<0.000000e+00> : vector<8x10xf32>
    %50 = tpu.matmul %49, %47, %cst_60 {dimension_numbers = #tpu.dot_dimension_numbers<[1], [0], [0], [1], [0, 0, 1, 1], [], []>} : vector<8x4xf32>, vector<4x10xf32>, vector<8x10xf32> -> vector<8x10xf32>
    %51 = arith.addf %45, %50 : vector<8x10xf32>
    %c0_61 = arith.constant 0 : index
    %c0_62 = arith.constant 0 : index
    %c12 = arith.constant 12 : index
    %52 = vector.load %arg1[%c0_61, %c0_62, %c12] : memref<1x4x22xf32, #tpu.memory_space<vmem>>, vector<1x4x10xf32>
    %53 = vector.shape_cast %52 : vector<1x4x10xf32> to vector<4x10xf32>
    %c2_63 = arith.constant 2 : index
    %c2_64 = arith.constant 2 : index
    %c0_65 = arith.constant 0 : index
    %c0_66 = arith.constant 0 : index
    %54 = vector.load %arg7[%c2_63, %c2_64, %c0_65, %c0_66] : memref<3x3x8x4xf32, #tpu.memory_space<vmem>>, vector<1x1x8x4xf32>
    %55 = vector.shape_cast %54 : vector<1x1x8x4xf32> to vector<8x4xf32>
    %cst_67 = arith.constant dense<0.000000e+00> : vector<8x10xf32>
    %56 = tpu.matmul %55, %53, %cst_67 {dimension_numbers = #tpu.dot_dimension_numbers<[1], [0], [0], [1], [0, 0, 1, 1], [], []>} : vector<8x4xf32>, vector<4x10xf32>, vector<8x10xf32> -> vector<8x10xf32>
    %57 = arith.addf %51, %56 : vector<8x10xf32>
    %c2_68 = arith.constant 2 : index
    %c0_69 = arith.constant 0 : index
    %c0_70 = arith.constant 0 : index
    %58 = vector.load %arg3[%c2_68, %c0_69, %c0_70] : memref<3x1x10xf32, #tpu.memory_space<vmem>>, vector<1x1x10xf32>
    %59 = vector.shape_cast %58 : vector<1x1x10xf32> to vector<1x10xf32>
    %60 = vector.broadcast %59 : vector<1x10xf32> to vector<8x10xf32>
    %61 = arith.mulf %57, %60 : vector<8x10xf32>
    %62 = arith.addf %40, %61 : vector<8x10xf32>
    %c0_71 = arith.constant 0 : index
    %c0_72 = arith.constant 0 : index
    %63 = vector.load %arg8[%c0_71, %c0_72] : memref<8x1xf32, #tpu.memory_space<vmem>>, vector<8x1xf32>
    %64 = vector.broadcast %63 : vector<8x1xf32> to vector<8x10xf32>
    %65 = arith.addf %62, %64 : vector<8x10xf32>
    %cst_73 = arith.constant 5.000000e-01 : f32
    %66 = vector.broadcast %cst_73 : f32 to vector<8x10xf32>
    %67 = arith.mulf %66, %65 : vector<8x10xf32>
    %cst_74 = arith.constant 0.707106769 : f32
    %68 = vector.broadcast %cst_74 : f32 to vector<8x10xf32>
    %69 = arith.mulf %65, %68 : vector<8x10xf32>
    %70 = math.absf %69 : vector<8x10xf32>
    %cst_75 = arith.constant 0.327591091 : f32
    %71 = vector.broadcast %cst_75 : f32 to vector<8x10xf32>
    %72 = arith.mulf %71, %70 : vector<8x10xf32>
    %cst_76 = arith.constant 1.000000e+00 : f32
    %73 = vector.broadcast %cst_76 : f32 to vector<8x10xf32>
    %74 = arith.addf %73, %72 : vector<8x10xf32>
    %cst_77 = arith.constant 1.000000e+00 : f32
    %75 = vector.broadcast %cst_77 : f32 to vector<8x10xf32>
    %76 = arith.divf %75, %74 : vector<8x10xf32>
    %cst_78 = arith.constant 1.06140542 : f32
    %77 = vector.broadcast %cst_78 : f32 to vector<8x10xf32>
    %78 = arith.mulf %77, %76 : vector<8x10xf32>
    %cst_79 = arith.constant -1.45315206 : f32
    %79 = vector.broadcast %cst_79 : f32 to vector<8x10xf32>
    %80 = arith.addf %78, %79 : vector<8x10xf32>
    %81 = arith.mulf %80, %76 : vector<8x10xf32>
    %cst_80 = arith.constant 1.42141378 : f32
    %82 = vector.broadcast %cst_80 : f32 to vector<8x10xf32>
    %83 = arith.addf %81, %82 : vector<8x10xf32>
    %84 = arith.mulf %83, %76 : vector<8x10xf32>
    %cst_81 = arith.constant -0.284496725 : f32
    %85 = vector.broadcast %cst_81 : f32 to vector<8x10xf32>
    %86 = arith.addf %84, %85 : vector<8x10xf32>
    %87 = arith.mulf %86, %76 : vector<8x10xf32>
    %cst_82 = arith.constant 0.254829586 : f32
    %88 = vector.broadcast %cst_82 : f32 to vector<8x10xf32>
    %89 = arith.addf %87, %88 : vector<8x10xf32>
    %90 = arith.mulf %89, %76 : vector<8x10xf32>
    %cst_83 = arith.constant 0.000000e+00 : f32
    %91 = vector.broadcast %cst_83 : f32 to vector<8x10xf32>
    %92 = arith.subf %91, %70 : vector<8x10xf32>
    %93 = arith.mulf %92, %70 : vector<8x10xf32>
    %94 = math.exp %93 : vector<8x10xf32>
    %95 = arith.mulf %90, %94 : vector<8x10xf32>
    %cst_84 = arith.constant 1.000000e+00 : f32
    %96 = vector.broadcast %cst_84 : f32 to vector<8x10xf32>
    %97 = arith.subf %96, %95 : vector<8x10xf32>
    %cst_85 = arith.constant 0.000000e+00 : f32
    %98 = vector.broadcast %cst_85 : f32 to vector<8x10xf32>
    %99 = arith.cmpf oge, %69, %98 : vector<8x10xf32>
    %cst_86 = arith.constant 0.000000e+00 : f32
    %100 = vector.broadcast %cst_86 : f32 to vector<8x10xf32>
    %101 = arith.subf %100, %97 : vector<8x10xf32>
    %102 = arith.select %99, %97, %101 : vector<8x10xi1>, vector<8x10xf32>
    %cst_87 = arith.constant 1.000000e+00 : f32
    %103 = vector.broadcast %cst_87 : f32 to vector<8x10xf32>
    %104 = arith.addf %103, %102 : vector<8x10xf32>
    %105 = arith.mulf %67, %104 : vector<8x10xf32>
    %cst_88 = arith.constant 0.000000e+00 : f32
    %106 = vector.broadcast %cst_88 : f32 to vector<8x6xf32>
    %c0_89 = arith.constant 0 : index
    %c0_90 = arith.constant 0 : index
    %107 = vector.load %arg12[%c0_89, %c0_90] : memref<8x22xf32, #tpu.memory_space<vmem>>, vector<8x6xf32>
    tpu.vector_store %arg12[%c0_89, %c0_90], %106 {strides = array<i32>} : memref<8x22xf32, #tpu.memory_space<vmem>>, vector<8x6xf32>,
    %cst_91 = arith.constant 0.000000e+00 : f32
    %108 = vector.broadcast %cst_91 : f32 to vector<8x6xf32>
    %c0_92 = arith.constant 0 : index
    %c16 = arith.constant 16 : index
    %109 = vector.load %arg12[%c0_92, %c16] : memref<8x22xf32, #tpu.memory_space<vmem>>, vector<8x6xf32>
    tpu.vector_store %arg12[%c0_92, %c16], %108 {strides = array<i32>} : memref<8x22xf32, #tpu.memory_space<vmem>>, vector<8x6xf32>,
    %c0_93 = arith.constant 0 : index
    %c6_94 = arith.constant 6 : index
    %110 = vector.load %arg12[%c0_93, %c6_94] : memref<8x22xf32, #tpu.memory_space<vmem>>, vector<8x10xf32>
    tpu.vector_store %arg12[%c0_93, %c6_94], %105 {strides = array<i32>} : memref<8x22xf32, #tpu.memory_space<vmem>>, vector<8x10xf32>,
    %c0_95 = arith.constant 0 : index
    %c0_96 = arith.constant 0 : index
    %111 = vector.load %arg12[%c0_95, %c0_96] : memref<8x22xf32, #tpu.memory_space<vmem>>, vector<8x10xf32>
    %c0_97 = arith.constant 0 : index
    %c0_98 = arith.constant 0 : index
    %c0_99 = arith.constant 0 : index
    %c0_100 = arith.constant 0 : index
    %112 = vector.load %arg9[%c0_97, %c0_98, %c0_99, %c0_100] : memref<3x3x4x8xf32, #tpu.memory_space<vmem>>, vector<1x1x4x8xf32>
    %113 = vector.shape_cast %112 : vector<1x1x4x8xf32> to vector<4x8xf32>
    %cst_101 = arith.constant dense<0.000000e+00> : vector<4x10xf32>
    %114 = tpu.matmul %113, %111, %cst_101 {dimension_numbers = #tpu.dot_dimension_numbers<[1], [0], [0], [1], [0, 0, 1, 1], [], []>} : vector<4x8xf32>, vector<8x10xf32>, vector<4x10xf32> -> vector<4x10xf32>
    %c0_102 = arith.constant 0 : index
    %c5_103 = arith.constant 5 : index
    %115 = vector.load %arg12[%c0_102, %c5_103] : memref<8x22xf32, #tpu.memory_space<vmem>>, vector<8x10xf32>
    %c1_104 = arith.constant 1 : index
    %c0_105 = arith.constant 0 : index
    %c0_106 = arith.constant 0 : index
    %c0_107 = arith.constant 0 : index
    %116 = vector.load %arg9[%c1_104, %c0_105, %c0_106, %c0_107] : memref<3x3x4x8xf32, #tpu.memory_space<vmem>>, vector<1x1x4x8xf32>
    %117 = vector.shape_cast %116 : vector<1x1x4x8xf32> to vector<4x8xf32>
    %cst_108 = arith.constant dense<0.000000e+00> : vector<4x10xf32>
    %118 = tpu.matmul %117, %115, %cst_108 {dimension_numbers = #tpu.dot_dimension_numbers<[1], [0], [0], [1], [0, 0, 1, 1], [], []>} : vector<4x8xf32>, vector<8x10xf32>, vector<4x10xf32> -> vector<4x10xf32>
    %119 = arith.addf %114, %118 : vector<4x10xf32>
    %c0_109 = arith.constant 0 : index
    %c10_110 = arith.constant 10 : index
    %120 = vector.load %arg12[%c0_109, %c10_110] : memref<8x22xf32, #tpu.memory_space<vmem>>, vector<8x10xf32>
    %c2_111 = arith.constant 2 : index
    %c0_112 = arith.constant 0 : index
    %c0_113 = arith.constant 0 : index
    %c0_114 = arith.constant 0 : index
    %121 = vector.load %arg9[%c2_111, %c0_112, %c0_113, %c0_114] : memref<3x3x4x8xf32, #tpu.memory_space<vmem>>, vector<1x1x4x8xf32>
    %122 = vector.shape_cast %121 : vector<1x1x4x8xf32> to vector<4x8xf32>
    %cst_115 = arith.constant dense<0.000000e+00> : vector<4x10xf32>
    %123 = tpu.matmul %122, %120, %cst_115 {dimension_numbers = #tpu.dot_dimension_numbers<[1], [0], [0], [1], [0, 0, 1, 1], [], []>} : vector<4x8xf32>, vector<8x10xf32>, vector<4x10xf32> -> vector<4x10xf32>
    %124 = arith.addf %119, %123 : vector<4x10xf32>
    %c0_116 = arith.constant 0 : index
    %c0_117 = arith.constant 0 : index
    %c0_118 = arith.constant 0 : index
    %125 = vector.load %arg3[%c0_116, %c0_117, %c0_118] : memref<3x1x10xf32, #tpu.memory_space<vmem>>, vector<1x1x10xf32>
    %126 = vector.shape_cast %125 : vector<1x1x10xf32> to vector<1x10xf32>
    %127 = vector.broadcast %126 : vector<1x10xf32> to vector<4x10xf32>
    %128 = arith.mulf %124, %127 : vector<4x10xf32>
    %c0_119 = arith.constant 0 : index
    %c1_120 = arith.constant 1 : index
    %129 = vector.load %arg12[%c0_119, %c1_120] : memref<8x22xf32, #tpu.memory_space<vmem>>, vector<8x10xf32>
    %c0_121 = arith.constant 0 : index
    %c1_122 = arith.constant 1 : index
    %c0_123 = arith.constant 0 : index
    %c0_124 = arith.constant 0 : index
    %130 = vector.load %arg9[%c0_121, %c1_122, %c0_123, %c0_124] : memref<3x3x4x8xf32, #tpu.memory_space<vmem>>, vector<1x1x4x8xf32>
    %131 = vector.shape_cast %130 : vector<1x1x4x8xf32> to vector<4x8xf32>
    %cst_125 = arith.constant dense<0.000000e+00> : vector<4x10xf32>
    %132 = tpu.matmul %131, %129, %cst_125 {dimension_numbers = #tpu.dot_dimension_numbers<[1], [0], [0], [1], [0, 0, 1, 1], [], []>} : vector<4x8xf32>, vector<8x10xf32>, vector<4x10xf32> -> vector<4x10xf32>
    %c0_126 = arith.constant 0 : index
    %c6_127 = arith.constant 6 : index
    %133 = vector.load %arg12[%c0_126, %c6_127] : memref<8x22xf32, #tpu.memory_space<vmem>>, vector<8x10xf32>
    %c1_128 = arith.constant 1 : index
    %c1_129 = arith.constant 1 : index
    %c0_130 = arith.constant 0 : index
    %c0_131 = arith.constant 0 : index
    %134 = vector.load %arg9[%c1_128, %c1_129, %c0_130, %c0_131] : memref<3x3x4x8xf32, #tpu.memory_space<vmem>>, vector<1x1x4x8xf32>
    %135 = vector.shape_cast %134 : vector<1x1x4x8xf32> to vector<4x8xf32>
    %cst_132 = arith.constant dense<0.000000e+00> : vector<4x10xf32>
    %136 = tpu.matmul %135, %133, %cst_132 {dimension_numbers = #tpu.dot_dimension_numbers<[1], [0], [0], [1], [0, 0, 1, 1], [], []>} : vector<4x8xf32>, vector<8x10xf32>, vector<4x10xf32> -> vector<4x10xf32>
    %137 = arith.addf %132, %136 : vector<4x10xf32>
    %c0_133 = arith.constant 0 : index
    %c11_134 = arith.constant 11 : index
    %138 = vector.load %arg12[%c0_133, %c11_134] : memref<8x22xf32, #tpu.memory_space<vmem>>, vector<8x10xf32>
    %c2_135 = arith.constant 2 : index
    %c1_136 = arith.constant 1 : index
    %c0_137 = arith.constant 0 : index
    %c0_138 = arith.constant 0 : index
    %139 = vector.load %arg9[%c2_135, %c1_136, %c0_137, %c0_138] : memref<3x3x4x8xf32, #tpu.memory_space<vmem>>, vector<1x1x4x8xf32>
    %140 = vector.shape_cast %139 : vector<1x1x4x8xf32> to vector<4x8xf32>
    %cst_139 = arith.constant dense<0.000000e+00> : vector<4x10xf32>
    %141 = tpu.matmul %140, %138, %cst_139 {dimension_numbers = #tpu.dot_dimension_numbers<[1], [0], [0], [1], [0, 0, 1, 1], [], []>} : vector<4x8xf32>, vector<8x10xf32>, vector<4x10xf32> -> vector<4x10xf32>
    %142 = arith.addf %137, %141 : vector<4x10xf32>
    %143 = arith.addf %128, %142 : vector<4x10xf32>
    %c0_140 = arith.constant 0 : index
    %c2_141 = arith.constant 2 : index
    %144 = vector.load %arg12[%c0_140, %c2_141] : memref<8x22xf32, #tpu.memory_space<vmem>>, vector<8x10xf32>
    %c0_142 = arith.constant 0 : index
    %c2_143 = arith.constant 2 : index
    %c0_144 = arith.constant 0 : index
    %c0_145 = arith.constant 0 : index
    %145 = vector.load %arg9[%c0_142, %c2_143, %c0_144, %c0_145] : memref<3x3x4x8xf32, #tpu.memory_space<vmem>>, vector<1x1x4x8xf32>
    %146 = vector.shape_cast %145 : vector<1x1x4x8xf32> to vector<4x8xf32>
    %cst_146 = arith.constant dense<0.000000e+00> : vector<4x10xf32>
    %147 = tpu.matmul %146, %144, %cst_146 {dimension_numbers = #tpu.dot_dimension_numbers<[1], [0], [0], [1], [0, 0, 1, 1], [], []>} : vector<4x8xf32>, vector<8x10xf32>, vector<4x10xf32> -> vector<4x10xf32>
    %c0_147 = arith.constant 0 : index
    %c7_148 = arith.constant 7 : index
    %148 = vector.load %arg12[%c0_147, %c7_148] : memref<8x22xf32, #tpu.memory_space<vmem>>, vector<8x10xf32>
    %c1_149 = arith.constant 1 : index
    %c2_150 = arith.constant 2 : index
    %c0_151 = arith.constant 0 : index
    %c0_152 = arith.constant 0 : index
    %149 = vector.load %arg9[%c1_149, %c2_150, %c0_151, %c0_152] : memref<3x3x4x8xf32, #tpu.memory_space<vmem>>, vector<1x1x4x8xf32>
    %150 = vector.shape_cast %149 : vector<1x1x4x8xf32> to vector<4x8xf32>
    %cst_153 = arith.constant dense<0.000000e+00> : vector<4x10xf32>
    %151 = tpu.matmul %150, %148, %cst_153 {dimension_numbers = #tpu.dot_dimension_numbers<[1], [0], [0], [1], [0, 0, 1, 1], [], []>} : vector<4x8xf32>, vector<8x10xf32>, vector<4x10xf32> -> vector<4x10xf32>
    %152 = arith.addf %147, %151 : vector<4x10xf32>
    %c0_154 = arith.constant 0 : index
    %c12_155 = arith.constant 12 : index
    %153 = vector.load %arg12[%c0_154, %c12_155] : memref<8x22xf32, #tpu.memory_space<vmem>>, vector<8x10xf32>
    %c2_156 = arith.constant 2 : index
    %c2_157 = arith.constant 2 : index
    %c0_158 = arith.constant 0 : index
    %c0_159 = arith.constant 0 : index
    %154 = vector.load %arg9[%c2_156, %c2_157, %c0_158, %c0_159] : memref<3x3x4x8xf32, #tpu.memory_space<vmem>>, vector<1x1x4x8xf32>
    %155 = vector.shape_cast %154 : vector<1x1x4x8xf32> to vector<4x8xf32>
    %cst_160 = arith.constant dense<0.000000e+00> : vector<4x10xf32>
    %156 = tpu.matmul %155, %153, %cst_160 {dimension_numbers = #tpu.dot_dimension_numbers<[1], [0], [0], [1], [0, 0, 1, 1], [], []>} : vector<4x8xf32>, vector<8x10xf32>, vector<4x10xf32> -> vector<4x10xf32>
    %157 = arith.addf %152, %156 : vector<4x10xf32>
    %c2_161 = arith.constant 2 : index
    %c0_162 = arith.constant 0 : index
    %c0_163 = arith.constant 0 : index
    %158 = vector.load %arg3[%c2_161, %c0_162, %c0_163] : memref<3x1x10xf32, #tpu.memory_space<vmem>>, vector<1x1x10xf32>
    %159 = vector.shape_cast %158 : vector<1x1x10xf32> to vector<1x10xf32>
    %160 = vector.broadcast %159 : vector<1x10xf32> to vector<4x10xf32>
    %161 = arith.mulf %157, %160 : vector<4x10xf32>
    %162 = arith.addf %143, %161 : vector<4x10xf32>
    %c0_164 = arith.constant 0 : index
    %c0_165 = arith.constant 0 : index
    %163 = vector.load %arg10[%c0_164, %c0_165] : memref<4x1xf32, #tpu.memory_space<vmem>>, vector<4x1xf32>
    %164 = vector.broadcast %163 : vector<4x1xf32> to vector<4x10xf32>
    %165 = arith.addf %162, %164 : vector<4x10xf32>
    %c0_166 = arith.constant 0 : index
    %c0_167 = arith.constant 0 : index
    %c0_168 = arith.constant 0 : index
    %166 = vector.load %arg6[%c0_166, %c0_167, %c0_168] : memref<1x1x2xf32, #tpu.memory_space<vmem>>, vector<1x1x1xf32>
    %167 = vector.shape_cast %166 : vector<1x1x1xf32> to vector<1x1xf32>
    %168 = vector.broadcast %167 : vector<1x1xf32> to vector<4x10xf32>
    %169 = arith.mulf %168, %165 : vector<4x10xf32>
    %170 = arith.addf %1, %169 : vector<4x10xf32>
    %c0_169 = arith.constant 0 : index
    %c0_170 = arith.constant 0 : index
    %c0_171 = arith.constant 0 : index
    %171 = vector.load %arg2[%c0_169, %c0_170, %c0_171] : memref<1x4x20xf32, #tpu.memory_space<vmem>>, vector<1x4x12xf32>
    %172 = vector.shape_cast %171 : vector<1x4x12xf32> to vector<4x12xf32>
    %c0_172 = arith.constant 0 : index
    %c0_173 = arith.constant 0 : index
    %c0_174 = arith.constant 0 : index
    %c0_175 = arith.constant 0 : index
    %173 = vector.load %arg7[%c0_172, %c0_173, %c0_174, %c0_175] : memref<3x3x8x4xf32, #tpu.memory_space<vmem>>, vector<1x1x8x4xf32>
    %174 = vector.shape_cast %173 : vector<1x1x8x4xf32> to vector<8x4xf32>
    %cst_176 = arith.constant dense<0.000000e+00> : vector<8x12xf32>
    %175 = tpu.matmul %174, %172, %cst_176 {dimension_numbers = #tpu.dot_dimension_numbers<[1], [0], [0], [1], [0, 0, 1, 1], [], []>} : vector<8x4xf32>, vector<4x12xf32>, vector<8x12xf32> -> vector<8x12xf32>
    %c0_177 = arith.constant 0 : index
    %c0_178 = arith.constant 0 : index
    %c3 = arith.constant 3 : index
    %176 = vector.load %arg2[%c0_177, %c0_178, %c3] : memref<1x4x20xf32, #tpu.memory_space<vmem>>, vector<1x4x12xf32>
    %177 = vector.shape_cast %176 : vector<1x4x12xf32> to vector<4x12xf32>
    %c1_179 = arith.constant 1 : index
    %c0_180 = arith.constant 0 : index
    %c0_181 = arith.constant 0 : index
    %c0_182 = arith.constant 0 : index
    %178 = vector.load %arg7[%c1_179, %c0_180, %c0_181, %c0_182] : memref<3x3x8x4xf32, #tpu.memory_space<vmem>>, vector<1x1x8x4xf32>
    %179 = vector.shape_cast %178 : vector<1x1x8x4xf32> to vector<8x4xf32>
    %cst_183 = arith.constant dense<0.000000e+00> : vector<8x12xf32>
    %180 = tpu.matmul %179, %177, %cst_183 {dimension_numbers = #tpu.dot_dimension_numbers<[1], [0], [0], [1], [0, 0, 1, 1], [], []>} : vector<8x4xf32>, vector<4x12xf32>, vector<8x12xf32> -> vector<8x12xf32>
    %181 = arith.addf %175, %180 : vector<8x12xf32>
    %c0_184 = arith.constant 0 : index
    %c0_185 = arith.constant 0 : index
    %c6_186 = arith.constant 6 : index
    %182 = vector.load %arg2[%c0_184, %c0_185, %c6_186] : memref<1x4x20xf32, #tpu.memory_space<vmem>>, vector<1x4x12xf32>
    %183 = vector.shape_cast %182 : vector<1x4x12xf32> to vector<4x12xf32>
    %c2_187 = arith.constant 2 : index
    %c0_188 = arith.constant 0 : index
    %c0_189 = arith.constant 0 : index
    %c0_190 = arith.constant 0 : index
    %184 = vector.load %arg7[%c2_187, %c0_188, %c0_189, %c0_190] : memref<3x3x8x4xf32, #tpu.memory_space<vmem>>, vector<1x1x8x4xf32>
    %185 = vector.shape_cast %184 : vector<1x1x8x4xf32> to vector<8x4xf32>
    %cst_191 = arith.constant dense<0.000000e+00> : vector<8x12xf32>
    %186 = tpu.matmul %185, %183, %cst_191 {dimension_numbers = #tpu.dot_dimension_numbers<[1], [0], [0], [1], [0, 0, 1, 1], [], []>} : vector<8x4xf32>, vector<4x12xf32>, vector<8x12xf32> -> vector<8x12xf32>
    %187 = arith.addf %181, %186 : vector<8x12xf32>
    %c0_192 = arith.constant 0 : index
    %c0_193 = arith.constant 0 : index
    %c0_194 = arith.constant 0 : index
    %188 = vector.load %arg4[%c0_192, %c0_193, %c0_194] : memref<3x1x12xf32, #tpu.memory_space<vmem>>, vector<1x1x12xf32>
    %189 = vector.shape_cast %188 : vector<1x1x12xf32> to vector<1x12xf32>
    %190 = vector.broadcast %189 : vector<1x12xf32> to vector<8x12xf32>
    %191 = arith.mulf %187, %190 : vector<8x12xf32>
    %c0_195 = arith.constant 0 : index
    %c0_196 = arith.constant 0 : index
    %c1_197 = arith.constant 1 : index
    %192 = vector.load %arg2[%c0_195, %c0_196, %c1_197] : memref<1x4x20xf32, #tpu.memory_space<vmem>>, vector<1x4x12xf32>
    %193 = vector.shape_cast %192 : vector<1x4x12xf32> to vector<4x12xf32>
    %c0_198 = arith.constant 0 : index
    %c1_199 = arith.constant 1 : index
    %c0_200 = arith.constant 0 : index
    %c0_201 = arith.constant 0 : index
    %194 = vector.load %arg7[%c0_198, %c1_199, %c0_200, %c0_201] : memref<3x3x8x4xf32, #tpu.memory_space<vmem>>, vector<1x1x8x4xf32>
    %195 = vector.shape_cast %194 : vector<1x1x8x4xf32> to vector<8x4xf32>
    %cst_202 = arith.constant dense<0.000000e+00> : vector<8x12xf32>
    %196 = tpu.matmul %195, %193, %cst_202 {dimension_numbers = #tpu.dot_dimension_numbers<[1], [0], [0], [1], [0, 0, 1, 1], [], []>} : vector<8x4xf32>, vector<4x12xf32>, vector<8x12xf32> -> vector<8x12xf32>
    %c0_203 = arith.constant 0 : index
    %c0_204 = arith.constant 0 : index
    %c4 = arith.constant 4 : index
    %197 = vector.load %arg2[%c0_203, %c0_204, %c4] : memref<1x4x20xf32, #tpu.memory_space<vmem>>, vector<1x4x12xf32>
    %198 = vector.shape_cast %197 : vector<1x4x12xf32> to vector<4x12xf32>
    %c1_205 = arith.constant 1 : index
    %c1_206 = arith.constant 1 : index
    %c0_207 = arith.constant 0 : index
    %c0_208 = arith.constant 0 : index
    %199 = vector.load %arg7[%c1_205, %c1_206, %c0_207, %c0_208] : memref<3x3x8x4xf32, #tpu.memory_space<vmem>>, vector<1x1x8x4xf32>
    %200 = vector.shape_cast %199 : vector<1x1x8x4xf32> to vector<8x4xf32>
    %cst_209 = arith.constant dense<0.000000e+00> : vector<8x12xf32>
    %201 = tpu.matmul %200, %198, %cst_209 {dimension_numbers = #tpu.dot_dimension_numbers<[1], [0], [0], [1], [0, 0, 1, 1], [], []>} : vector<8x4xf32>, vector<4x12xf32>, vector<8x12xf32> -> vector<8x12xf32>
    %202 = arith.addf %196, %201 : vector<8x12xf32>
    %c0_210 = arith.constant 0 : index
    %c0_211 = arith.constant 0 : index
    %c7_212 = arith.constant 7 : index
    %203 = vector.load %arg2[%c0_210, %c0_211, %c7_212] : memref<1x4x20xf32, #tpu.memory_space<vmem>>, vector<1x4x12xf32>
    %204 = vector.shape_cast %203 : vector<1x4x12xf32> to vector<4x12xf32>
    %c2_213 = arith.constant 2 : index
    %c1_214 = arith.constant 1 : index
    %c0_215 = arith.constant 0 : index
    %c0_216 = arith.constant 0 : index
    %205 = vector.load %arg7[%c2_213, %c1_214, %c0_215, %c0_216] : memref<3x3x8x4xf32, #tpu.memory_space<vmem>>, vector<1x1x8x4xf32>
    %206 = vector.shape_cast %205 : vector<1x1x8x4xf32> to vector<8x4xf32>
    %cst_217 = arith.constant dense<0.000000e+00> : vector<8x12xf32>
    %207 = tpu.matmul %206, %204, %cst_217 {dimension_numbers = #tpu.dot_dimension_numbers<[1], [0], [0], [1], [0, 0, 1, 1], [], []>} : vector<8x4xf32>, vector<4x12xf32>, vector<8x12xf32> -> vector<8x12xf32>
    %208 = arith.addf %202, %207 : vector<8x12xf32>
    %209 = arith.addf %191, %208 : vector<8x12xf32>
    %c0_218 = arith.constant 0 : index
    %c0_219 = arith.constant 0 : index
    %c2_220 = arith.constant 2 : index
    %210 = vector.load %arg2[%c0_218, %c0_219, %c2_220] : memref<1x4x20xf32, #tpu.memory_space<vmem>>, vector<1x4x12xf32>
    %211 = vector.shape_cast %210 : vector<1x4x12xf32> to vector<4x12xf32>
    %c0_221 = arith.constant 0 : index
    %c2_222 = arith.constant 2 : index
    %c0_223 = arith.constant 0 : index
    %c0_224 = arith.constant 0 : index
    %212 = vector.load %arg7[%c0_221, %c2_222, %c0_223, %c0_224] : memref<3x3x8x4xf32, #tpu.memory_space<vmem>>, vector<1x1x8x4xf32>
    %213 = vector.shape_cast %212 : vector<1x1x8x4xf32> to vector<8x4xf32>
    %cst_225 = arith.constant dense<0.000000e+00> : vector<8x12xf32>
    %214 = tpu.matmul %213, %211, %cst_225 {dimension_numbers = #tpu.dot_dimension_numbers<[1], [0], [0], [1], [0, 0, 1, 1], [], []>} : vector<8x4xf32>, vector<4x12xf32>, vector<8x12xf32> -> vector<8x12xf32>
    %c0_226 = arith.constant 0 : index
    %c0_227 = arith.constant 0 : index
    %c5_228 = arith.constant 5 : index
    %215 = vector.load %arg2[%c0_226, %c0_227, %c5_228] : memref<1x4x20xf32, #tpu.memory_space<vmem>>, vector<1x4x12xf32>
    %216 = vector.shape_cast %215 : vector<1x4x12xf32> to vector<4x12xf32>
    %c1_229 = arith.constant 1 : index
    %c2_230 = arith.constant 2 : index
    %c0_231 = arith.constant 0 : index
    %c0_232 = arith.constant 0 : index
    %217 = vector.load %arg7[%c1_229, %c2_230, %c0_231, %c0_232] : memref<3x3x8x4xf32, #tpu.memory_space<vmem>>, vector<1x1x8x4xf32>
    %218 = vector.shape_cast %217 : vector<1x1x8x4xf32> to vector<8x4xf32>
    %cst_233 = arith.constant dense<0.000000e+00> : vector<8x12xf32>
    %219 = tpu.matmul %218, %216, %cst_233 {dimension_numbers = #tpu.dot_dimension_numbers<[1], [0], [0], [1], [0, 0, 1, 1], [], []>} : vector<8x4xf32>, vector<4x12xf32>, vector<8x12xf32> -> vector<8x12xf32>
    %220 = arith.addf %214, %219 : vector<8x12xf32>
    %c0_234 = arith.constant 0 : index
    %c0_235 = arith.constant 0 : index
    %c8 = arith.constant 8 : index
    %221 = vector.load %arg2[%c0_234, %c0_235, %c8] : memref<1x4x20xf32, #tpu.memory_space<vmem>>, vector<1x4x12xf32>
    %222 = vector.shape_cast %221 : vector<1x4x12xf32> to vector<4x12xf32>
    %c2_236 = arith.constant 2 : index
    %c2_237 = arith.constant 2 : index
    %c0_238 = arith.constant 0 : index
    %c0_239 = arith.constant 0 : index
    %223 = vector.load %arg7[%c2_236, %c2_237, %c0_238, %c0_239] : memref<3x3x8x4xf32, #tpu.memory_space<vmem>>, vector<1x1x8x4xf32>
    %224 = vector.shape_cast %223 : vector<1x1x8x4xf32> to vector<8x4xf32>
    %cst_240 = arith.constant dense<0.000000e+00> : vector<8x12xf32>
    %225 = tpu.matmul %224, %222, %cst_240 {dimension_numbers = #tpu.dot_dimension_numbers<[1], [0], [0], [1], [0, 0, 1, 1], [], []>} : vector<8x4xf32>, vector<4x12xf32>, vector<8x12xf32> -> vector<8x12xf32>
    %226 = arith.addf %220, %225 : vector<8x12xf32>
    %c2_241 = arith.constant 2 : index
    %c0_242 = arith.constant 0 : index
    %c0_243 = arith.constant 0 : index
    %227 = vector.load %arg4[%c2_241, %c0_242, %c0_243] : memref<3x1x12xf32, #tpu.memory_space<vmem>>, vector<1x1x12xf32>
    %228 = vector.shape_cast %227 : vector<1x1x12xf32> to vector<1x12xf32>
    %229 = vector.broadcast %228 : vector<1x12xf32> to vector<8x12xf32>
    %230 = arith.mulf %226, %229 : vector<8x12xf32>
    %231 = arith.addf %209, %230 : vector<8x12xf32>
    %c0_244 = arith.constant 0 : index
    %c0_245 = arith.constant 0 : index
    %232 = vector.load %arg8[%c0_244, %c0_245] : memref<8x1xf32, #tpu.memory_space<vmem>>, vector<8x1xf32>
    %233 = vector.broadcast %232 : vector<8x1xf32> to vector<8x12xf32>
    %234 = arith.addf %231, %233 : vector<8x12xf32>
    %cst_246 = arith.constant 5.000000e-01 : f32
    %235 = vector.broadcast %cst_246 : f32 to vector<8x12xf32>
    %236 = arith.mulf %235, %234 : vector<8x12xf32>
    %cst_247 = arith.constant 0.707106769 : f32
    %237 = vector.broadcast %cst_247 : f32 to vector<8x12xf32>
    %238 = arith.mulf %234, %237 : vector<8x12xf32>
    %239 = math.absf %238 : vector<8x12xf32>
    %cst_248 = arith.constant 0.327591091 : f32
    %240 = vector.broadcast %cst_248 : f32 to vector<8x12xf32>
    %241 = arith.mulf %240, %239 : vector<8x12xf32>
    %cst_249 = arith.constant 1.000000e+00 : f32
    %242 = vector.broadcast %cst_249 : f32 to vector<8x12xf32>
    %243 = arith.addf %242, %241 : vector<8x12xf32>
    %cst_250 = arith.constant 1.000000e+00 : f32
    %244 = vector.broadcast %cst_250 : f32 to vector<8x12xf32>
    %245 = arith.divf %244, %243 : vector<8x12xf32>
    %cst_251 = arith.constant 1.06140542 : f32
    %246 = vector.broadcast %cst_251 : f32 to vector<8x12xf32>
    %247 = arith.mulf %246, %245 : vector<8x12xf32>
    %cst_252 = arith.constant -1.45315206 : f32
    %248 = vector.broadcast %cst_252 : f32 to vector<8x12xf32>
    %249 = arith.addf %247, %248 : vector<8x12xf32>
    %250 = arith.mulf %249, %245 : vector<8x12xf32>
    %cst_253 = arith.constant 1.42141378 : f32
    %251 = vector.broadcast %cst_253 : f32 to vector<8x12xf32>
    %252 = arith.addf %250, %251 : vector<8x12xf32>
    %253 = arith.mulf %252, %245 : vector<8x12xf32>
    %cst_254 = arith.constant -0.284496725 : f32
    %254 = vector.broadcast %cst_254 : f32 to vector<8x12xf32>
    %255 = arith.addf %253, %254 : vector<8x12xf32>
    %256 = arith.mulf %255, %245 : vector<8x12xf32>
    %cst_255 = arith.constant 0.254829586 : f32
    %257 = vector.broadcast %cst_255 : f32 to vector<8x12xf32>
    %258 = arith.addf %256, %257 : vector<8x12xf32>
    %259 = arith.mulf %258, %245 : vector<8x12xf32>
    %cst_256 = arith.constant 0.000000e+00 : f32
    %260 = vector.broadcast %cst_256 : f32 to vector<8x12xf32>
    %261 = arith.subf %260, %239 : vector<8x12xf32>
    %262 = arith.mulf %261, %239 : vector<8x12xf32>
    %263 = math.exp %262 : vector<8x12xf32>
    %264 = arith.mulf %259, %263 : vector<8x12xf32>
    %cst_257 = arith.constant 1.000000e+00 : f32
    %265 = vector.broadcast %cst_257 : f32 to vector<8x12xf32>
    %266 = arith.subf %265, %264 : vector<8x12xf32>
    %cst_258 = arith.constant 0.000000e+00 : f32
    %267 = vector.broadcast %cst_258 : f32 to vector<8x12xf32>
    %268 = arith.cmpf oge, %238, %267 : vector<8x12xf32>
    %cst_259 = arith.constant 0.000000e+00 : f32
    %269 = vector.broadcast %cst_259 : f32 to vector<8x12xf32>
    %270 = arith.subf %269, %266 : vector<8x12xf32>
    %271 = arith.select %268, %266, %270 : vector<8x12xi1>, vector<8x12xf32>
    %cst_260 = arith.constant 1.000000e+00 : f32
    %272 = vector.broadcast %cst_260 : f32 to vector<8x12xf32>
    %273 = arith.addf %272, %271 : vector<8x12xf32>
    %274 = arith.mulf %236, %273 : vector<8x12xf32>
    %cst_261 = arith.constant 0.000000e+00 : f32
    %275 = vector.broadcast %cst_261 : f32 to vector<8x4xf32>
    %c0_262 = arith.constant 0 : index
    %c0_263 = arith.constant 0 : index
    %276 = vector.load %arg12[%c0_262, %c0_263] : memref<8x22xf32, #tpu.memory_space<vmem>>, vector<8x4xf32>
    tpu.vector_store %arg12[%c0_262, %c0_263], %275 {strides = array<i32>} : memref<8x22xf32, #tpu.memory_space<vmem>>, vector<8x4xf32>,
    %cst_264 = arith.constant 0.000000e+00 : f32
    %277 = vector.broadcast %cst_264 : f32 to vector<8x4xf32>
    %c0_265 = arith.constant 0 : index
    %c16_266 = arith.constant 16 : index
    %278 = vector.load %arg12[%c0_265, %c16_266] : memref<8x22xf32, #tpu.memory_space<vmem>>, vector<8x4xf32>
    tpu.vector_store %arg12[%c0_265, %c16_266], %277 {strides = array<i32>} : memref<8x22xf32, #tpu.memory_space<vmem>>, vector<8x4xf32>,
    %c0_267 = arith.constant 0 : index
    %c4_268 = arith.constant 4 : index
    %279 = vector.load %arg12[%c0_267, %c4_268] : memref<8x22xf32, #tpu.memory_space<vmem>>, vector<8x12xf32>
    tpu.vector_store %arg12[%c0_267, %c4_268], %274 {strides = array<i32>} : memref<8x22xf32, #tpu.memory_space<vmem>>, vector<8x12xf32>,
    %c0_269 = arith.constant 0 : index
    %c0_270 = arith.constant 0 : index
    %280 = vector.load %arg12[%c0_269, %c0_270] : memref<8x22xf32, #tpu.memory_space<vmem>>, vector<8x12xf32>
    %c0_271 = arith.constant 0 : index
    %c0_272 = arith.constant 0 : index
    %c0_273 = arith.constant 0 : index
    %c0_274 = arith.constant 0 : index
    %281 = vector.load %arg9[%c0_271, %c0_272, %c0_273, %c0_274] : memref<3x3x4x8xf32, #tpu.memory_space<vmem>>, vector<1x1x4x8xf32>
    %282 = vector.shape_cast %281 : vector<1x1x4x8xf32> to vector<4x8xf32>
    %cst_275 = arith.constant dense<0.000000e+00> : vector<4x12xf32>
    %283 = tpu.matmul %282, %280, %cst_275 {dimension_numbers = #tpu.dot_dimension_numbers<[1], [0], [0], [1], [0, 0, 1, 1], [], []>} : vector<4x8xf32>, vector<8x12xf32>, vector<4x12xf32> -> vector<4x12xf32>
    %c0_276 = arith.constant 0 : index
    %c3_277 = arith.constant 3 : index
    %284 = vector.load %arg12[%c0_276, %c3_277] : memref<8x22xf32, #tpu.memory_space<vmem>>, vector<8x12xf32>
    %c1_278 = arith.constant 1 : index
    %c0_279 = arith.constant 0 : index
    %c0_280 = arith.constant 0 : index
    %c0_281 = arith.constant 0 : index
    %285 = vector.load %arg9[%c1_278, %c0_279, %c0_280, %c0_281] : memref<3x3x4x8xf32, #tpu.memory_space<vmem>>, vector<1x1x4x8xf32>
    %286 = vector.shape_cast %285 : vector<1x1x4x8xf32> to vector<4x8xf32>
    %cst_282 = arith.constant dense<0.000000e+00> : vector<4x12xf32>
    %287 = tpu.matmul %286, %284, %cst_282 {dimension_numbers = #tpu.dot_dimension_numbers<[1], [0], [0], [1], [0, 0, 1, 1], [], []>} : vector<4x8xf32>, vector<8x12xf32>, vector<4x12xf32> -> vector<4x12xf32>
    %288 = arith.addf %283, %287 : vector<4x12xf32>
    %c0_283 = arith.constant 0 : index
    %c6_284 = arith.constant 6 : index
    %289 = vector.load %arg12[%c0_283, %c6_284] : memref<8x22xf32, #tpu.memory_space<vmem>>, vector<8x12xf32>
    %c2_285 = arith.constant 2 : index
    %c0_286 = arith.constant 0 : index
    %c0_287 = arith.constant 0 : index
    %c0_288 = arith.constant 0 : index
    %290 = vector.load %arg9[%c2_285, %c0_286, %c0_287, %c0_288] : memref<3x3x4x8xf32, #tpu.memory_space<vmem>>, vector<1x1x4x8xf32>
    %291 = vector.shape_cast %290 : vector<1x1x4x8xf32> to vector<4x8xf32>
    %cst_289 = arith.constant dense<0.000000e+00> : vector<4x12xf32>
    %292 = tpu.matmul %291, %289, %cst_289 {dimension_numbers = #tpu.dot_dimension_numbers<[1], [0], [0], [1], [0, 0, 1, 1], [], []>} : vector<4x8xf32>, vector<8x12xf32>, vector<4x12xf32> -> vector<4x12xf32>
    %293 = arith.addf %288, %292 : vector<4x12xf32>
    %c0_290 = arith.constant 0 : index
    %c0_291 = arith.constant 0 : index
    %c0_292 = arith.constant 0 : index
    %294 = vector.load %arg4[%c0_290, %c0_291, %c0_292] : memref<3x1x12xf32, #tpu.memory_space<vmem>>, vector<1x1x12xf32>
    %295 = vector.shape_cast %294 : vector<1x1x12xf32> to vector<1x12xf32>
    %296 = vector.broadcast %295 : vector<1x12xf32> to vector<4x12xf32>
    %297 = arith.mulf %293, %296 : vector<4x12xf32>
    %c0_293 = arith.constant 0 : index
    %c1_294 = arith.constant 1 : index
    %298 = vector.load %arg12[%c0_293, %c1_294] : memref<8x22xf32, #tpu.memory_space<vmem>>, vector<8x12xf32>
    %c0_295 = arith.constant 0 : index
    %c1_296 = arith.constant 1 : index
    %c0_297 = arith.constant 0 : index
    %c0_298 = arith.constant 0 : index
    %299 = vector.load %arg9[%c0_295, %c1_296, %c0_297, %c0_298] : memref<3x3x4x8xf32, #tpu.memory_space<vmem>>, vector<1x1x4x8xf32>
    %300 = vector.shape_cast %299 : vector<1x1x4x8xf32> to vector<4x8xf32>
    %cst_299 = arith.constant dense<0.000000e+00> : vector<4x12xf32>
    %301 = tpu.matmul %300, %298, %cst_299 {dimension_numbers = #tpu.dot_dimension_numbers<[1], [0], [0], [1], [0, 0, 1, 1], [], []>} : vector<4x8xf32>, vector<8x12xf32>, vector<4x12xf32> -> vector<4x12xf32>
    %c0_300 = arith.constant 0 : index
    %c4_301 = arith.constant 4 : index
    %302 = vector.load %arg12[%c0_300, %c4_301] : memref<8x22xf32, #tpu.memory_space<vmem>>, vector<8x12xf32>
    %c1_302 = arith.constant 1 : index
    %c1_303 = arith.constant 1 : index
    %c0_304 = arith.constant 0 : index
    %c0_305 = arith.constant 0 : index
    %303 = vector.load %arg9[%c1_302, %c1_303, %c0_304, %c0_305] : memref<3x3x4x8xf32, #tpu.memory_space<vmem>>, vector<1x1x4x8xf32>
    %304 = vector.shape_cast %303 : vector<1x1x4x8xf32> to vector<4x8xf32>
    %cst_306 = arith.constant dense<0.000000e+00> : vector<4x12xf32>
    %305 = tpu.matmul %304, %302, %cst_306 {dimension_numbers = #tpu.dot_dimension_numbers<[1], [0], [0], [1], [0, 0, 1, 1], [], []>} : vector<4x8xf32>, vector<8x12xf32>, vector<4x12xf32> -> vector<4x12xf32>
    %306 = arith.addf %301, %305 : vector<4x12xf32>
    %c0_307 = arith.constant 0 : index
    %c7_308 = arith.constant 7 : index
    %307 = vector.load %arg12[%c0_307, %c7_308] : memref<8x22xf32, #tpu.memory_space<vmem>>, vector<8x12xf32>
    %c2_309 = arith.constant 2 : index
    %c1_310 = arith.constant 1 : index
    %c0_311 = arith.constant 0 : index
    %c0_312 = arith.constant 0 : index
    %308 = vector.load %arg9[%c2_309, %c1_310, %c0_311, %c0_312] : memref<3x3x4x8xf32, #tpu.memory_space<vmem>>, vector<1x1x4x8xf32>
    %309 = vector.shape_cast %308 : vector<1x1x4x8xf32> to vector<4x8xf32>
    %cst_313 = arith.constant dense<0.000000e+00> : vector<4x12xf32>
    %310 = tpu.matmul %309, %307, %cst_313 {dimension_numbers = #tpu.dot_dimension_numbers<[1], [0], [0], [1], [0, 0, 1, 1], [], []>} : vector<4x8xf32>, vector<8x12xf32>, vector<4x12xf32> -> vector<4x12xf32>
    %311 = arith.addf %306, %310 : vector<4x12xf32>
    %312 = arith.addf %297, %311 : vector<4x12xf32>
    %c0_314 = arith.constant 0 : index
    %c2_315 = arith.constant 2 : index
    %313 = vector.load %arg12[%c0_314, %c2_315] : memref<8x22xf32, #tpu.memory_space<vmem>>, vector<8x12xf32>
    %c0_316 = arith.constant 0 : index
    %c2_317 = arith.constant 2 : index
    %c0_318 = arith.constant 0 : index
    %c0_319 = arith.constant 0 : index
    %314 = vector.load %arg9[%c0_316, %c2_317, %c0_318, %c0_319] : memref<3x3x4x8xf32, #tpu.memory_space<vmem>>, vector<1x1x4x8xf32>
    %315 = vector.shape_cast %314 : vector<1x1x4x8xf32> to vector<4x8xf32>
    %cst_320 = arith.constant dense<0.000000e+00> : vector<4x12xf32>
    %316 = tpu.matmul %315, %313, %cst_320 {dimension_numbers = #tpu.dot_dimension_numbers<[1], [0], [0], [1], [0, 0, 1, 1], [], []>} : vector<4x8xf32>, vector<8x12xf32>, vector<4x12xf32> -> vector<4x12xf32>
    %c0_321 = arith.constant 0 : index
    %c5_322 = arith.constant 5 : index
    %317 = vector.load %arg12[%c0_321, %c5_322] : memref<8x22xf32, #tpu.memory_space<vmem>>, vector<8x12xf32>
    %c1_323 = arith.constant 1 : index
    %c2_324 = arith.constant 2 : index
    %c0_325 = arith.constant 0 : index
    %c0_326 = arith.constant 0 : index
    %318 = vector.load %arg9[%c1_323, %c2_324, %c0_325, %c0_326] : memref<3x3x4x8xf32, #tpu.memory_space<vmem>>, vector<1x1x4x8xf32>
    %319 = vector.shape_cast %318 : vector<1x1x4x8xf32> to vector<4x8xf32>
    %cst_327 = arith.constant dense<0.000000e+00> : vector<4x12xf32>
    %320 = tpu.matmul %319, %317, %cst_327 {dimension_numbers = #tpu.dot_dimension_numbers<[1], [0], [0], [1], [0, 0, 1, 1], [], []>} : vector<4x8xf32>, vector<8x12xf32>, vector<4x12xf32> -> vector<4x12xf32>
    %321 = arith.addf %316, %320 : vector<4x12xf32>
    %c0_328 = arith.constant 0 : index
    %c8_329 = arith.constant 8 : index
    %322 = vector.load %arg12[%c0_328, %c8_329] : memref<8x22xf32, #tpu.memory_space<vmem>>, vector<8x12xf32>
    %c2_330 = arith.constant 2 : index
    %c2_331 = arith.constant 2 : index
    %c0_332 = arith.constant 0 : index
    %c0_333 = arith.constant 0 : index
    %323 = vector.load %arg9[%c2_330, %c2_331, %c0_332, %c0_333] : memref<3x3x4x8xf32, #tpu.memory_space<vmem>>, vector<1x1x4x8xf32>
    %324 = vector.shape_cast %323 : vector<1x1x4x8xf32> to vector<4x8xf32>
    %cst_334 = arith.constant dense<0.000000e+00> : vector<4x12xf32>
    %325 = tpu.matmul %324, %322, %cst_334 {dimension_numbers = #tpu.dot_dimension_numbers<[1], [0], [0], [1], [0, 0, 1, 1], [], []>} : vector<4x8xf32>, vector<8x12xf32>, vector<4x12xf32> -> vector<4x12xf32>
    %326 = arith.addf %321, %325 : vector<4x12xf32>
    %c2_335 = arith.constant 2 : index
    %c0_336 = arith.constant 0 : index
    %c0_337 = arith.constant 0 : index
    %327 = vector.load %arg4[%c2_335, %c0_336, %c0_337] : memref<3x1x12xf32, #tpu.memory_space<vmem>>, vector<1x1x12xf32>
    %328 = vector.shape_cast %327 : vector<1x1x12xf32> to vector<1x12xf32>
    %329 = vector.broadcast %328 : vector<1x12xf32> to vector<4x12xf32>
    %330 = arith.mulf %326, %329 : vector<4x12xf32>
    %331 = arith.addf %312, %330 : vector<4x12xf32>
    %c0_338 = arith.constant 0 : index
    %c0_339 = arith.constant 0 : index
    %332 = vector.load %arg10[%c0_338, %c0_339] : memref<4x1xf32, #tpu.memory_space<vmem>>, vector<4x1xf32>
    %333 = vector.broadcast %332 : vector<4x1xf32> to vector<4x12xf32>
    %334 = arith.addf %331, %333 : vector<4x12xf32>
    %335 = vector.extract_strided_slice %334 {offsets = [0, 0], sizes = [4, 10], strides = [1, 1]} : vector<4x12xf32> to vector<4x10xf32>
    %c0_340 = arith.constant 0 : index
    %c0_341 = arith.constant 0 : index
    %c1_342 = arith.constant 1 : index
    %336 = vector.load %arg6[%c0_340, %c0_341, %c1_342] : memref<1x1x2xf32, #tpu.memory_space<vmem>>, vector<1x1x1xf32>
    %337 = vector.shape_cast %336 : vector<1x1x1xf32> to vector<1x1xf32>
    %338 = vector.broadcast %337 : vector<1x1xf32> to vector<4x10xf32>
    %339 = arith.mulf %338, %335 : vector<4x10xf32>
    %340 = arith.addf %170, %339 : vector<4x10xf32>
    %c0_343 = arith.constant 0 : index
    %c0_344 = arith.constant 0 : index
    %c0_345 = arith.constant 0 : index
    %341 = vector.load %arg11[%c0_343, %c0_344, %c0_345] : memref<1x4x10xf32, #tpu.memory_space<vmem>>, vector<1x4x10xf32>
    %342 = vector.shape_cast %341 : vector<1x4x10xf32> to vector<4x10xf32>
    %343 = vector.shape_cast %340 : vector<4x10xf32> to vector<1x4x10xf32>
    tpu.vector_store %arg11[%c0_343, %c0_344, %c0_345], %343 {strides = array<i32>} : memref<1x4x10xf32, #tpu.memory_space<vmem>>, vector<1x4x10xf32>,
    return
  }
  func.func @transform_0(%arg0: i32) -> (i32, i32, i32) {
    %c0_i32 = arith.constant 0 : i32
    %c0_i32_0 = arith.constant 0 : i32
    %c0_i32_1 = arith.constant 0 : i32
    return %arg0, %c0_i32, %c0_i32_0 : i32, i32, i32
  }
  func.func @transform_1(%arg0: i32) -> (i32, i32, i32) {
    %c0_i32 = arith.constant 0 : i32
    %c0_i32_0 = arith.constant 0 : i32
    %c0_i32_1 = arith.constant 0 : i32
    return %arg0, %c0_i32, %c0_i32_0 : i32, i32, i32
  }
  func.func @transform_2(%arg0: i32) -> (i32, i32, i32) {
    %c0_i32 = arith.constant 0 : i32
    %c0_i32_0 = arith.constant 0 : i32
    %c0_i32_1 = arith.constant 0 : i32
    %c0_i32_2 = arith.constant 0 : i32
    return %c0_i32, %c0_i32_0, %c0_i32_1 : i32, i32, i32
  }
  func.func @transform_3(%arg0: i32) -> (i32, i32, i32) {
    %c0_i32 = arith.constant 0 : i32
    %c0_i32_0 = arith.constant 0 : i32
    %c0_i32_1 = arith.constant 0 : i32
    %c0_i32_2 = arith.constant 0 : i32
    return %c0_i32, %c0_i32_0, %c0_i32_1 : i32, i32, i32
  }
  func.func @transform_4(%arg0: i32) -> (i32, i32, i32) {
    %c0_i32 = arith.constant 0 : i32
    %c0_i32_0 = arith.constant 0 : i32
    %c0_i32_1 = arith.constant 0 : i32
    return %arg0, %c0_i32, %c0_i32_0 : i32, i32, i32
  }
  func.func @transform_5(%arg0: i32) -> (i32, i32, i32) {
    %c0_i32 = arith.constant 0 : i32
    %c0_i32_0 = arith.constant 0 : i32
    %c0_i32_1 = arith.constant 0 : i32
    return %arg0, %c0_i32, %c0_i32_0 : i32, i32, i32
  }
  func.func @transform_6(%arg0: i32) -> (i32, i32, i32, i32) {
    %c0_i32 = arith.constant 0 : i32
    %c0_i32_0 = arith.constant 0 : i32
    %c0_i32_1 = arith.constant 0 : i32
    %c0_i32_2 = arith.constant 0 : i32
    %c0_i32_3 = arith.constant 0 : i32
    return %c0_i32, %c0_i32_0, %c0_i32_1, %c0_i32_2 : i32, i32, i32, i32
  }
  func.func @transform_7(%arg0: i32) -> (i32, i32) {
    %c0_i32 = arith.constant 0 : i32
    %c0_i32_0 = arith.constant 0 : i32
    %c0_i32_1 = arith.constant 0 : i32
    return %c0_i32, %c0_i32_0 : i32, i32
  }
  func.func @transform_8(%arg0: i32) -> (i32, i32, i32, i32) {
    %c0_i32 = arith.constant 0 : i32
    %c0_i32_0 = arith.constant 0 : i32
    %c0_i32_1 = arith.constant 0 : i32
    %c0_i32_2 = arith.constant 0 : i32
    %c0_i32_3 = arith.constant 0 : i32
    return %c0_i32, %c0_i32_0, %c0_i32_1, %c0_i32_2 : i32, i32, i32, i32
  }
  func.func @transform_9(%arg0: i32) -> (i32, i32) {
    %c0_i32 = arith.constant 0 : i32
    %c0_i32_0 = arith.constant 0 : i32
    %c0_i32_1 = arith.constant 0 : i32
    return %c0_i32, %c0_i32_0 : i32, i32
  }
  func.func @transform_10(%arg0: i32) -> (i32, i32, i32) {
    %c0_i32 = arith.constant 0 : i32
    %c0_i32_0 = arith.constant 0 : i32
    %c0_i32_1 = arith.constant 0 : i32
    return %arg0, %c0_i32, %c0_i32_0 : i32, i32, i32
  }
}

</mosaic_0001>

<llo_original>
// kernel: _timesblock_fused.1
$region0: #{_timesblock_fused.1}
  #allocation0 [shape = 'u32[]', space=smem, size = 0x4, offset = 0x4, fixed_abs, tag = 'smem constant byte address 0x4 - core index']
  #allocation1 [shape = 'u32[144,128]{1,0:T(1,128)}', space=vmem, size = 0x12000, scoped, tag = 'internal scratch']
  #allocation2 [shape = 'f32[8,22]{1,0:T(8,128)}', space=vmem, size = 0x1000, scoped, tag = 'scratch operand']
  %s0 = inlined_call_operand.vmem [shape: f32[2,4,22], index: 0, kind: input, shape index: {}]
  %s1 = inlined_call_operand.vmem [shape: f32[2,4,20], index: 1, kind: input, shape index: {}]
  %s2 = inlined_call_operand.vmem [shape: f32[3,1,10], index: 2, kind: input, shape index: {}]
  %s3 = inlined_call_operand.vmem [shape: f32[3,1,12], index: 3, kind: input, shape index: {}]
  %s4 = inlined_call_operand.vmem [shape: f32[2,4,10], index: 4, kind: input, shape index: {}]
  %s5 = inlined_call_operand.vmem [shape: f32[2,1,2], index: 5, kind: input, shape index: {}]
  %s6 = inlined_call_operand.vmem [shape: f32[3,3,8,4], index: 6, kind: input, shape index: {}]
  %s7 = inlined_call_operand.vmem [shape: f32[8,1], index: 7, kind: input, shape index: {}]
  %s8 = inlined_call_operand.vmem [shape: f32[3,3,4,8], index: 8, kind: input, shape index: {}]
  %s9 = inlined_call_operand.vmem [shape: f32[4,1], index: 9, kind: input, shape index: {}]
  %s10 = inlined_call_operand.hbm [shape: f32[2,4,10], index: 10, kind: output, shape index: {}]
  %s11 = sld [smem:[#allocation0]]
  $region73: #{_timesblock_fused.1} parent=0
    _
  %s13 = ssub.s32 1, %s11
  %s14 = scalar_select 0, %s13, %s11
  $region1: #{_timesblock_fused.1} parent=0
    #allocation3 [shape = 'u8[4096]{0}', space=vmem, size = 0x1000, scoped, tag = 'output window, operand 0']
    #allocation4 [shape = 's32[2]{0}', space=sflag, size = 0x8, scoped, tag = 'scoped memory for _timesblock_fused.1']
    %15 = vsyncpa [#allocation4], 0
    %s16 = scalar_lea.sflag [#allocation4], 1
    %17 = vsyncpa %s16, 0
    loop: start=0, step=1, limit=4
    $region2: #{_timesblock_fused.1} parent=1 // loop_pre_header
      _
    $region3: #{_timesblock_fused.1} parent=1 // loop_header
      %s19 = sphi 0, %s23
      %p20 = scmp.ge.s32.totalorder %s19, 4
      %s29 = sphi 0, %s31
      %s32 = sphi 0, %s29
      %s33 = sphi 0, %s32
      %s49 = sphi 0, %s33
      %s55 = sphi 0, %s57
      %s58 = sphi 0, %s55
      %s59 = sphi 0, %s58
      %s75 = sphi 0, %s59
      %s79 = sphi 0, %s79
      %s81 = sphi 0, %s79
      %s82 = sphi 0, %s81
      %s96 = sphi 0, %s82
      %s100 = sphi 0, %s100
      %s102 = sphi 0, %s100
      %s103 = sphi 0, %s102
      %s117 = sphi 0, %s103
      %s123 = sphi 0, %s125
      %s126 = sphi 0, %s123
      %s127 = sphi 0, %s126
      %s143 = sphi 0, %s127
      %s149 = sphi 0, %s151
      %s152 = sphi 0, %s149
      %s153 = sphi 0, %s152
      %s169 = sphi 0, %s153
      %s173 = sphi 0, %s173
      %s175 = sphi 0, %s173
      %s176 = sphi 0, %s175
      %s190 = sphi 0, %s176
      %s194 = sphi 0, %s194
      %s196 = sphi 0, %s194
      %s197 = sphi 0, %s196
      %s211 = sphi 0, %s197
      %s215 = sphi 0, %s215
      %s217 = sphi 0, %s215
      %s218 = sphi 0, %s217
      %s232 = sphi 0, %s218
      %s236 = sphi 0, %s236
      %s238 = sphi 0, %s236
      %s239 = sphi 0, %s238
      %s253 = sphi 0, %s239
      %s259 = sphi 0, %s261
      %s262 = sphi 0, %s259
      %s263 = sphi 0, %s262
      %s279 = sphi 0, %s263
    $region4: #{_timesblock_fused.1} parent=1 // loop_header_branch
      %22 = sbr.rel (%p20) target = $region8
    $region5: #{_timesblock_fused.1} parent=1 // loop_body
      %s24 = ssub.s32 %s19, 1
      %s25 = ssub.s32 %s19, 2
      %s26 = sadd.s32 %s19, 1
      %s27 = ssub.s32 %s19, %s26
      %p28 = scmp.eq.s32.totalorder %s27, 0
      %s30 = sadd.s32 %s29, 1
      %s31 = scalar_select %p28, %s29, %s30
      %p34 = pneg %p28
      %p35 = scmp.eq.s32.totalorder %s19, 1
      %p36 = por %p34, %p35
      %p37 = scmp.ne.s32.totalorder %s29, %s32
      %p38 = scmp.eq.s32.totalorder %s19, 0
      %p39 = por %p37, %p38
      %p40 = scmp.ne.s32.totalorder %s29, %s32
      %p41 = scmp.eq.s32.totalorder %s24, 1
      %p42 = por %p40, %p41
      %p43 = scmp.ne.s32.totalorder %s32, %s33
      %p44 = scmp.eq.s32.totalorder %s24, 0
      %p45 = por %p43, %p44
      %p46 = scmp.ne.s32.totalorder %s32, %s33
      %p47 = scmp.eq.s32.totalorder %s25, 1
      %p48 = por %p46, %p47
      %p50 = scmp.ne.s32.totalorder %s33, %s49
      %p51 = scmp.eq.s32.totalorder %s25, 0
      %p52 = por %p50, %p51
      %s53 = ssub.s32 %s19, %s26
      %p54 = scmp.eq.s32.totalorder %s53, 0
      %s56 = sadd.s32 %s55, 1
      %s57 = scalar_select %p54, %s55, %s56
      %p60 = pneg %p54
      %p61 = scmp.eq.s32.totalorder %s19, 1
      %p62 = por %p60, %p61
      %p63 = scmp.ne.s32.totalorder %s55, %s58
      %p64 = scmp.eq.s32.totalorder %s19, 0
      %p65 = por %p63, %p64
      %p66 = scmp.ne.s32.totalorder %s55, %s58
      %p67 = scmp.eq.s32.totalorder %s24, 1
      %p68 = por %p66, %p67
      %p69 = scmp.ne.s32.totalorder %s58, %s59
      %p70 = scmp.eq.s32.totalorder %s24, 0
      %p71 = por %p69, %p70
      %p72 = scmp.ne.s32.totalorder %s58, %s59
      %p73 = scmp.eq.s32.totalorder %s25, 1
      %p74 = por %p72, %p73
      %p76 = scmp.ne.s32.totalorder %s59, %s75
      %p77 = scmp.eq.s32.totalorder %s25, 0
      %p78 = por %p76, %p77
      %s80 = sadd.s32 %s79, 1
      %p83 = scmp.eq.s32.totalorder %s19, 1
      %p84 = scmp.ne.s32.totalorder %s79, %s81
      %p85 = scmp.eq.s32.totalorder %s19, 0
      %p86 = por %p84, %p85
      %p87 = scmp.ne.s32.totalorder %s79, %s81
      %p88 = scmp.eq.s32.totalorder %s24, 1
      %p89 = por %p87, %p88
      %p90 = scmp.ne.s32.totalorder %s81, %s82
      %p91 = scmp.eq.s32.totalorder %s24, 0
      %p92 = por %p90, %p91
      %p93 = scmp.ne.s32.totalorder %s81, %s82
      %p94 = scmp.eq.s32.totalorder %s25, 1
      %p95 = por %p93, %p94
      %p97 = scmp.ne.s32.totalorder %s82, %s96
      %p98 = scmp.eq.s32.totalorder %s25, 0
      %p99 = por %p97, %p98
      %s101 = sadd.s32 %s100, 1
      %p104 = scmp.eq.s32.totalorder %s19, 1
      %p105 = scmp.ne.s32.totalorder %s100, %s102
      %p106 = scmp.eq.s32.totalorder %s19, 0
      %p107 = por %p105, %p106
      %p108 = scmp.ne.s32.totalorder %s100, %s102
      %p109 = scmp.eq.s32.totalorder %s24, 1
      %p110 = por %p108, %p109
      %p111 = scmp.ne.s32.totalorder %s102, %s103
      %p112 = scmp.eq.s32.totalorder %s24, 0
      %p113 = por %p111, %p112
      %p114 = scmp.ne.s32.totalorder %s102, %s103
      %p115 = scmp.eq.s32.totalorder %s25, 1
      %p116 = por %p114, %p115
      %p118 = scmp.ne.s32.totalorder %s103, %s117
      %p119 = scmp.eq.s32.totalorder %s25, 0
      %p120 = por %p118, %p119
      %s121 = ssub.s32 %s19, %s26
      %p122 = scmp.eq.s32.totalorder %s121, 0
      %s124 = sadd.s32 %s123, 1
      %s125 = scalar_select %p122, %s123, %s124
      %p128 = pneg %p122
      %p129 = scmp.eq.s32.totalorder %s19, 1
      %p130 = por %p128, %p129
      %p131 = scmp.ne.s32.totalorder %s123, %s126
      %p132 = scmp.eq.s32.totalorder %s19, 0
      %p133 = por %p131, %p132
      %p134 = scmp.ne.s32.totalorder %s123, %s126
      %p135 = scmp.eq.s32.totalorder %s24, 1
      %p136 = por %p134, %p135
      %p137 = scmp.ne.s32.totalorder %s126, %s127
      %p138 = scmp.eq.s32.totalorder %s24, 0
      %p139 = por %p137, %p138
      %p140 = scmp.ne.s32.totalorder %s126, %s127
      %p141 = scmp.eq.s32.totalorder %s25, 1
      %p142 = por %p140, %p141
      %p144 = scmp.ne.s32.totalorder %s127, %s143
      %p145 = scmp.eq.s32.totalorder %s25, 0
      %p146 = por %p144, %p145
      %s147 = ssub.s32 %s19, %s26
      %p148 = scmp.eq.s32.totalorder %s147, 0
      %s150 = sadd.s32 %s149, 1
      %s151 = scalar_select %p148, %s149, %s150
      %p154 = pneg %p148
      %p155 = scmp.eq.s32.totalorder %s19, 1
      %p156 = por %p154, %p155
      %p157 = scmp.ne.s32.totalorder %s149, %s152
      %p158 = scmp.eq.s32.totalorder %s19, 0
      %p159 = por %p157, %p158
      %p160 = scmp.ne.s32.totalorder %s149, %s152
      %p161 = scmp.eq.s32.totalorder %s24, 1
      %p162 = por %p160, %p161
      %p163 = scmp.ne.s32.totalorder %s152, %s153
      %p164 = scmp.eq.s32.totalorder %s24, 0
      %p165 = por %p163, %p164
      %p166 = scmp.ne.s32.totalorder %s152, %s153
      %p167 = scmp.eq.s32.totalorder %s25, 1
      %p168 = por %p166, %p167
      %p170 = scmp.ne.s32.totalorder %s153, %s169
      %p171 = scmp.eq.s32.totalorder %s25, 0
      %p172 = por %p170, %p171
      %s174 = sadd.s32 %s173, 1
      %p177 = scmp.eq.s32.totalorder %s19, 1
      %p178 = scmp.ne.s32.totalorder %s173, %s175
      %p179 = scmp.eq.s32.totalorder %s19, 0
      %p180 = por %p178, %p179
      %p181 = scmp.ne.s32.totalorder %s173, %s175
      %p182 = scmp.eq.s32.totalorder %s24, 1
      %p183 = por %p181, %p182
      %p184 = scmp.ne.s32.totalorder %s175, %s176
      %p185 = scmp.eq.s32.totalorder %s24, 0
      %p186 = por %p184, %p185
      %p187 = scmp.ne.s32.totalorder %s175, %s176
      %p188 = scmp.eq.s32.totalorder %s25, 1
      %p189 = por %p187, %p188
      %p191 = scmp.ne.s32.totalorder %s176, %s190
      %p192 = scmp.eq.s32.totalorder %s25, 0
      %p193 = por %p191, %p192
      %s195 = sadd.s32 %s194, 1
      %p198 = scmp.eq.s32.totalorder %s19, 1
      %p199 = scmp.ne.s32.totalorder %s194, %s196
      %p200 = scmp.eq.s32.totalorder %s19, 0
      %p201 = por %p199, %p200
      %p202 = scmp.ne.s32.totalorder %s194, %s196
      %p203 = scmp.eq.s32.totalorder %s24, 1
      %p204 = por %p202, %p203
      %p205 = scmp.ne.s32.totalorder %s196, %s197
      %p206 = scmp.eq.s32.totalorder %s24, 0
      %p207 = por %p205, %p206
      %p208 = scmp.ne.s32.totalorder %s196, %s197
      %p209 = scmp.eq.s32.totalorder %s25, 1
      %p210 = por %p208, %p209
      %p212 = scmp.ne.s32.totalorder %s197, %s211
      %p213 = scmp.eq.s32.totalorder %s25, 0
      %p214 = por %p212, %p213
      %s216 = sadd.s32 %s215, 1
      %p219 = scmp.eq.s32.totalorder %s19, 1
      %p220 = scmp.ne.s32.totalorder %s215, %s217
      %p221 = scmp.eq.s32.totalorder %s19, 0
      %p222 = por %p220, %p221
      %p223 = scmp.ne.s32.totalorder %s215, %s217
      %p224 = scmp.eq.s32.totalorder %s24, 1
      %p225 = por %p223, %p224
      %p226 = scmp.ne.s32.totalorder %s217, %s218
      %p227 = scmp.eq.s32.totalorder %s24, 0
      %p228 = por %p226, %p227
      %p229 = scmp.ne.s32.totalorder %s217, %s218
      %p230 = scmp.eq.s32.totalorder %s25, 1
      %p231 = por %p229, %p230
      %p233 = scmp.ne.s32.totalorder %s218, %s232
      %p234 = scmp.eq.s32.totalorder %s25, 0
      %p235 = por %p233, %p234
      %s237 = sadd.s32 %s236, 1
      %p240 = scmp.eq.s32.totalorder %s19, 1
      %p241 = scmp.ne.s32.totalorder %s236, %s238
      %p242 = scmp.eq.s32.totalorder %s19, 0
      %p243 = por %p241, %p242
      %p244 = scmp.ne.s32.totalorder %s236, %s238
      %p245 = scmp.eq.s32.totalorder %s24, 1
      %p246 = por %p244, %p245
      %p247 = scmp.ne.s32.totalorder %s238, %s239
      %p248 = scmp.eq.s32.totalorder %s24, 0
      %p249 = por %p247, %p248
      %p250 = scmp.ne.s32.totalorder %s238, %s239
      %p251 = scmp.eq.s32.totalorder %s25, 1
      %p252 = por %p250, %p251
      %p254 = scmp.ne.s32.totalorder %s239, %s253
      %p255 = scmp.eq.s32.totalorder %s25, 0
      %p256 = por %p254, %p255
      %s257 = ssub.s32 %s19, %s26
      %p258 = scmp.eq.s32.totalorder %s257, 0
      %s260 = sadd.s32 %s259, 1
      %s261 = scalar_select %p258, %s259, %s260
      %p264 = pneg %p258
      %p265 = scmp.eq.s32.totalorder %s19, 1
      %p266 = por %p264, %p265
      %p267 = scmp.ne.s32.totalorder %s259, %s262
      %p268 = scmp.eq.s32.totalorder %s19, 0
      %p269 = por %p267, %p268
      %p270 = scmp.ne.s32.totalorder %s259, %s262
      %p271 = scmp.eq.s32.totalorder %s24, 1
      %p272 = por %p270, %p271
      %p273 = scmp.ne.s32.totalorder %s262, %s263
      %p274 = scmp.eq.s32.totalorder %s24, 0
      %p275 = por %p273, %p274
      %p276 = scmp.ne.s32.totalorder %s262, %s263
      %p277 = scmp.eq.s32.totalorder %s25, 1
      %p278 = por %p276, %p277
      %p280 = scmp.ne.s32.totalorder %s263, %s279
      %p281 = scmp.eq.s32.totalorder %s25, 0
      %p282 = por %p280, %p281
      %p283 = scmp.le.s32.totalorder 1, %s19
      %p284 = scmp.lt.s32.totalorder %s19, 3
      %p285 = pnand %p283, %p284
      %p286 = pneg %p285
      // Predicated region
      $region9: #{_timesblock_fused.1} parent=5 // pred_check
        _
      $region10: #{_timesblock_fused.1} parent=5 // pred_check_branch
        %288 = sbr.rel (%p285) target = $region12
      $region11: #{_timesblock_fused.1} parent=5 // pred_region
        %s289 = ssub.s32 %s19, 1
        // Predicated region
        $region13: #{_timesblock_fused.1} parent=11 // pred_check
          %p290 = pneg %p92
        $region14: #{_timesblock_fused.1} parent=11 // pred_check_branch
          %292 = sbr.rel (%p290) target = $region16
        $region15: #{_timesblock_fused.1} parent=11 // pred_region
          _
        $region16: #{_timesblock_fused.1} parent=11 // pred_fallthru
          _
        // Predicated region
        $region17: #{_timesblock_fused.1} parent=11 // pred_check
          %p293 = pneg %p113
        $region18: #{_timesblock_fused.1} parent=11 // pred_check_branch
          %295 = sbr.rel (%p293) target = $region20
        $region19: #{_timesblock_fused.1} parent=11 // pred_region
          _
        $region20: #{_timesblock_fused.1} parent=11 // pred_fallthru
          _
        // Predicated region
        $region21: #{_timesblock_fused.1} parent=11 // pred_check
          %p296 = pneg %p186
        $region22: #{_timesblock_fused.1} parent=11 // pred_check_branch
          %298 = sbr.rel (%p296) target = $region24
        $region23: #{_timesblock_fused.1} parent=11 // pred_region
          _
        $region24: #{_timesblock_fused.1} parent=11 // pred_fallthru
          _
        // Predicated region
        $region25: #{_timesblock_fused.1} parent=11 // pred_check
          %p299 = pneg %p207
        $region26: #{_timesblock_fused.1} parent=11 // pred_check_branch
          %301 = sbr.rel (%p299) target = $region28
        $region27: #{_timesblock_fused.1} parent=11 // pred_region
          _
        $region28: #{_timesblock_fused.1} parent=11 // pred_fallthru
          _
        // Predicated region
        $region29: #{_timesblock_fused.1} parent=11 // pred_check
          %p302 = pneg %p228
        $region30: #{_timesblock_fused.1} parent=11 // pred_check_branch
          %304 = sbr.rel (%p302) target = $region32
        $region31: #{_timesblock_fused.1} parent=11 // pred_region
          _
        $region32: #{_timesblock_fused.1} parent=11 // pred_fallthru
          _
        // Predicated region
        $region33: #{_timesblock_fused.1} parent=11 // pred_check
          %p305 = pneg %p249
        $region34: #{_timesblock_fused.1} parent=11 // pred_check_branch
          %307 = sbr.rel (%p305) target = $region36
        $region35: #{_timesblock_fused.1} parent=11 // pred_region
          _
        $region36: #{_timesblock_fused.1} parent=11 // pred_fallthru
          _
      $region12: #{_timesblock_fused.1} parent=5 // pred_fallthru
        _
      %p308 = scmp.lt.s32.totalorder %s19, 2
      // Predicated region
      $region37: #{_timesblock_fused.1} parent=5 // pred_check
        %p309 = pneg %p308
      $region38: #{_timesblock_fused.1} parent=5 // pred_check_branch
        %311 = sbr.rel (%p309) target = $region40
      $region39: #{_timesblock_fused.1} parent=5 // pred_region
        // Predicated region
        $region41: #{_timesblock_fused.1} parent=39 // pred_check
          %p312 = pneg %p39
        $region42: #{_timesblock_fused.1} parent=39 // pred_check_branch
          %314 = sbr.rel (%p312) target = $region44
        $region43: #{_timesblock_fused.1} parent=39 // pred_region
          %p315 = scmp.lt.s32.totalorder %s19, 1
          %s316 = scalar_select %p315, %s19, 1
          %s317 = smul.addr %s316, 4
          %s318 = scalar_lea.vmem %s0, %s317
        $region44: #{_timesblock_fused.1} parent=39 // pred_fallthru
          _
        // Predicated region
        $region45: #{_timesblock_fused.1} parent=39 // pred_check
          %p319 = pneg %p65
        $region46: #{_timesblock_fused.1} parent=39 // pred_check_branch
          %321 = sbr.rel (%p319) target = $region48
        $region47: #{_timesblock_fused.1} parent=39 // pred_region
          %p322 = scmp.lt.s32.totalorder %s19, 1
          %s323 = scalar_select %p322, %s19, 1
          %s324 = smul.addr %s323, 4
          %s325 = scalar_lea.vmem %s1, %s324
        $region48: #{_timesblock_fused.1} parent=39 // pred_fallthru
          _
        // Predicated region
        $region49: #{_timesblock_fused.1} parent=39 // pred_check
          %p326 = pneg %p133
        $region50: #{_timesblock_fused.1} parent=39 // pred_check_branch
          %328 = sbr.rel (%p326) target = $region52
        $region51: #{_timesblock_fused.1} parent=39 // pred_region
          %p329 = scmp.lt.s32.totalorder %s19, 1
          %s330 = scalar_select %p329, %s19, 1
          %s331 = smul.addr %s330, 4
          %s332 = scalar_lea.vmem %s4, %s331
        $region52: #{_timesblock_fused.1} parent=39 // pred_fallthru
          _
        // Predicated region
        $region53: #{_timesblock_fused.1} parent=39 // pred_check
          %p333 = pneg %p159
        $region54: #{_timesblock_fused.1} parent=39 // pred_check_branch
          %335 = sbr.rel (%p333) target = $region56
        $region55: #{_timesblock_fused.1} parent=39 // pred_region
          %p336 = scmp.lt.s32.totalorder %s19, 1
          %s337 = scalar_select %p336, %s19, 1
          %s338 = scalar_lea.vmem %s5, %s337
        $region56: #{_timesblock_fused.1} parent=39 // pred_fallthru
          _
      $region40: #{_timesblock_fused.1} parent=5 // pred_fallthru
        _
      %p339 = scmp.le.s32.totalorder 1, %s19
      %p340 = scmp.lt.s32.totalorder %s19, 3
      %p341 = pnand %p339, %p340
      %p342 = pneg %p341
      // Predicated region
      $region57: #{_timesblock_fused.1} parent=5 // pred_check
        _
      $region58: #{_timesblock_fused.1} parent=5 // pred_check_branch
        %344 = sbr.rel (%p341) target = $region60
      $region59: #{_timesblock_fused.1} parent=5 // pred_region
        %s345 = ssub.s32 %s19, 1
        %p346 = scmp.lt.s32.totalorder %s24, 1
        %s347 = scalar_select %p346, %s24, 1
        %s348 = smul.addr %s347, 4
        %s349 = scalar_lea.vmem %s0, %s348
        %p350 = pneg %p45
        %p351 = pneg %p42
        %p352 = scmp.lt.s32.totalorder %s24, 1
        %s353 = scalar_select %p352, %s24, 1
        %s354 = smul.addr %s353, 4
        %s355 = scalar_lea.vmem %s1, %s354
        %p356 = pneg %p71
        %p357 = pneg %p68
        %p358 = pneg %p92
        %p359 = pneg %p89
        %p360 = pneg %p113
        %p361 = pneg %p110
        %p362 = scmp.lt.s32.totalorder %s24, 1
        %s363 = scalar_select %p362, %s24, 1
        %s364 = smul.addr %s363, 4
        %s365 = scalar_lea.vmem %s4, %s364
        %p366 = pneg %p139
        %p367 = pneg %p136
        %p368 = scmp.lt.s32.totalorder %s24, 1
        %s369 = scalar_select %p368, %s24, 1
        %s370 = scalar_lea.vmem %s5, %s369
        %p371 = pneg %p165
        %p372 = pneg %p162
        %p373 = pneg %p186
        %p374 = pneg %p183
        %p375 = pneg %p207
        %p376 = pneg %p204
        %p377 = pneg %p228
        %p378 = pneg %p225
        %p379 = pneg %p249
        %p380 = pneg %p246
        %p381 = pneg %p275
        %p382 = pneg %p272
        %s383 = sand.u32 %s262, 1
        %s384 = scalar_lea.sflag [#allocation4], %s383
        %s385 = sand.u32 %s262, 1
        %s386 = smul.addr %s385, 4
        %s387 = scalar_lea.vmem [#allocation3], %s386
        %p388 = scmp.lt.s32.totalorder %s24, 1
        %s389 = scalar_select %p388, %s24, 1
        %s390 = smul.addr %s389, 4
        %s391 = scalar_lea.vmem %s0, %s390
        %p392 = scmp.lt.s32.totalorder %s24, 1
        %s393 = scalar_select %p392, %s24, 1
        %s394 = smul.addr %s393, 4
        %s395 = scalar_lea.vmem %s1, %s394
        %p396 = scmp.lt.s32.totalorder %s24, 1
        %s397 = scalar_select %p396, %s24, 1
        %s398 = smul.addr %s397, 4
        %s399 = scalar_lea.vmem %s4, %s398
        %p400 = scmp.lt.s32.totalorder %s24, 1
        %s401 = scalar_select %p400, %s24, 1
        %s402 = scalar_lea.vmem %s5, %s401
        %v403 = vld [vmem:[%s399] sm:$0xf]
        %v404 = vld [vmem:[%s391] sm:$0xf]
        %v405 = vld [vmem:[%s6] sm:$0xff]
        %s406 = scalar_lea.vmem %s6, 24
        %v407 = vld [vmem:[%s406] sm:$0xff]
        %409 = vrot.lane.b32.xlu0 %v404, 123
        %v410 = vpop.permute.xlu0 %409
        %vm411 = vcmask 31744
        %v413 = vsel %vm411, %v407, 0
        %vm415 = vcmask 1043456
        %v416 = vsel %vm415, %v410, 0
        %418 = vmatprep.subr.mxu0 0.0
        %419 = vmatpush1.msra.mxu0 0.0
        %420 = vmatprep.subr.mxu0 0.0
        %421 = vmatpush1.msra.mxu0 0.0
        %422 = vmatprep.subr.mxu0 0.0
        %423 = vmatpush1.msra.mxu0 0.0
        %424 = vmatprep.subr.mxu0 0.0
        %425 = vmatpush1.msra.mxu0 0.0
        %426 = vmatprep.subr.mxu0 0.0
        %427 = vmatpush1.msra.mxu0 0.0
        %428 = vmatprep.subr.mxu0 0.0
        %429 = vmatpush1.msra.mxu0 0.0
        %430 = vmatprep.subr.mxu0 0.0
        %431 = vmatpush1.msra.mxu0 0.0
        %432 = vmatprep.subr.mxu0 0.0
        %433 = vmatpush1.msra.mxu0 0.0
        %434 = vmatprep.subr.mxu0 0.0
        %435 = vmatpush1.msra.mxu0 0.0
        %436 = vmatprep.subr.mxu0 0.0
        %437 = vmatpush1.msra.mxu0 0.0
        %438 = vmatprep.subr.mxu0 0.0
        %439 = vmatpush1.msra.mxu0 0.0
        %440 = vmatprep.subr.mxu0 0.0
        %441 = vmatpush1.msra.mxu0 0.0
        %442 = vmatprep.subr.mxu0 0.0
        %443 = vmatpush1.msra.mxu0 0.0
        %444 = vmatprep.subr.mxu0 0.0
        %445 = vmatpush1.msra.mxu0 0.0
        %446 = vmatprep.subr.mxu0 0.0
        %447 = vmatpush1.msra.mxu0 0.0
        %448 = vmatprep.subr.mxu0 0.0
        %449 = vmatpush1.msra.mxu0 %v416
        %450 = vmatprep.subr.mxu0 0.0
        %451 = vmatpush2.msra.mxu0 0.0
        %452 = vmatprep.subr.mxu0 0.0
        %453 = vmatpush2.msra.mxu0 0.0
        %454 = vmatprep.subr.mxu0 0.0
        %455 = vmatpush2.msra.mxu0 0.0
        %456 = vmatprep.subr.mxu0 0.0
        %457 = vmatpush2.msra.mxu0 0.0
        %458 = vmatprep.subr.mxu0 0.0
        %459 = vmatpush2.msra.mxu0 0.0
        %460 = vmatprep.subr.mxu0 0.0
        %461 = vmatpush2.msra.mxu0 0.0
        %462 = vmatprep.subr.mxu0 0.0
        %463 = vmatpush2.msra.mxu0 0.0
        %464 = vmatprep.subr.mxu0 0.0
        %465 = vmatpush2.msra.mxu0 0.0
        %466 = vmatprep.subr.mxu0 0.0
        %467 = vmatpush2.msra.mxu0 0.0
        %468 = vmatprep.subr.mxu0 0.0
        %469 = vmatpush2.msra.mxu0 0.0
        %470 = vmatprep.subr.mxu0 0.0
        %471 = vmatpush2.msra.mxu0 0.0
        %472 = vmatprep.subr.mxu0 0.0
        %473 = vmatpush2.msra.mxu0 0.0
        %474 = vmatprep.subr.mxu0 0.0
        %475 = vmatpush2.msra.mxu0 0.0
        %476 = vmatprep.subr.mxu0 0.0
        %477 = vmatpush2.msra.mxu0 0.0
        %478 = vmatprep.subr.mxu0 0.0
        %479 = vmatpush2.msra.mxu0 0.0
        %480 = vmatprep.subr.mxu0 0.0
        %481 = vmatpush2.msra.mxu0 0.0
        %482 = vmatprep.mubr.f32.mxu0 0.0
        %483 = vmatmul.mubr.f32.gmra.mxu0 %v413
        %v484 = vpop.f32.mrf.mxu0
        %v485 = vadd.f32 0.0, %v484
        %v486 = vpop.f32.mrf.mxu0
        %487 = vdwg.mxu0
        %v489 = vsel %vm411, %v405, 0
        %v491 = vsel %vm415, %v404, 0
        %493 = vmatprep.subr.mxu0 0.0
        %494 = vmatpush1.msra.mxu0 0.0
        %495 = vmatprep.subr.mxu0 0.0
        %496 = vmatpush1.msra.mxu0 0.0
        %497 = vmatprep.subr.mxu0 0.0
        %498 = vmatpush1.msra.mxu0 0.0
        %499 = vmatprep.subr.mxu0 0.0
        %500 = vmatpush1.msra.mxu0 0.0
        %501 = vmatprep.subr.mxu0 0.0
        %502 = vmatpush1.msra.mxu0 0.0
        %503 = vmatprep.subr.mxu0 0.0
        %504 = vmatpush1.msra.mxu0 0.0
        %505 = vmatprep.subr.mxu0 0.0
        %506 = vmatpush1.msra.mxu0 0.0
        %507 = vmatprep.subr.mxu0 0.0
        %508 = vmatpush1.msra.mxu0 0.0
        %509 = vmatprep.subr.mxu0 0.0
        %510 = vmatpush1.msra.mxu0 0.0
        %511 = vmatprep.subr.mxu0 0.0
        %512 = vmatpush1.msra.mxu0 0.0
        %513 = vmatprep.subr.mxu0 0.0
        %514 = vmatpush1.msra.mxu0 0.0
        %515 = vmatprep.subr.mxu0 0.0
        %516 = vmatpush1.msra.mxu0 0.0
        %517 = vmatprep.subr.mxu0 0.0
        %518 = vmatpush1.msra.mxu0 0.0
        %519 = vmatprep.subr.mxu0 0.0
        %520 = vmatpush1.msra.mxu0 0.0
        %521 = vmatprep.subr.mxu0 0.0
        %522 = vmatpush1.msra.mxu0 0.0
        %523 = vmatprep.subr.mxu0 0.0
        %524 = vmatpush1.msra.mxu0 %v491
        %525 = vmatprep.subr.mxu0 0.0
        %526 = vmatpush2.msra.mxu0 0.0
        %527 = vmatprep.subr.mxu0 0.0
        %528 = vmatpush2.msra.mxu0 0.0
        %529 = vmatprep.subr.mxu0 0.0
        %530 = vmatpush2.msra.mxu0 0.0
        %531 = vmatprep.subr.mxu0 0.0
        %532 = vmatpush2.msra.mxu0 0.0
        %533 = vmatprep.subr.mxu0 0.0
        %534 = vmatpush2.msra.mxu0 0.0
        %535 = vmatprep.subr.mxu0 0.0
        %536 = vmatpush2.msra.mxu0 0.0
        %537 = vmatprep.subr.mxu0 0.0
        %538 = vmatpush2.msra.mxu0 0.0
        %539 = vmatprep.subr.mxu0 0.0
        %540 = vmatpush2.msra.mxu0 0.0
        %541 = vmatprep.subr.mxu0 0.0
        %542 = vmatpush2.msra.mxu0 0.0
        %543 = vmatprep.subr.mxu0 0.0
        %544 = vmatpush2.msra.mxu0 0.0
        %545 = vmatprep.subr.mxu0 0.0
        %546 = vmatpush2.msra.mxu0 0.0
        %547 = vmatprep.subr.mxu0 0.0
        %548 = vmatpush2.msra.mxu0 0.0
        %549 = vmatprep.subr.mxu0 0.0
        %550 = vmatpush2.msra.mxu0 0.0
        %551 = vmatprep.subr.mxu0 0.0
        %552 = vmatpush2.msra.mxu0 0.0
        %553 = vmatprep.subr.mxu0 0.0
        %554 = vmatpush2.msra.mxu0 0.0
        %555 = vmatprep.subr.mxu0 0.0
        %556 = vmatpush2.msra.mxu0 0.0
        %557 = vmatprep.mubr.f32.mxu0 0.0
        %558 = vmatmul.mubr.f32.gmra.mxu0 %v489
        %v559 = vpop.f32.mrf.mxu0
        %v560 = vadd.f32 %v485, %v559
        %v561 = vpop.f32.mrf.mxu0
        %562 = vdwg.mxu0
        %s563 = scalar_lea.vmem %s6, 48
        %v564 = vld [vmem:[%s563] sm:$0xff]
        %565 = vrot.lane.b32.xlu0 %v404, 118
        %v566 = vpop.permute.xlu0 %565
        %v568 = vsel %vm411, %v564, 0
        %v570 = vsel %vm415, %v566, 0
        %572 = vmatprep.subr.mxu0 0.0
        %573 = vmatpush1.msra.mxu0 0.0
        %574 = vmatprep.subr.mxu0 0.0
        %575 = vmatpush1.msra.mxu0 0.0
        %576 = vmatprep.subr.mxu0 0.0
        %577 = vmatpush1.msra.mxu0 0.0
        %578 = vmatprep.subr.mxu0 0.0
        %579 = vmatpush1.msra.mxu0 0.0
        %580 = vmatprep.subr.mxu0 0.0
        %581 = vmatpush1.msra.mxu0 0.0
        %582 = vmatprep.subr.mxu0 0.0
        %583 = vmatpush1.msra.mxu0 0.0
        %584 = vmatprep.subr.mxu0 0.0
        %585 = vmatpush1.msra.mxu0 0.0
        %586 = vmatprep.subr.mxu0 0.0
        %587 = vmatpush1.msra.mxu0 0.0
        %588 = vmatprep.subr.mxu0 0.0
        %589 = vmatpush1.msra.mxu0 0.0
        %590 = vmatprep.subr.mxu0 0.0
        %591 = vmatpush1.msra.mxu0 0.0
        %592 = vmatprep.subr.mxu0 0.0
        %593 = vmatpush1.msra.mxu0 0.0
        %594 = vmatprep.subr.mxu0 0.0
        %595 = vmatpush1.msra.mxu0 0.0
        %596 = vmatprep.subr.mxu0 0.0
        %597 = vmatpush1.msra.mxu0 0.0
        %598 = vmatprep.subr.mxu0 0.0
        %599 = vmatpush1.msra.mxu0 0.0
        %600 = vmatprep.subr.mxu0 0.0
        %601 = vmatpush1.msra.mxu0 0.0
        %602 = vmatprep.subr.mxu0 0.0
        %603 = vmatpush1.msra.mxu0 %v570
        %604 = vmatprep.subr.mxu0 0.0
        %605 = vmatpush2.msra.mxu0 0.0
        %606 = vmatprep.subr.mxu0 0.0
        %607 = vmatpush2.msra.mxu0 0.0
        %608 = vmatprep.subr.mxu0 0.0
        %609 = vmatpush2.msra.mxu0 0.0
        %610 = vmatprep.subr.mxu0 0.0
        %611 = vmatpush2.msra.mxu0 0.0
        %612 = vmatprep.subr.mxu0 0.0
        %613 = vmatpush2.msra.mxu0 0.0
        %614 = vmatprep.subr.mxu0 0.0
        %615 = vmatpush2.msra.mxu0 0.0
        %616 = vmatprep.subr.mxu0 0.0
        %617 = vmatpush2.msra.mxu0 0.0
        %618 = vmatprep.subr.mxu0 0.0
        %619 = vmatpush2.msra.mxu0 0.0
        %620 = vmatprep.subr.mxu0 0.0
        %621 = vmatpush2.msra.mxu0 0.0
        %622 = vmatprep.subr.mxu0 0.0
        %623 = vmatpush2.msra.mxu0 0.0
        %624 = vmatprep.subr.mxu0 0.0
        %625 = vmatpush2.msra.mxu0 0.0
        %626 = vmatprep.subr.mxu0 0.0
        %627 = vmatpush2.msra.mxu0 0.0
        %628 = vmatprep.subr.mxu0 0.0
        %629 = vmatpush2.msra.mxu0 0.0
        %630 = vmatprep.subr.mxu0 0.0
        %631 = vmatpush2.msra.mxu0 0.0
        %632 = vmatprep.subr.mxu0 0.0
        %633 = vmatpush2.msra.mxu0 0.0
        %634 = vmatprep.subr.mxu0 0.0
        %635 = vmatpush2.msra.mxu0 0.0
        %636 = vmatprep.mubr.f32.mxu0 0.0
        %637 = vmatmul.mubr.f32.gmra.mxu0 %v568
        %v638 = vpop.f32.mrf.mxu0
        %v639 = vadd.f32 0.0, %v638
        %v640 = vpop.f32.mrf.mxu0
        %641 = vdwg.mxu0
        %v642 = vadd.f32 %v560, %v639
        %v643 = vld [vmem:[%s2] sm:$0x1]
        %v645 = vlaneseq
        %v646 = vshrl.u32 %v645, 7
        %v647 = vsub.s32 0, %v646
        %v648 = vrot.slane %v643, %v647
        %v650 = vmul.f32 %v642, %v648
        %s651 = scalar_lea.vmem %s6, 8
        %v652 = vld [vmem:[%s651] sm:$0xff]
        %s653 = scalar_lea.vmem %s6, 32
        %v654 = vld [vmem:[%s653] sm:$0xff]
        %655 = vrot.lane.b32.xlu0 %v404, 122
        %v656 = vpop.permute.xlu0 %655
        %v658 = vsel %vm411, %v654, 0
        %v660 = vsel %vm415, %v656, 0
        %662 = vmatprep.subr.mxu0 0.0
        %663 = vmatpush1.msra.mxu0 0.0
        %664 = vmatprep.subr.mxu0 0.0
        %665 = vmatpush1.msra.mxu0 0.0
        %666 = vmatprep.subr.mxu0 0.0
        %667 = vmatpush1.msra.mxu0 0.0
        %668 = vmatprep.subr.mxu0 0.0
        %669 = vmatpush1.msra.mxu0 0.0
        %670 = vmatprep.subr.mxu0 0.0
        %671 = vmatpush1.msra.mxu0 0.0
        %672 = vmatprep.subr.mxu0 0.0
        %673 = vmatpush1.msra.mxu0 0.0
        %674 = vmatprep.subr.mxu0 0.0
        %675 = vmatpush1.msra.mxu0 0.0
        %676 = vmatprep.subr.mxu0 0.0
        %677 = vmatpush1.msra.mxu0 0.0
        %678 = vmatprep.subr.mxu0 0.0
        %679 = vmatpush1.msra.mxu0 0.0
        %680 = vmatprep.subr.mxu0 0.0
        %681 = vmatpush1.msra.mxu0 0.0
        %682 = vmatprep.subr.mxu0 0.0
        %683 = vmatpush1.msra.mxu0 0.0
        %684 = vmatprep.subr.mxu0 0.0
        %685 = vmatpush1.msra.mxu0 0.0
        %686 = vmatprep.subr.mxu0 0.0
        %687 = vmatpush1.msra.mxu0 0.0
        %688 = vmatprep.subr.mxu0 0.0
        %689 = vmatpush1.msra.mxu0 0.0
        %690 = vmatprep.subr.mxu0 0.0
        %691 = vmatpush1.msra.mxu0 0.0
        %692 = vmatprep.subr.mxu0 0.0
        %693 = vmatpush1.msra.mxu0 %v660
        %694 = vmatprep.subr.mxu0 0.0
        %695 = vmatpush2.msra.mxu0 0.0
        %696 = vmatprep.subr.mxu0 0.0
        %697 = vmatpush2.msra.mxu0 0.0
        %698 = vmatprep.subr.mxu0 0.0
        %699 = vmatpush2.msra.mxu0 0.0
        %700 = vmatprep.subr.mxu0 0.0
        %701 = vmatpush2.msra.mxu0 0.0
        %702 = vmatprep.subr.mxu0 0.0
        %703 = vmatpush2.msra.mxu0 0.0
        %704 = vmatprep.subr.mxu0 0.0
        %705 = vmatpush2.msra.mxu0 0.0
        %706 = vmatprep.subr.mxu0 0.0
        %707 = vmatpush2.msra.mxu0 0.0
        %708 = vmatprep.subr.mxu0 0.0
        %709 = vmatpush2.msra.mxu0 0.0
        %710 = vmatprep.subr.mxu0 0.0
        %711 = vmatpush2.msra.mxu0 0.0
        %712 = vmatprep.subr.mxu0 0.0
        %713 = vmatpush2.msra.mxu0 0.0
        %714 = vmatprep.subr.mxu0 0.0
        %715 = vmatpush2.msra.mxu0 0.0
        %716 = vmatprep.subr.mxu0 0.0
        %717 = vmatpush2.msra.mxu0 0.0
        %718 = vmatprep.subr.mxu0 0.0
        %719 = vmatpush2.msra.mxu0 0.0
        %720 = vmatprep.subr.mxu0 0.0
        %721 = vmatpush2.msra.mxu0 0.0
        %722 = vmatprep.subr.mxu0 0.0
        %723 = vmatpush2.msra.mxu0 0.0
        %724 = vmatprep.subr.mxu0 0.0
        %725 = vmatpush2.msra.mxu0 0.0
        %726 = vmatprep.mubr.f32.mxu0 0.0
        %727 = vmatmul.mubr.f32.gmra.mxu0 %v658
        %v728 = vpop.f32.mrf.mxu0
        %v729 = vadd.f32 0.0, %v728
        %v730 = vpop.f32.mrf.mxu0
        %731 = vdwg.mxu0
        %732 = vrot.lane.b32.xlu0 %v404, 127
        %v733 = vpop.permute.xlu0 %732
        %v735 = vsel %vm411, %v652, 0
        %v737 = vsel %vm415, %v733, 0
        %739 = vmatprep.subr.mxu0 0.0
        %740 = vmatpush1.msra.mxu0 0.0
        %741 = vmatprep.subr.mxu0 0.0
        %742 = vmatpush1.msra.mxu0 0.0
        %743 = vmatprep.subr.mxu0 0.0
        %744 = vmatpush1.msra.mxu0 0.0
        %745 = vmatprep.subr.mxu0 0.0
        %746 = vmatpush1.msra.mxu0 0.0
        %747 = vmatprep.subr.mxu0 0.0
        %748 = vmatpush1.msra.mxu0 0.0
        %749 = vmatprep.subr.mxu0 0.0
        %750 = vmatpush1.msra.mxu0 0.0
        %751 = vmatprep.subr.mxu0 0.0
        %752 = vmatpush1.msra.mxu0 0.0
        %753 = vmatprep.subr.mxu0 0.0
        %754 = vmatpush1.msra.mxu0 0.0
        %755 = vmatprep.subr.mxu0 0.0
        %756 = vmatpush1.msra.mxu0 0.0
        %757 = vmatprep.subr.mxu0 0.0
        %758 = vmatpush1.msra.mxu0 0.0
        %759 = vmatprep.subr.mxu0 0.0
        %760 = vmatpush1.msra.mxu0 0.0
        %761 = vmatprep.subr.mxu0 0.0
        %762 = vmatpush1.msra.mxu0 0.0
        %763 = vmatprep.subr.mxu0 0.0
        %764 = vmatpush1.msra.mxu0 0.0
        %765 = vmatprep.subr.mxu0 0.0
        %766 = vmatpush1.msra.mxu0 0.0
        %767 = vmatprep.subr.mxu0 0.0
        %768 = vmatpush1.msra.mxu0 0.0
        %769 = vmatprep.subr.mxu0 0.0
        %770 = vmatpush1.msra.mxu0 %v737
        %771 = vmatprep.subr.mxu0 0.0
        %772 = vmatpush2.msra.mxu0 0.0
        %773 = vmatprep.subr.mxu0 0.0
        %774 = vmatpush2.msra.mxu0 0.0
        %775 = vmatprep.subr.mxu0 0.0
        %776 = vmatpush2.msra.mxu0 0.0
        %777 = vmatprep.subr.mxu0 0.0
        %778 = vmatpush2.msra.mxu0 0.0
        %779 = vmatprep.subr.mxu0 0.0
        %780 = vmatpush2.msra.mxu0 0.0
        %781 = vmatprep.subr.mxu0 0.0
        %782 = vmatpush2.msra.mxu0 0.0
        %783 = vmatprep.subr.mxu0 0.0
        %784 = vmatpush2.msra.mxu0 0.0
        %785 = vmatprep.subr.mxu0 0.0
        %786 = vmatpush2.msra.mxu0 0.0
        %787 = vmatprep.subr.mxu0 0.0
        %788 = vmatpush2.msra.mxu0 0.0
        %789 = vmatprep.subr.mxu0 0.0
        %790 = vmatpush2.msra.mxu0 0.0
        %791 = vmatprep.subr.mxu0 0.0
        %792 = vmatpush2.msra.mxu0 0.0
        %793 = vmatprep.subr.mxu0 0.0
        %794 = vmatpush2.msra.mxu0 0.0
        %795 = vmatprep.subr.mxu0 0.0
        %796 = vmatpush2.msra.mxu0 0.0
        %797 = vmatprep.subr.mxu0 0.0
        %798 = vmatpush2.msra.mxu0 0.0
        %799 = vmatprep.subr.mxu0 0.0
        %800 = vmatpush2.msra.mxu0 0.0
        %801 = vmatprep.subr.mxu0 0.0
        %802 = vmatpush2.msra.mxu0 0.0
        %803 = vmatprep.mubr.f32.mxu0 0.0
        %804 = vmatmul.mubr.f32.gmra.mxu0 %v735
        %v805 = vpop.f32.mrf.mxu0
        %v806 = vadd.f32 %v729, %v805
        %v807 = vpop.f32.mrf.mxu0
        %808 = vdwg.mxu0
        %s809 = scalar_lea.vmem %s6, 56
        %v810 = vld [vmem:[%s809] sm:$0xff]
        %811 = vrot.lane.b32.xlu0 %v404, 117
        %v812 = vpop.permute.xlu0 %811
        %v814 = vsel %vm411, %v810, 0
        %v816 = vsel %vm415, %v812, 0
        %818 = vmatprep.subr.mxu0 0.0
        %819 = vmatpush1.msra.mxu0 0.0
        %820 = vmatprep.subr.mxu0 0.0
        %821 = vmatpush1.msra.mxu0 0.0
        %822 = vmatprep.subr.mxu0 0.0
        %823 = vmatpush1.msra.mxu0 0.0
        %824 = vmatprep.subr.mxu0 0.0
        %825 = vmatpush1.msra.mxu0 0.0
        %826 = vmatprep.subr.mxu0 0.0
        %827 = vmatpush1.msra.mxu0 0.0
        %828 = vmatprep.subr.mxu0 0.0
        %829 = vmatpush1.msra.mxu0 0.0
        %830 = vmatprep.subr.mxu0 0.0
        %831 = vmatpush1.msra.mxu0 0.0
        %832 = vmatprep.subr.mxu0 0.0
        %833 = vmatpush1.msra.mxu0 0.0
        %834 = vmatprep.subr.mxu0 0.0
        %835 = vmatpush1.msra.mxu0 0.0
        %836 = vmatprep.subr.mxu0 0.0
        %837 = vmatpush1.msra.mxu0 0.0
        %838 = vmatprep.subr.mxu0 0.0
        %839 = vmatpush1.msra.mxu0 0.0
        %840 = vmatprep.subr.mxu0 0.0
        %841 = vmatpush1.msra.mxu0 0.0
        %842 = vmatprep.subr.mxu0 0.0
        %843 = vmatpush1.msra.mxu0 0.0
        %844 = vmatprep.subr.mxu0 0.0
        %845 = vmatpush1.msra.mxu0 0.0
        %846 = vmatprep.subr.mxu0 0.0
        %847 = vmatpush1.msra.mxu0 0.0
        %848 = vmatprep.subr.mxu0 0.0
        %849 = vmatpush1.msra.mxu0 %v816
        %850 = vmatprep.subr.mxu0 0.0
        %851 = vmatpush2.msra.mxu0 0.0
        %852 = vmatprep.subr.mxu0 0.0
        %853 = vmatpush2.msra.mxu0 0.0
        %854 = vmatprep.subr.mxu0 0.0
        %855 = vmatpush2.msra.mxu0 0.0
        %856 = vmatprep.subr.mxu0 0.0
        %857 = vmatpush2.msra.mxu0 0.0
        %858 = vmatprep.subr.mxu0 0.0
        %859 = vmatpush2.msra.mxu0 0.0
        %860 = vmatprep.subr.mxu0 0.0
        %861 = vmatpush2.msra.mxu0 0.0
        %862 = vmatprep.subr.mxu0 0.0
        %863 = vmatpush2.msra.mxu0 0.0
        %864 = vmatprep.subr.mxu0 0.0
        %865 = vmatpush2.msra.mxu0 0.0
        %866 = vmatprep.subr.mxu0 0.0
        %867 = vmatpush2.msra.mxu0 0.0
        %868 = vmatprep.subr.mxu0 0.0
        %869 = vmatpush2.msra.mxu0 0.0
        %870 = vmatprep.subr.mxu0 0.0
        %871 = vmatpush2.msra.mxu0 0.0
        %872 = vmatprep.subr.mxu0 0.0
        %873 = vmatpush2.msra.mxu0 0.0
        %874 = vmatprep.subr.mxu0 0.0
        %875 = vmatpush2.msra.mxu0 0.0
        %876 = vmatprep.subr.mxu0 0.0
        %877 = vmatpush2.msra.mxu0 0.0
        %878 = vmatprep.subr.mxu0 0.0
        %879 = vmatpush2.msra.mxu0 0.0
        %880 = vmatprep.subr.mxu0 0.0
        %881 = vmatpush2.msra.mxu0 0.0
        %882 = vmatprep.mubr.f32.mxu0 0.0
        %883 = vmatmul.mubr.f32.gmra.mxu0 %v814
        %v884 = vpop.f32.mrf.mxu0
        %v885 = vadd.f32 0.0, %v884
        %v886 = vpop.f32.mrf.mxu0
        %887 = vdwg.mxu0
        %v888 = vadd.f32 %v806, %v885
        %v889 = vadd.f32 %v650, %v888
        %s890 = scalar_lea.vmem %s6, 16
        %v891 = vld [vmem:[%s890] sm:$0xff]
        %s892 = scalar_lea.vmem %s6, 40
        %v893 = vld [vmem:[%s892] sm:$0xff]
        %894 = vrot.lane.b32.xlu0 %v404, 121
        %v895 = vpop.permute.xlu0 %894
        %v897 = vsel %vm411, %v893, 0
        %v899 = vsel %vm415, %v895, 0
        %901 = vmatprep.subr.mxu0 0.0
        %902 = vmatpush1.msra.mxu0 0.0
        %903 = vmatprep.subr.mxu0 0.0
        %904 = vmatpush1.msra.mxu0 0.0
        %905 = vmatprep.subr.mxu0 0.0
        %906 = vmatpush1.msra.mxu0 0.0
        %907 = vmatprep.subr.mxu0 0.0
        %908 = vmatpush1.msra.mxu0 0.0
        %909 = vmatprep.subr.mxu0 0.0
        %910 = vmatpush1.msra.mxu0 0.0
        %911 = vmatprep.subr.mxu0 0.0
        %912 = vmatpush1.msra.mxu0 0.0
        %913 = vmatprep.subr.mxu0 0.0
        %914 = vmatpush1.msra.mxu0 0.0
        %915 = vmatprep.subr.mxu0 0.0
        %916 = vmatpush1.msra.mxu0 0.0
        %917 = vmatprep.subr.mxu0 0.0
        %918 = vmatpush1.msra.mxu0 0.0
        %919 = vmatprep.subr.mxu0 0.0
        %920 = vmatpush1.msra.mxu0 0.0
        %921 = vmatprep.subr.mxu0 0.0
        %922 = vmatpush1.msra.mxu0 0.0
        %923 = vmatprep.subr.mxu0 0.0
        %924 = vmatpush1.msra.mxu0 0.0
        %925 = vmatprep.subr.mxu0 0.0
        %926 = vmatpush1.msra.mxu0 0.0
        %927 = vmatprep.subr.mxu0 0.0
        %928 = vmatpush1.msra.mxu0 0.0
        %929 = vmatprep.subr.mxu0 0.0
        %930 = vmatpush1.msra.mxu0 0.0
        %931 = vmatprep.subr.mxu0 0.0
        %932 = vmatpush1.msra.mxu0 %v899
        %933 = vmatprep.subr.mxu0 0.0
        %934 = vmatpush2.msra.mxu0 0.0
        %935 = vmatprep.subr.mxu0 0.0
        %936 = vmatpush2.msra.mxu0 0.0
        %937 = vmatprep.subr.mxu0 0.0
        %938 = vmatpush2.msra.mxu0 0.0
        %939 = vmatprep.subr.mxu0 0.0
        %940 = vmatpush2.msra.mxu0 0.0
        %941 = vmatprep.subr.mxu0 0.0
        %942 = vmatpush2.msra.mxu0 0.0
        %943 = vmatprep.subr.mxu0 0.0
        %944 = vmatpush2.msra.mxu0 0.0
        %945 = vmatprep.subr.mxu0 0.0
        %946 = vmatpush2.msra.mxu0 0.0
        %947 = vmatprep.subr.mxu0 0.0
        %948 = vmatpush2.msra.mxu0 0.0
        %949 = vmatprep.subr.mxu0 0.0
        %950 = vmatpush2.msra.mxu0 0.0
        %951 = vmatprep.subr.mxu0 0.0
        %952 = vmatpush2.msra.mxu0 0.0
        %953 = vmatprep.subr.mxu0 0.0
        %954 = vmatpush2.msra.mxu0 0.0
        %955 = vmatprep.subr.mxu0 0.0
        %956 = vmatpush2.msra.mxu0 0.0
        %957 = vmatprep.subr.mxu0 0.0
        %958 = vmatpush2.msra.mxu0 0.0
        %959 = vmatprep.subr.mxu0 0.0
        %960 = vmatpush2.msra.mxu0 0.0
        %961 = vmatprep.subr.mxu0 0.0
        %962 = vmatpush2.msra.mxu0 0.0
        %963 = vmatprep.subr.mxu0 0.0
        %964 = vmatpush2.msra.mxu0 0.0
        %965 = vmatprep.mubr.f32.mxu0 0.0
        %966 = vmatmul.mubr.f32.gmra.mxu0 %v897
        %v967 = vpop.f32.mrf.mxu0
        %v968 = vadd.f32 0.0, %v967
        %v969 = vpop.f32.mrf.mxu0
        %970 = vdwg.mxu0
        %971 = vrot.lane.b32.xlu0 %v404, 126
        %v972 = vpop.permute.xlu0 %971
        %v974 = vsel %vm411, %v891, 0
        %v976 = vsel %vm415, %v972, 0
        %978 = vmatprep.subr.mxu0 0.0
        %979 = vmatpush1.msra.mxu0 0.0
        %980 = vmatprep.subr.mxu0 0.0
        %981 = vmatpush1.msra.mxu0 0.0
        %982 = vmatprep.subr.mxu0 0.0
        %983 = vmatpush1.msra.mxu0 0.0
        %984 = vmatprep.subr.mxu0 0.0
        %985 = vmatpush1.msra.mxu0 0.0
        %986 = vmatprep.subr.mxu0 0.0
        %987 = vmatpush1.msra.mxu0 0.0
        %988 = vmatprep.subr.mxu0 0.0
        %989 = vmatpush1.msra.mxu0 0.0
        %990 = vmatprep.subr.mxu0 0.0
        %991 = vmatpush1.msra.mxu0 0.0
        %992 = vmatprep.subr.mxu0 0.0
        %993 = vmatpush1.msra.mxu0 0.0
        %994 = vmatprep.subr.mxu0 0.0
        %995 = vmatpush1.msra.mxu0 0.0
        %996 = vmatprep.subr.mxu0 0.0
        %997 = vmatpush1.msra.mxu0 0.0
        %998 = vmatprep.subr.mxu0 0.0
        %999 = vmatpush1.msra.mxu0 0.0
        %1000 = vmatprep.subr.mxu0 0.0
        %1001 = vmatpush1.msra.mxu0 0.0
        %1002 = vmatprep.subr.mxu0 0.0
        %1003 = vmatpush1.msra.mxu0 0.0
        %1004 = vmatprep.subr.mxu0 0.0
        %1005 = vmatpush1.msra.mxu0 0.0
        %1006 = vmatprep.subr.mxu0 0.0
        %1007 = vmatpush1.msra.mxu0 0.0
        %1008 = vmatprep.subr.mxu0 0.0
        %1009 = vmatpush1.msra.mxu0 %v976
        %1010 = vmatprep.subr.mxu0 0.0
        %1011 = vmatpush2.msra.mxu0 0.0
        %1012 = vmatprep.subr.mxu0 0.0
        %1013 = vmatpush2.msra.mxu0 0.0
        %1014 = vmatprep.subr.mxu0 0.0
        %1015 = vmatpush2.msra.mxu0 0.0
        %1016 = vmatprep.subr.mxu0 0.0
        %1017 = vmatpush2.msra.mxu0 0.0
        %1018 = vmatprep.subr.mxu0 0.0
        %1019 = vmatpush2.msra.mxu0 0.0
        %1020 = vmatprep.subr.mxu0 0.0
        %1021 = vmatpush2.msra.mxu0 0.0
        %1022 = vmatprep.subr.mxu0 0.0
        %1023 = vmatpush2.msra.mxu0 0.0
        %1024 = vmatprep.subr.mxu0 0.0
        %1025 = vmatpush2.msra.mxu0 0.0
        %1026 = vmatprep.subr.mxu0 0.0
        %1027 = vmatpush2.msra.mxu0 0.0
        %1028 = vmatprep.subr.mxu0 0.0
        %1029 = vmatpush2.msra.mxu0 0.0
        %1030 = vmatprep.subr.mxu0 0.0
        %1031 = vmatpush2.msra.mxu0 0.0
        %1032 = vmatprep.subr.mxu0 0.0
        %1033 = vmatpush2.msra.mxu0 0.0
        %1034 = vmatprep.subr.mxu0 0.0
        %1035 = vmatpush2.msra.mxu0 0.0
        %1036 = vmatprep.subr.mxu0 0.0
        %1037 = vmatpush2.msra.mxu0 0.0
        %1038 = vmatprep.subr.mxu0 0.0
        %1039 = vmatpush2.msra.mxu0 0.0
        %1040 = vmatprep.subr.mxu0 0.0
        %1041 = vmatpush2.msra.mxu0 0.0
        %1042 = vmatprep.mubr.f32.mxu0 0.0
        %1043 = vmatmul.mubr.f32.gmra.mxu0 %v974
        %v1044 = vpop.f32.mrf.mxu0
        %v1045 = vadd.f32 %v968, %v1044
        %v1046 = vpop.f32.mrf.mxu0
        %1047 = vdwg.mxu0
        %s1048 = scalar_lea.vmem %s6, 64
        %v1049 = vld [vmem:[%s1048] sm:$0xff]
        %1050 = vrot.lane.b32.xlu0 %v404, 116
        %v1051 = vpop.permute.xlu0 %1050
        %v1053 = vsel %vm411, %v1049, 0
        %v1055 = vsel %vm415, %v1051, 0
        %1057 = vmatprep.subr.mxu0 0.0
        %1058 = vmatpush1.msra.mxu0 0.0
        %1059 = vmatprep.subr.mxu0 0.0
        %1060 = vmatpush1.msra.mxu0 0.0
        %1061 = vmatprep.subr.mxu0 0.0
        %1062 = vmatpush1.msra.mxu0 0.0
        %1063 = vmatprep.subr.mxu0 0.0
        %1064 = vmatpush1.msra.mxu0 0.0
        %1065 = vmatprep.subr.mxu0 0.0
        %1066 = vmatpush1.msra.mxu0 0.0
        %1067 = vmatprep.subr.mxu0 0.0
        %1068 = vmatpush1.msra.mxu0 0.0
        %1069 = vmatprep.subr.mxu0 0.0
        %1070 = vmatpush1.msra.mxu0 0.0
        %1071 = vmatprep.subr.mxu0 0.0
        %1072 = vmatpush1.msra.mxu0 0.0
        %1073 = vmatprep.subr.mxu0 0.0
        %1074 = vmatpush1.msra.mxu0 0.0
        %1075 = vmatprep.subr.mxu0 0.0
        %1076 = vmatpush1.msra.mxu0 0.0
        %1077 = vmatprep.subr.mxu0 0.0
        %1078 = vmatpush1.msra.mxu0 0.0
        %1079 = vmatprep.subr.mxu0 0.0
        %1080 = vmatpush1.msra.mxu0 0.0
        %1081 = vmatprep.subr.mxu0 0.0
        %1082 = vmatpush1.msra.mxu0 0.0
        %1083 = vmatprep.subr.mxu0 0.0
        %1084 = vmatpush1.msra.mxu0 0.0
        %1085 = vmatprep.subr.mxu0 0.0
        %1086 = vmatpush1.msra.mxu0 0.0
        %1087 = vmatprep.subr.mxu0 0.0
        %1088 = vmatpush1.msra.mxu0 %v1055
        %1089 = vmatprep.subr.mxu0 0.0
        %1090 = vmatpush2.msra.mxu0 0.0
        %1091 = vmatprep.subr.mxu0 0.0
        %1092 = vmatpush2.msra.mxu0 0.0
        %1093 = vmatprep.subr.mxu0 0.0
        %1094 = vmatpush2.msra.mxu0 0.0
        %1095 = vmatprep.subr.mxu0 0.0
        %1096 = vmatpush2.msra.mxu0 0.0
        %1097 = vmatprep.subr.mxu0 0.0
        %1098 = vmatpush2.msra.mxu0 0.0
        %1099 = vmatprep.subr.mxu0 0.0
        %1100 = vmatpush2.msra.mxu0 0.0
        %1101 = vmatprep.subr.mxu0 0.0
        %1102 = vmatpush2.msra.mxu0 0.0
        %1103 = vmatprep.subr.mxu0 0.0
        %1104 = vmatpush2.msra.mxu0 0.0
        %1105 = vmatprep.subr.mxu0 0.0
        %1106 = vmatpush2.msra.mxu0 0.0
        %1107 = vmatprep.subr.mxu0 0.0
        %1108 = vmatpush2.msra.mxu0 0.0
        %1109 = vmatprep.subr.mxu0 0.0
        %1110 = vmatpush2.msra.mxu0 0.0
        %1111 = vmatprep.subr.mxu0 0.0
        %1112 = vmatpush2.msra.mxu0 0.0
        %1113 = vmatprep.subr.mxu0 0.0
        %1114 = vmatpush2.msra.mxu0 0.0
        %1115 = vmatprep.subr.mxu0 0.0
        %1116 = vmatpush2.msra.mxu0 0.0
        %1117 = vmatprep.subr.mxu0 0.0
        %1118 = vmatpush2.msra.mxu0 0.0
        %1119 = vmatprep.subr.mxu0 0.0
        %1120 = vmatpush2.msra.mxu0 0.0
        %1121 = vmatprep.mubr.f32.mxu0 0.0
        %1122 = vmatmul.mubr.f32.gmra.mxu0 %v1053
        %v1123 = vpop.f32.mrf.mxu0
        %v1124 = vadd.f32 0.0, %v1123
        %v1125 = vpop.f32.mrf.mxu0
        %1126 = vdwg.mxu0
        %v1127 = vadd.f32 %v1045, %v1124
        %s1128 = scalar_lea.vmem %s2, 2
        %v1129 = vld [vmem:[%s1128] sm:$0x1]
        %v1131 = vlaneseq
        %v1132 = vshrl.u32 %v1131, 7
        %v1133 = vsub.s32 0, %v1132
        %v1134 = vrot.slane %v1129, %v1133
        %v1136 = vmul.f32 %v1127, %v1134
        %v1137 = vadd.f32 %v889, %v1136
        %v1138 = vld [vmem:[%s7] sm:$0xff]
        %1140 = vset.pattern.permute.xlu0 0
        %1141 = vperm.xlu0 %1140, %v1138
        %v1142 = vpop.permute.xlu0 %1141
        %v1144 = vadd.f32 %v1137, %v1142
        %v1145 = vmul.f32 %v1144, 0.5
        %v1146 = vmul.f32 %v1144, 0.70710677
        %v1147 = vand.u32 2147483647, %v1146
        %v1148 = vmul.f32 %v1147, 0.3275911
        %v1149 = vadd.f32 %v1148, 1.0
        %v1150 = vrcp.pop %v1149
        %v1151 = vmul.f32 1.0, %v1150
        %v1152 = vmul.f32 %v1151, 1.0614054
        %v1153 = vadd.f32 %v1152, -1.4531521
        %v1154 = vmul.f32 %v1153, %v1151
        %v1155 = vadd.f32 %v1154, 1.4214138
        %v1156 = vmul.f32 %v1155, %v1151
        %v1157 = vadd.f32 %v1156, -0.28449672
        %v1158 = vmul.f32 %v1157, %v1151
        %v1159 = vadd.f32 %v1158, 0.2548296
        %v1160 = vmul.f32 %v1159, %v1151
        %v1161 = vsub.f32 0.0, %v1147
        %v1162 = vmul.f32 %v1161, %v1147
        %v1163 = vmul.f32 %v1162, 1.442695
        %v1164 = vpow.pop %v1163
        %v1165 = vmul.f32 %v1160, %v1164
        %v1166 = vsub.f32 1.0, %v1165
        %vm1167 = vcmp.ge.f32.partialorder %v1146, 0.0
        %v1168 = vsub.f32 0.0, %v1166
        %v1169 = vsel %vm1167, %v1166, %v1168
        %v1170 = vadd.f32 %v1169, 1.0
        %v1171 = vmul.f32 %v1145, %v1170
        %vm1172 = vcmask 48128
        %1173 = vst.msk [vmem:[#allocation2] sm:$0xff] %vm1172, 0.0
        %vm1174 = vcmask 179328
        %1175 = vst.msk [vmem:[#allocation2] sm:$0xff] %vm1174, 0.0
        %1177 = vrot.lane.b32.xlu0 %v1171, 6
        %v1178 = vpop.permute.xlu0 %1177
        %vm1180 = vcmask 130096
        %1181 = vst.msk [vmem:[#allocation2] sm:$0xff] %vm1180, %v1178
        %v1182 = vld [vmem:[#allocation2] sm:$0xff]
        %v1183 = vld [vmem:[%s8] sm:$0xf]
        %s1184 = scalar_lea.vmem %s8, 12
        %v1185 = vld [vmem:[%s1184] sm:$0xf]
        %1187 = vrot.lane.b32.xlu0 %v1182, 123
        %v1188 = vpop.permute.xlu0 %1187
        %vm1190 = vcmask 64512
        %v1192 = vsel %vm1190, %v1185, 0
        %1194 = vmatprep.subr.mxu0 0.0
        %1195 = vmatpush1.msra.mxu0 0.0
        %1196 = vmatprep.subr.mxu0 0.0
        %1197 = vmatpush1.msra.mxu0 0.0
        %1198 = vmatprep.subr.mxu0 0.0
        %1199 = vmatpush1.msra.mxu0 0.0
        %1200 = vmatprep.subr.mxu0 0.0
        %1201 = vmatpush1.msra.mxu0 0.0
        %1202 = vmatprep.subr.mxu0 0.0
        %1203 = vmatpush1.msra.mxu0 0.0
        %1204 = vmatprep.subr.mxu0 0.0
        %1205 = vmatpush1.msra.mxu0 0.0
        %1206 = vmatprep.subr.mxu0 0.0
        %1207 = vmatpush1.msra.mxu0 0.0
        %1208 = vmatprep.subr.mxu0 0.0
        %1209 = vmatpush1.msra.mxu0 0.0
        %1210 = vmatprep.subr.mxu0 0.0
        %1211 = vmatpush1.msra.mxu0 0.0
        %1212 = vmatprep.subr.mxu0 0.0
        %1213 = vmatpush1.msra.mxu0 0.0
        %1214 = vmatprep.subr.mxu0 0.0
        %1215 = vmatpush1.msra.mxu0 0.0
        %1216 = vmatprep.subr.mxu0 0.0
        %1217 = vmatpush1.msra.mxu0 0.0
        %1218 = vmatprep.subr.mxu0 0.0
        %1219 = vmatpush1.msra.mxu0 0.0
        %1220 = vmatprep.subr.mxu0 0.0
        %1221 = vmatpush1.msra.mxu0 0.0
        %1222 = vmatprep.subr.mxu0 0.0
        %1223 = vmatpush1.msra.mxu0 0.0
        %1224 = vmatprep.subr.mxu0 0.0
        %1225 = vmatpush1.msra.mxu0 %v1188
        %1226 = vmatprep.subr.mxu0 0.0
        %1227 = vmatpush2.msra.mxu0 0.0
        %1228 = vmatprep.subr.mxu0 0.0
        %1229 = vmatpush2.msra.mxu0 0.0
        %1230 = vmatprep.subr.mxu0 0.0
        %1231 = vmatpush2.msra.mxu0 0.0
        %1232 = vmatprep.subr.mxu0 0.0
        %1233 = vmatpush2.msra.mxu0 0.0
        %1234 = vmatprep.subr.mxu0 0.0
        %1235 = vmatpush2.msra.mxu0 0.0
        %1236 = vmatprep.subr.mxu0 0.0
        %1237 = vmatpush2.msra.mxu0 0.0
        %1238 = vmatprep.subr.mxu0 0.0
        %1239 = vmatpush2.msra.mxu0 0.0
        %1240 = vmatprep.subr.mxu0 0.0
        %1241 = vmatpush2.msra.mxu0 0.0
        %1242 = vmatprep.subr.mxu0 0.0
        %1243 = vmatpush2.msra.mxu0 0.0
        %1244 = vmatprep.subr.mxu0 0.0
        %1245 = vmatpush2.msra.mxu0 0.0
        %1246 = vmatprep.subr.mxu0 0.0
        %1247 = vmatpush2.msra.mxu0 0.0
        %1248 = vmatprep.subr.mxu0 0.0
        %1249 = vmatpush2.msra.mxu0 0.0
        %1250 = vmatprep.subr.mxu0 0.0
        %1251 = vmatpush2.msra.mxu0 0.0
        %1252 = vmatprep.subr.mxu0 0.0
        %1253 = vmatpush2.msra.mxu0 0.0
        %1254 = vmatprep.subr.mxu0 0.0
        %1255 = vmatpush2.msra.mxu0 0.0
        %1256 = vmatprep.subr.mxu0 0.0
        %1257 = vmatpush2.msra.mxu0 0.0
        %1258 = vmatprep.mubr.f32.mxu0 0.0
        %1259 = vmatmul.mubr.f32.gmra.mxu0 %v1192
        %v1260 = vpop.f32.mrf.mxu0
        %v1261 = vadd.f32 0.0, %v1260
        %v1262 = vpop.f32.mrf.mxu0
        %1263 = vdwg.mxu0
        %v1265 = vsel %vm1190, %v1183, 0
        %1267 = vmatprep.subr.mxu0 0.0
        %1268 = vmatpush1.msra.mxu0 0.0
        %1269 = vmatprep.subr.mxu0 0.0
        %1270 = vmatpush1.msra.mxu0 0.0
        %1271 = vmatprep.subr.mxu0 0.0
        %1272 = vmatpush1.msra.mxu0 0.0
        %1273 = vmatprep.subr.mxu0 0.0
        %1274 = vmatpush1.msra.mxu0 0.0
        %1275 = vmatprep.subr.mxu0 0.0
        %1276 = vmatpush1.msra.mxu0 0.0
        %1277 = vmatprep.subr.mxu0 0.0
        %1278 = vmatpush1.msra.mxu0 0.0
        %1279 = vmatprep.subr.mxu0 0.0
        %1280 = vmatpush1.msra.mxu0 0.0
        %1281 = vmatprep.subr.mxu0 0.0
        %1282 = vmatpush1.msra.mxu0 0.0
        %1283 = vmatprep.subr.mxu0 0.0
        %1284 = vmatpush1.msra.mxu0 0.0
        %1285 = vmatprep.subr.mxu0 0.0
        %1286 = vmatpush1.msra.mxu0 0.0
        %1287 = vmatprep.subr.mxu0 0.0
        %1288 = vmatpush1.msra.mxu0 0.0
        %1289 = vmatprep.subr.mxu0 0.0
        %1290 = vmatpush1.msra.mxu0 0.0
        %1291 = vmatprep.subr.mxu0 0.0
        %1292 = vmatpush1.msra.mxu0 0.0
        %1293 = vmatprep.subr.mxu0 0.0
        %1294 = vmatpush1.msra.mxu0 0.0
        %1295 = vmatprep.subr.mxu0 0.0
        %1296 = vmatpush1.msra.mxu0 0.0
        %1297 = vmatprep.subr.mxu0 0.0
        %1298 = vmatpush1.msra.mxu0 %v1182
        %1299 = vmatprep.subr.mxu0 0.0
        %1300 = vmatpush2.msra.mxu0 0.0
        %1301 = vmatprep.subr.mxu0 0.0
        %1302 = vmatpush2.msra.mxu0 0.0
        %1303 = vmatprep.subr.mxu0 0.0
        %1304 = vmatpush2.msra.mxu0 0.0
        %1305 = vmatprep.subr.mxu0 0.0
        %1306 = vmatpush2.msra.mxu0 0.0
        %1307 = vmatprep.subr.mxu0 0.0
        %1308 = vmatpush2.msra.mxu0 0.0
        %1309 = vmatprep.subr.mxu0 0.0
        %1310 = vmatpush2.msra.mxu0 0.0
        %1311 = vmatprep.subr.mxu0 0.0
        %1312 = vmatpush2.msra.mxu0 0.0
        %1313 = vmatprep.subr.mxu0 0.0
        %1314 = vmatpush2.msra.mxu0 0.0
        %1315 = vmatprep.subr.mxu0 0.0
        %1316 = vmatpush2.msra.mxu0 0.0
        %1317 = vmatprep.subr.mxu0 0.0
        %1318 = vmatpush2.msra.mxu0 0.0
        %1319 = vmatprep.subr.mxu0 0.0
        %1320 = vmatpush2.msra.mxu0 0.0
        %1321 = vmatprep.subr.mxu0 0.0
        %1322 = vmatpush2.msra.mxu0 0.0
        %1323 = vmatprep.subr.mxu0 0.0
        %1324 = vmatpush2.msra.mxu0 0.0
        %1325 = vmatprep.subr.mxu0 0.0
        %1326 = vmatpush2.msra.mxu0 0.0
        %1327 = vmatprep.subr.mxu0 0.0
        %1328 = vmatpush2.msra.mxu0 0.0
        %1329 = vmatprep.subr.mxu0 0.0
        %1330 = vmatpush2.msra.mxu0 0.0
        %1331 = vmatprep.mubr.f32.mxu0 0.0
        %1332 = vmatmul.mubr.f32.gmra.mxu0 %v1265
        %v1333 = vpop.f32.mrf.mxu0
        %v1334 = vadd.f32 %v1261, %v1333
        %v1335 = vpop.f32.mrf.mxu0
        %1336 = vdwg.mxu0
        %s1337 = scalar_lea.vmem %s8, 24
        %v1338 = vld [vmem:[%s1337] sm:$0xf]
        %1339 = vrot.lane.b32.xlu0 %v1182, 118
        %v1340 = vpop.permute.xlu0 %1339
        %v1343 = vsel %vm1190, %v1338, 0
        %1345 = vmatprep.subr.mxu0 0.0
        %1346 = vmatpush1.msra.mxu0 0.0
        %1347 = vmatprep.subr.mxu0 0.0
        %1348 = vmatpush1.msra.mxu0 0.0
        %1349 = vmatprep.subr.mxu0 0.0
        %1350 = vmatpush1.msra.mxu0 0.0
        %1351 = vmatprep.subr.mxu0 0.0
        %1352 = vmatpush1.msra.mxu0 0.0
        %1353 = vmatprep.subr.mxu0 0.0
        %1354 = vmatpush1.msra.mxu0 0.0
        %1355 = vmatprep.subr.mxu0 0.0
        %1356 = vmatpush1.msra.mxu0 0.0
        %1357 = vmatprep.subr.mxu0 0.0
        %1358 = vmatpush1.msra.mxu0 0.0
        %1359 = vmatprep.subr.mxu0 0.0
        %1360 = vmatpush1.msra.mxu0 0.0
        %1361 = vmatprep.subr.mxu0 0.0
        %1362 = vmatpush1.msra.mxu0 0.0
        %1363 = vmatprep.subr.mxu0 0.0
        %1364 = vmatpush1.msra.mxu0 0.0
        %1365 = vmatprep.subr.mxu0 0.0
        %1366 = vmatpush1.msra.mxu0 0.0
        %1367 = vmatprep.subr.mxu0 0.0
        %1368 = vmatpush1.msra.mxu0 0.0
        %1369 = vmatprep.subr.mxu0 0.0
        %1370 = vmatpush1.msra.mxu0 0.0
        %1371 = vmatprep.subr.mxu0 0.0
        %1372 = vmatpush1.msra.mxu0 0.0
        %1373 = vmatprep.subr.mxu0 0.0
        %1374 = vmatpush1.msra.mxu0 0.0
        %1375 = vmatprep.subr.mxu0 0.0
        %1376 = vmatpush1.msra.mxu0 %v1340
        %1377 = vmatprep.subr.mxu0 0.0
        %1378 = vmatpush2.msra.mxu0 0.0
        %1379 = vmatprep.subr.mxu0 0.0
        %1380 = vmatpush2.msra.mxu0 0.0
        %1381 = vmatprep.subr.mxu0 0.0
        %1382 = vmatpush2.msra.mxu0 0.0
        %1383 = vmatprep.subr.mxu0 0.0
        %1384 = vmatpush2.msra.mxu0 0.0
        %1385 = vmatprep.subr.mxu0 0.0
        %1386 = vmatpush2.msra.mxu0 0.0
        %1387 = vmatprep.subr.mxu0 0.0
        %1388 = vmatpush2.msra.mxu0 0.0
        %1389 = vmatprep.subr.mxu0 0.0
        %1390 = vmatpush2.msra.mxu0 0.0
        %1391 = vmatprep.subr.mxu0 0.0
        %1392 = vmatpush2.msra.mxu0 0.0
        %1393 = vmatprep.subr.mxu0 0.0
        %1394 = vmatpush2.msra.mxu0 0.0
        %1395 = vmatprep.subr.mxu0 0.0
        %1396 = vmatpush2.msra.mxu0 0.0
        %1397 = vmatprep.subr.mxu0 0.0
        %1398 = vmatpush2.msra.mxu0 0.0
        %1399 = vmatprep.subr.mxu0 0.0
        %1400 = vmatpush2.msra.mxu0 0.0
        %1401 = vmatprep.subr.mxu0 0.0
        %1402 = vmatpush2.msra.mxu0 0.0
        %1403 = vmatprep.subr.mxu0 0.0
        %1404 = vmatpush2.msra.mxu0 0.0
        %1405 = vmatprep.subr.mxu0 0.0
        %1406 = vmatpush2.msra.mxu0 0.0
        %1407 = vmatprep.subr.mxu0 0.0
        %1408 = vmatpush2.msra.mxu0 0.0
        %1409 = vmatprep.mubr.f32.mxu0 0.0
        %1410 = vmatmul.mubr.f32.gmra.mxu0 %v1343
        %v1411 = vpop.f32.mrf.mxu0
        %v1412 = vadd.f32 0.0, %v1411
        %v1413 = vpop.f32.mrf.mxu0
        %1414 = vdwg.mxu0
        %v1415 = vadd.f32 %v1334, %v1412
        %v1416 = vld [vmem:[%s2] sm:$0x1]
        %v1418 = vlaneseq
        %v1419 = vshrl.u32 %v1418, 7
        %v1420 = vsub.s32 0, %v1419
        %v1421 = vrot.slane %v1416, %v1420
        %v1423 = vmul.f32 %v1415, %v1421
        %s1424 = scalar_lea.vmem %s8, 4
        %v1425 = vld [vmem:[%s1424] sm:$0xf]
        %s1426 = scalar_lea.vmem %s8, 16
        %v1427 = vld [vmem:[%s1426] sm:$0xf]
        %1428 = vrot.lane.b32.xlu0 %v1182, 122
        %v1429 = vpop.permute.xlu0 %1428
        %v1432 = vsel %vm1190, %v1427, 0
        %1434 = vmatprep.subr.mxu0 0.0
        %1435 = vmatpush1.msra.mxu0 0.0
        %1436 = vmatprep.subr.mxu0 0.0
        %1437 = vmatpush1.msra.mxu0 0.0
        %1438 = vmatprep.subr.mxu0 0.0
        %1439 = vmatpush1.msra.mxu0 0.0
        %1440 = vmatprep.subr.mxu0 0.0
        %1441 = vmatpush1.msra.mxu0 0.0
        %1442 = vmatprep.subr.mxu0 0.0
        %1443 = vmatpush1.msra.mxu0 0.0
        %1444 = vmatprep.subr.mxu0 0.0
        %1445 = vmatpush1.msra.mxu0 0.0
        %1446 = vmatprep.subr.mxu0 0.0
        %1447 = vmatpush1.msra.mxu0 0.0
        %1448 = vmatprep.subr.mxu0 0.0
        %1449 = vmatpush1.msra.mxu0 0.0
        %1450 = vmatprep.subr.mxu0 0.0
        %1451 = vmatpush1.msra.mxu0 0.0
        %1452 = vmatprep.subr.mxu0 0.0
        %1453 = vmatpush1.msra.mxu0 0.0
        %1454 = vmatprep.subr.mxu0 0.0
        %1455 = vmatpush1.msra.mxu0 0.0
        %1456 = vmatprep.subr.mxu0 0.0
        %1457 = vmatpush1.msra.mxu0 0.0
        %1458 = vmatprep.subr.mxu0 0.0
        %1459 = vmatpush1.msra.mxu0 0.0
        %1460 = vmatprep.subr.mxu0 0.0
        %1461 = vmatpush1.msra.mxu0 0.0
        %1462 = vmatprep.subr.mxu0 0.0
        %1463 = vmatpush1.msra.mxu0 0.0
        %1464 = vmatprep.subr.mxu0 0.0
        %1465 = vmatpush1.msra.mxu0 %v1429
        %1466 = vmatprep.subr.mxu0 0.0
        %1467 = vmatpush2.msra.mxu0 0.0
        %1468 = vmatprep.subr.mxu0 0.0
        %1469 = vmatpush2.msra.mxu0 0.0
        %1470 = vmatprep.subr.mxu0 0.0
        %1471 = vmatpush2.msra.mxu0 0.0
        %1472 = vmatprep.subr.mxu0 0.0
        %1473 = vmatpush2.msra.mxu0 0.0
        %1474 = vmatprep.subr.mxu0 0.0
        %1475 = vmatpush2.msra.mxu0 0.0
        %1476 = vmatprep.subr.mxu0 0.0
        %1477 = vmatpush2.msra.mxu0 0.0
        %1478 = vmatprep.subr.mxu0 0.0
        %1479 = vmatpush2.msra.mxu0 0.0
        %1480 = vmatprep.subr.mxu0 0.0
        %1481 = vmatpush2.msra.mxu0 0.0
        %1482 = vmatprep.subr.mxu0 0.0
        %1483 = vmatpush2.msra.mxu0 0.0
        %1484 = vmatprep.subr.mxu0 0.0
        %1485 = vmatpush2.msra.mxu0 0.0
        %1486 = vmatprep.subr.mxu0 0.0
        %1487 = vmatpush2.msra.mxu0 0.0
        %1488 = vmatprep.subr.mxu0 0.0
        %1489 = vmatpush2.msra.mxu0 0.0
        %1490 = vmatprep.subr.mxu0 0.0
        %1491 = vmatpush2.msra.mxu0 0.0
        %1492 = vmatprep.subr.mxu0 0.0
        %1493 = vmatpush2.msra.mxu0 0.0
        %1494 = vmatprep.subr.mxu0 0.0
        %1495 = vmatpush2.msra.mxu0 0.0
        %1496 = vmatprep.subr.mxu0 0.0
        %1497 = vmatpush2.msra.mxu0 0.0
        %1498 = vmatprep.mubr.f32.mxu0 0.0
        %1499 = vmatmul.mubr.f32.gmra.mxu0 %v1432
        %v1500 = vpop.f32.mrf.mxu0
        %v1501 = vadd.f32 0.0, %v1500
        %v1502 = vpop.f32.mrf.mxu0
        %1503 = vdwg.mxu0
        %1504 = vrot.lane.b32.xlu0 %v1182, 127
        %v1505 = vpop.permute.xlu0 %1504
        %v1508 = vsel %vm1190, %v1425, 0
        %1510 = vmatprep.subr.mxu0 0.0
        %1511 = vmatpush1.msra.mxu0 0.0
        %1512 = vmatprep.subr.mxu0 0.0
        %1513 = vmatpush1.msra.mxu0 0.0
        %1514 = vmatprep.subr.mxu0 0.0
        %1515 = vmatpush1.msra.mxu0 0.0
        %1516 = vmatprep.subr.mxu0 0.0
        %1517 = vmatpush1.msra.mxu0 0.0
        %1518 = vmatprep.subr.mxu0 0.0
        %1519 = vmatpush1.msra.mxu0 0.0
        %1520 = vmatprep.subr.mxu0 0.0
        %1521 = vmatpush1.msra.mxu0 0.0
        %1522 = vmatprep.subr.mxu0 0.0
        %1523 = vmatpush1.msra.mxu0 0.0
        %1524 = vmatprep.subr.mxu0 0.0
        %1525 = vmatpush1.msra.mxu0 0.0
        %1526 = vmatprep.subr.mxu0 0.0
        %1527 = vmatpush1.msra.mxu0 0.0
        %1528 = vmatprep.subr.mxu0 0.0
        %1529 = vmatpush1.msra.mxu0 0.0
        %1530 = vmatprep.subr.mxu0 0.0
        %1531 = vmatpush1.msra.mxu0 0.0
        %1532 = vmatprep.subr.mxu0 0.0
        %1533 = vmatpush1.msra.mxu0 0.0
        %1534 = vmatprep.subr.mxu0 0.0
        %1535 = vmatpush1.msra.mxu0 0.0
        %1536 = vmatprep.subr.mxu0 0.0
        %1537 = vmatpush1.msra.mxu0 0.0
        %1538 = vmatprep.subr.mxu0 0.0
        %1539 = vmatpush1.msra.mxu0 0.0
        %1540 = vmatprep.subr.mxu0 0.0
        %1541 = vmatpush1.msra.mxu0 %v1505
        %1542 = vmatprep.subr.mxu0 0.0
        %1543 = vmatpush2.msra.mxu0 0.0
        %1544 = vmatprep.subr.mxu0 0.0
        %1545 = vmatpush2.msra.mxu0 0.0
        %1546 = vmatprep.subr.mxu0 0.0
        %1547 = vmatpush2.msra.mxu0 0.0
        %1548 = vmatprep.subr.mxu0 0.0
        %1549 = vmatpush2.msra.mxu0 0.0
        %1550 = vmatprep.subr.mxu0 0.0
        %1551 = vmatpush2.msra.mxu0 0.0
        %1552 = vmatprep.subr.mxu0 0.0
        %1553 = vmatpush2.msra.mxu0 0.0
        %1554 = vmatprep.subr.mxu0 0.0
        %1555 = vmatpush2.msra.mxu0 0.0
        %1556 = vmatprep.subr.mxu0 0.0
        %1557 = vmatpush2.msra.mxu0 0.0
        %1558 = vmatprep.subr.mxu0 0.0
        %1559 = vmatpush2.msra.mxu0 0.0
        %1560 = vmatprep.subr.mxu0 0.0
        %1561 = vmatpush2.msra.mxu0 0.0
        %1562 = vmatprep.subr.mxu0 0.0
        %1563 = vmatpush2.msra.mxu0 0.0
        %1564 = vmatprep.subr.mxu0 0.0
        %1565 = vmatpush2.msra.mxu0 0.0
        %1566 = vmatprep.subr.mxu0 0.0
        %1567 = vmatpush2.msra.mxu0 0.0
        %1568 = vmatprep.subr.mxu0 0.0
        %1569 = vmatpush2.msra.mxu0 0.0
        %1570 = vmatprep.subr.mxu0 0.0
        %1571 = vmatpush2.msra.mxu0 0.0
        %1572 = vmatprep.subr.mxu0 0.0
        %1573 = vmatpush2.msra.mxu0 0.0
        %1574 = vmatprep.mubr.f32.mxu0 0.0
        %1575 = vmatmul.mubr.f32.gmra.mxu0 %v1508
        %v1576 = vpop.f32.mrf.mxu0
        %v1577 = vadd.f32 %v1501, %v1576
        %v1578 = vpop.f32.mrf.mxu0
        %1579 = vdwg.mxu0
        %s1580 = scalar_lea.vmem %s8, 28
        %v1581 = vld [vmem:[%s1580] sm:$0xf]
        %1582 = vrot.lane.b32.xlu0 %v1182, 117
        %v1583 = vpop.permute.xlu0 %1582
        %v1586 = vsel %vm1190, %v1581, 0
        %1588 = vmatprep.subr.mxu0 0.0
        %1589 = vmatpush1.msra.mxu0 0.0
        %1590 = vmatprep.subr.mxu0 0.0
        %1591 = vmatpush1.msra.mxu0 0.0
        %1592 = vmatprep.subr.mxu0 0.0
        %1593 = vmatpush1.msra.mxu0 0.0
        %1594 = vmatprep.subr.mxu0 0.0
        %1595 = vmatpush1.msra.mxu0 0.0
        %1596 = vmatprep.subr.mxu0 0.0
        %1597 = vmatpush1.msra.mxu0 0.0
        %1598 = vmatprep.subr.mxu0 0.0
        %1599 = vmatpush1.msra.mxu0 0.0
        %1600 = vmatprep.subr.mxu0 0.0
        %1601 = vmatpush1.msra.mxu0 0.0
        %1602 = vmatprep.subr.mxu0 0.0
        %1603 = vmatpush1.msra.mxu0 0.0
        %1604 = vmatprep.subr.mxu0 0.0
        %1605 = vmatpush1.msra.mxu0 0.0
        %1606 = vmatprep.subr.mxu0 0.0
        %1607 = vmatpush1.msra.mxu0 0.0
        %1608 = vmatprep.subr.mxu0 0.0
        %1609 = vmatpush1.msra.mxu0 0.0
        %1610 = vmatprep.subr.mxu0 0.0
        %1611 = vmatpush1.msra.mxu0 0.0
        %1612 = vmatprep.subr.mxu0 0.0
        %1613 = vmatpush1.msra.mxu0 0.0
        %1614 = vmatprep.subr.mxu0 0.0
        %1615 = vmatpush1.msra.mxu0 0.0
        %1616 = vmatprep.subr.mxu0 0.0
        %1617 = vmatpush1.msra.mxu0 0.0
        %1618 = vmatprep.subr.mxu0 0.0
        %1619 = vmatpush1.msra.mxu0 %v1583
        %1620 = vmatprep.subr.mxu0 0.0
        %1621 = vmatpush2.msra.mxu0 0.0
        %1622 = vmatprep.subr.mxu0 0.0
        %1623 = vmatpush2.msra.mxu0 0.0
        %1624 = vmatprep.subr.mxu0 0.0
        %1625 = vmatpush2.msra.mxu0 0.0
        %1626 = vmatprep.subr.mxu0 0.0
        %1627 = vmatpush2.msra.mxu0 0.0
        %1628 = vmatprep.subr.mxu0 0.0
        %1629 = vmatpush2.msra.mxu0 0.0
        %1630 = vmatprep.subr.mxu0 0.0
        %1631 = vmatpush2.msra.mxu0 0.0
        %1632 = vmatprep.subr.mxu0 0.0
        %1633 = vmatpush2.msra.mxu0 0.0
        %1634 = vmatprep.subr.mxu0 0.0
        %1635 = vmatpush2.msra.mxu0 0.0
        %1636 = vmatprep.subr.mxu0 0.0
        %1637 = vmatpush2.msra.mxu0 0.0
        %1638 = vmatprep.subr.mxu0 0.0
        %1639 = vmatpush2.msra.mxu0 0.0
        %1640 = vmatprep.subr.mxu0 0.0
        %1641 = vmatpush2.msra.mxu0 0.0
        %1642 = vmatprep.subr.mxu0 0.0
        %1643 = vmatpush2.msra.mxu0 0.0
        %1644 = vmatprep.subr.mxu0 0.0
        %1645 = vmatpush2.msra.mxu0 0.0
        %1646 = vmatprep.subr.mxu0 0.0
        %1647 = vmatpush2.msra.mxu0 0.0
        %1648 = vmatprep.subr.mxu0 0.0
        %1649 = vmatpush2.msra.mxu0 0.0
        %1650 = vmatprep.subr.mxu0 0.0
        %1651 = vmatpush2.msra.mxu0 0.0
        %1652 = vmatprep.mubr.f32.mxu0 0.0
        %1653 = vmatmul.mubr.f32.gmra.mxu0 %v1586
        %v1654 = vpop.f32.mrf.mxu0
        %v1655 = vadd.f32 0.0, %v1654
        %v1656 = vpop.f32.mrf.mxu0
        %1657 = vdwg.mxu0
        %v1658 = vadd.f32 %v1577, %v1655
        %v1659 = vadd.f32 %v1423, %v1658
        %s1660 = scalar_lea.vmem %s8, 8
        %v1661 = vld [vmem:[%s1660] sm:$0xf]
        %s1662 = scalar_lea.vmem %s8, 20
        %v1663 = vld [vmem:[%s1662] sm:$0xf]
        %1664 = vrot.lane.b32.xlu0 %v1182, 121
        %v1665 = vpop.permute.xlu0 %1664
        %v1668 = vsel %vm1190, %v1663, 0
        %1670 = vmatprep.subr.mxu0 0.0
        %1671 = vmatpush1.msra.mxu0 0.0
        %1672 = vmatprep.subr.mxu0 0.0
        %1673 = vmatpush1.msra.mxu0 0.0
        %1674 = vmatprep.subr.mxu0 0.0
        %1675 = vmatpush1.msra.mxu0 0.0
        %1676 = vmatprep.subr.mxu0 0.0
        %1677 = vmatpush1.msra.mxu0 0.0
        %1678 = vmatprep.subr.mxu0 0.0
        %1679 = vmatpush1.msra.mxu0 0.0
        %1680 = vmatprep.subr.mxu0 0.0
        %1681 = vmatpush1.msra.mxu0 0.0
        %1682 = vmatprep.subr.mxu0 0.0
        %1683 = vmatpush1.msra.mxu0 0.0
        %1684 = vmatprep.subr.mxu0 0.0
        %1685 = vmatpush1.msra.mxu0 0.0
        %1686 = vmatprep.subr.mxu0 0.0
        %1687 = vmatpush1.msra.mxu0 0.0
        %1688 = vmatprep.subr.mxu0 0.0
        %1689 = vmatpush1.msra.mxu0 0.0
        %1690 = vmatprep.subr.mxu0 0.0
        %1691 = vmatpush1.msra.mxu0 0.0
        %1692 = vmatprep.subr.mxu0 0.0
        %1693 = vmatpush1.msra.mxu0 0.0
        %1694 = vmatprep.subr.mxu0 0.0
        %1695 = vmatpush1.msra.mxu0 0.0
        %1696 = vmatprep.subr.mxu0 0.0
        %1697 = vmatpush1.msra.mxu0 0.0
        %1698 = vmatprep.subr.mxu0 0.0
        %1699 = vmatpush1.msra.mxu0 0.0
        %1700 = vmatprep.subr.mxu0 0.0
        %1701 = vmatpush1.msra.mxu0 %v1665
        %1702 = vmatprep.subr.mxu0 0.0
        %1703 = vmatpush2.msra.mxu0 0.0
        %1704 = vmatprep.subr.mxu0 0.0
        %1705 = vmatpush2.msra.mxu0 0.0
        %1706 = vmatprep.subr.mxu0 0.0
        %1707 = vmatpush2.msra.mxu0 0.0
        %1708 = vmatprep.subr.mxu0 0.0
        %1709 = vmatpush2.msra.mxu0 0.0
        %1710 = vmatprep.subr.mxu0 0.0
        %1711 = vmatpush2.msra.mxu0 0.0
        %1712 = vmatprep.subr.mxu0 0.0
        %1713 = vmatpush2.msra.mxu0 0.0
        %1714 = vmatprep.subr.mxu0 0.0
        %1715 = vmatpush2.msra.mxu0 0.0
        %1716 = vmatprep.subr.mxu0 0.0
        %1717 = vmatpush2.msra.mxu0 0.0
        %1718 = vmatprep.subr.mxu0 0.0
        %1719 = vmatpush2.msra.mxu0 0.0
        %1720 = vmatprep.subr.mxu0 0.0
        %1721 = vmatpush2.msra.mxu0 0.0
        %1722 = vmatprep.subr.mxu0 0.0
        %1723 = vmatpush2.msra.mxu0 0.0
        %1724 = vmatprep.subr.mxu0 0.0
        %1725 = vmatpush2.msra.mxu0 0.0
        %1726 = vmatprep.subr.mxu0 0.0
        %1727 = vmatpush2.msra.mxu0 0.0
        %1728 = vmatprep.subr.mxu0 0.0
        %1729 = vmatpush2.msra.mxu0 0.0
        %1730 = vmatprep.subr.mxu0 0.0
        %1731 = vmatpush2.msra.mxu0 0.0
        %1732 = vmatprep.subr.mxu0 0.0
        %1733 = vmatpush2.msra.mxu0 0.0
        %1734 = vmatprep.mubr.f32.mxu0 0.0
        %1735 = vmatmul.mubr.f32.gmra.mxu0 %v1668
        %v1736 = vpop.f32.mrf.mxu0
        %v1737 = vadd.f32 0.0, %v1736
        %v1738 = vpop.f32.mrf.mxu0
        %1739 = vdwg.mxu0
        %1740 = vrot.lane.b32.xlu0 %v1182, 126
        %v1741 = vpop.permute.xlu0 %1740
        %v1744 = vsel %vm1190, %v1661, 0
        %1746 = vmatprep.subr.mxu0 0.0
        %1747 = vmatpush1.msra.mxu0 0.0
        %1748 = vmatprep.subr.mxu0 0.0
        %1749 = vmatpush1.msra.mxu0 0.0
        %1750 = vmatprep.subr.mxu0 0.0
        %1751 = vmatpush1.msra.mxu0 0.0
        %1752 = vmatprep.subr.mxu0 0.0
        %1753 = vmatpush1.msra.mxu0 0.0
        %1754 = vmatprep.subr.mxu0 0.0
        %1755 = vmatpush1.msra.mxu0 0.0
        %1756 = vmatprep.subr.mxu0 0.0
        %1757 = vmatpush1.msra.mxu0 0.0
        %1758 = vmatprep.subr.mxu0 0.0
        %1759 = vmatpush1.msra.mxu0 0.0
        %1760 = vmatprep.subr.mxu0 0.0
        %1761 = vmatpush1.msra.mxu0 0.0
        %1762 = vmatprep.subr.mxu0 0.0
        %1763 = vmatpush1.msra.mxu0 0.0
        %1764 = vmatprep.subr.mxu0 0.0
        %1765 = vmatpush1.msra.mxu0 0.0
        %1766 = vmatprep.subr.mxu0 0.0
        %1767 = vmatpush1.msra.mxu0 0.0
        %1768 = vmatprep.subr.mxu0 0.0
        %1769 = vmatpush1.msra.mxu0 0.0
        %1770 = vmatprep.subr.mxu0 0.0
        %1771 = vmatpush1.msra.mxu0 0.0
        %1772 = vmatprep.subr.mxu0 0.0
        %1773 = vmatpush1.msra.mxu0 0.0
        %1774 = vmatprep.subr.mxu0 0.0
        %1775 = vmatpush1.msra.mxu0 0.0
        %1776 = vmatprep.subr.mxu0 0.0
        %1777 = vmatpush1.msra.mxu0 %v1741
        %1778 = vmatprep.subr.mxu0 0.0
        %1779 = vmatpush2.msra.mxu0 0.0
        %1780 = vmatprep.subr.mxu0 0.0
        %1781 = vmatpush2.msra.mxu0 0.0
        %1782 = vmatprep.subr.mxu0 0.0
        %1783 = vmatpush2.msra.mxu0 0.0
        %1784 = vmatprep.subr.mxu0 0.0
        %1785 = vmatpush2.msra.mxu0 0.0
        %1786 = vmatprep.subr.mxu0 0.0
        %1787 = vmatpush2.msra.mxu0 0.0
        %1788 = vmatprep.subr.mxu0 0.0
        %1789 = vmatpush2.msra.mxu0 0.0
        %1790 = vmatprep.subr.mxu0 0.0
        %1791 = vmatpush2.msra.mxu0 0.0
        %1792 = vmatprep.subr.mxu0 0.0
        %1793 = vmatpush2.msra.mxu0 0.0
        %1794 = vmatprep.subr.mxu0 0.0
        %1795 = vmatpush2.msra.mxu0 0.0
        %1796 = vmatprep.subr.mxu0 0.0
        %1797 = vmatpush2.msra.mxu0 0.0
        %1798 = vmatprep.subr.mxu0 0.0
        %1799 = vmatpush2.msra.mxu0 0.0
        %1800 = vmatprep.subr.mxu0 0.0
        %1801 = vmatpush2.msra.mxu0 0.0
        %1802 = vmatprep.subr.mxu0 0.0
        %1803 = vmatpush2.msra.mxu0 0.0
        %1804 = vmatprep.subr.mxu0 0.0
        %1805 = vmatpush2.msra.mxu0 0.0
        %1806 = vmatprep.subr.mxu0 0.0
        %1807 = vmatpush2.msra.mxu0 0.0
        %1808 = vmatprep.subr.mxu0 0.0
        %1809 = vmatpush2.msra.mxu0 0.0
        %1810 = vmatprep.mubr.f32.mxu0 0.0
        %1811 = vmatmul.mubr.f32.gmra.mxu0 %v1744
        %v1812 = vpop.f32.mrf.mxu0
        %v1813 = vadd.f32 %v1737, %v1812
        %v1814 = vpop.f32.mrf.mxu0
        %1815 = vdwg.mxu0
        %s1816 = scalar_lea.vmem %s8, 32
        %v1817 = vld [vmem:[%s1816] sm:$0xf]
        %1818 = vrot.lane.b32.xlu0 %v1182, 116
        %v1819 = vpop.permute.xlu0 %1818
        %v1822 = vsel %vm1190, %v1817, 0
        %1824 = vmatprep.subr.mxu0 0.0
        %1825 = vmatpush1.msra.mxu0 0.0
        %1826 = vmatprep.subr.mxu0 0.0
        %1827 = vmatpush1.msra.mxu0 0.0
        %1828 = vmatprep.subr.mxu0 0.0
        %1829 = vmatpush1.msra.mxu0 0.0
        %1830 = vmatprep.subr.mxu0 0.0
        %1831 = vmatpush1.msra.mxu0 0.0
        %1832 = vmatprep.subr.mxu0 0.0
        %1833 = vmatpush1.msra.mxu0 0.0
        %1834 = vmatprep.subr.mxu0 0.0
        %1835 = vmatpush1.msra.mxu0 0.0
        %1836 = vmatprep.subr.mxu0 0.0
        %1837 = vmatpush1.msra.mxu0 0.0
        %1838 = vmatprep.subr.mxu0 0.0
        %1839 = vmatpush1.msra.mxu0 0.0
        %1840 = vmatprep.subr.mxu0 0.0
        %1841 = vmatpush1.msra.mxu0 0.0
        %1842 = vmatprep.subr.mxu0 0.0
        %1843 = vmatpush1.msra.mxu0 0.0
        %1844 = vmatprep.subr.mxu0 0.0
        %1845 = vmatpush1.msra.mxu0 0.0
        %1846 = vmatprep.subr.mxu0 0.0
        %1847 = vmatpush1.msra.mxu0 0.0
        %1848 = vmatprep.subr.mxu0 0.0
        %1849 = vmatpush1.msra.mxu0 0.0
        %1850 = vmatprep.subr.mxu0 0.0
        %1851 = vmatpush1.msra.mxu0 0.0
        %1852 = vmatprep.subr.mxu0 0.0
        %1853 = vmatpush1.msra.mxu0 0.0
        %1854 = vmatprep.subr.mxu0 0.0
        %1855 = vmatpush1.msra.mxu0 %v1819
        %1856 = vmatprep.subr.mxu0 0.0
        %1857 = vmatpush2.msra.mxu0 0.0
        %1858 = vmatprep.subr.mxu0 0.0
        %1859 = vmatpush2.msra.mxu0 0.0
        %1860 = vmatprep.subr.mxu0 0.0
        %1861 = vmatpush2.msra.mxu0 0.0
        %1862 = vmatprep.subr.mxu0 0.0
        %1863 = vmatpush2.msra.mxu0 0.0
        %1864 = vmatprep.subr.mxu0 0.0
        %1865 = vmatpush2.msra.mxu0 0.0
        %1866 = vmatprep.subr.mxu0 0.0
        %1867 = vmatpush2.msra.mxu0 0.0
        %1868 = vmatprep.subr.mxu0 0.0
        %1869 = vmatpush2.msra.mxu0 0.0
        %1870 = vmatprep.subr.mxu0 0.0
        %1871 = vmatpush2.msra.mxu0 0.0
        %1872 = vmatprep.subr.mxu0 0.0
        %1873 = vmatpush2.msra.mxu0 0.0
        %1874 = vmatprep.subr.mxu0 0.0
        %1875 = vmatpush2.msra.mxu0 0.0
        %1876 = vmatprep.subr.mxu0 0.0
        %1877 = vmatpush2.msra.mxu0 0.0
        %1878 = vmatprep.subr.mxu0 0.0
        %1879 = vmatpush2.msra.mxu0 0.0
        %1880 = vmatprep.subr.mxu0 0.0
        %1881 = vmatpush2.msra.mxu0 0.0
        %1882 = vmatprep.subr.mxu0 0.0
        %1883 = vmatpush2.msra.mxu0 0.0
        %1884 = vmatprep.subr.mxu0 0.0
        %1885 = vmatpush2.msra.mxu0 0.0
        %1886 = vmatprep.subr.mxu0 0.0
        %1887 = vmatpush2.msra.mxu0 0.0
        %1888 = vmatprep.mubr.f32.mxu0 0.0
        %1889 = vmatmul.mubr.f32.gmra.mxu0 %v1822
        %v1890 = vpop.f32.mrf.mxu0
        %v1891 = vadd.f32 0.0, %v1890
        %v1892 = vpop.f32.mrf.mxu0
        %1893 = vdwg.mxu0
        %v1894 = vadd.f32 %v1813, %v1891
        %v1895 = vld [vmem:[%s1128] sm:$0x1]
        %v1897 = vlaneseq
        %v1898 = vshrl.u32 %v1897, 7
        %v1899 = vsub.s32 0, %v1898
        %v1900 = vrot.slane %v1895, %v1899
        %v1902 = vmul.f32 %v1894, %v1900
        %v1903 = vadd.f32 %v1659, %v1902
        %v1904 = vld [vmem:[%s9] sm:$0xf]
        %1906 = vset.pattern.permute.xlu0 0
        %1907 = vperm.xlu0 %1906, %v1904
        %v1908 = vpop.permute.xlu0 %1907
        %v1910 = vadd.f32 %v1903, %v1908
        %v1911 = vld [vmem:[%s402] sm:$0x1]
        %v1913 = vlaneseq
        %v1914 = vshrl.u32 %v1913, 7
        %v1915 = vsub.s32 0, %v1914
        %v1916 = vrot.slane %v1911, %v1915
        %1917 = vset.pattern.permute.xlu0 0
        %1918 = vperm.xlu0 %1917, %v1916
        %v1919 = vpop.permute.xlu0 %1918
        %v1921 = vmul.f32 %v1919, %v1910
        %v1922 = vadd.f32 %v403, %v1921
        %v1923 = vld [vmem:[%s395] sm:$0xf]
        %v1924 = vld [vmem:[%s6] sm:$0xff]
        %v1925 = vld [vmem:[%s406] sm:$0xff]
        %1927 = vrot.lane.b32.xlu0 %v1923, 125
        %v1928 = vpop.permute.xlu0 %1927
        %v1930 = vsel %vm411, %v1925, 0
        %v1932 = vsel %vm415, %v1928, 0
        %1934 = vmatprep.subr.mxu0 0.0
        %1935 = vmatpush1.msra.mxu0 0.0
        %1936 = vmatprep.subr.mxu0 0.0
        %1937 = vmatpush1.msra.mxu0 0.0
        %1938 = vmatprep.subr.mxu0 0.0
        %1939 = vmatpush1.msra.mxu0 0.0
        %1940 = vmatprep.subr.mxu0 0.0
        %1941 = vmatpush1.msra.mxu0 0.0
        %1942 = vmatprep.subr.mxu0 0.0
        %1943 = vmatpush1.msra.mxu0 0.0
        %1944 = vmatprep.subr.mxu0 0.0
        %1945 = vmatpush1.msra.mxu0 0.0
        %1946 = vmatprep.subr.mxu0 0.0
        %1947 = vmatpush1.msra.mxu0 0.0
        %1948 = vmatprep.subr.mxu0 0.0
        %1949 = vmatpush1.msra.mxu0 0.0
        %1950 = vmatprep.subr.mxu0 0.0
        %1951 = vmatpush1.msra.mxu0 0.0
        %1952 = vmatprep.subr.mxu0 0.0
        %1953 = vmatpush1.msra.mxu0 0.0
        %1954 = vmatprep.subr.mxu0 0.0
        %1955 = vmatpush1.msra.mxu0 0.0
        %1956 = vmatprep.subr.mxu0 0.0
        %1957 = vmatpush1.msra.mxu0 0.0
        %1958 = vmatprep.subr.mxu0 0.0
        %1959 = vmatpush1.msra.mxu0 0.0
        %1960 = vmatprep.subr.mxu0 0.0
        %1961 = vmatpush1.msra.mxu0 0.0
        %1962 = vmatprep.subr.mxu0 0.0
        %1963 = vmatpush1.msra.mxu0 0.0
        %1964 = vmatprep.subr.mxu0 0.0
        %1965 = vmatpush1.msra.mxu0 %v1932
        %1966 = vmatprep.subr.mxu0 0.0
        %1967 = vmatpush2.msra.mxu0 0.0
        %1968 = vmatprep.subr.mxu0 0.0
        %1969 = vmatpush2.msra.mxu0 0.0
        %1970 = vmatprep.subr.mxu0 0.0
        %1971 = vmatpush2.msra.mxu0 0.0
        %1972 = vmatprep.subr.mxu0 0.0
        %1973 = vmatpush2.msra.mxu0 0.0
        %1974 = vmatprep.subr.mxu0 0.0
        %1975 = vmatpush2.msra.mxu0 0.0
        %1976 = vmatprep.subr.mxu0 0.0
        %1977 = vmatpush2.msra.mxu0 0.0
        %1978 = vmatprep.subr.mxu0 0.0
        %1979 = vmatpush2.msra.mxu0 0.0
        %1980 = vmatprep.subr.mxu0 0.0
        %1981 = vmatpush2.msra.mxu0 0.0
        %1982 = vmatprep.subr.mxu0 0.0
        %1983 = vmatpush2.msra.mxu0 0.0
        %1984 = vmatprep.subr.mxu0 0.0
        %1985 = vmatpush2.msra.mxu0 0.0
        %1986 = vmatprep.subr.mxu0 0.0
        %1987 = vmatpush2.msra.mxu0 0.0
        %1988 = vmatprep.subr.mxu0 0.0
        %1989 = vmatpush2.msra.mxu0 0.0
        %1990 = vmatprep.subr.mxu0 0.0
        %1991 = vmatpush2.msra.mxu0 0.0
        %1992 = vmatprep.subr.mxu0 0.0
        %1993 = vmatpush2.msra.mxu0 0.0
        %1994 = vmatprep.subr.mxu0 0.0
        %1995 = vmatpush2.msra.mxu0 0.0
        %1996 = vmatprep.subr.mxu0 0.0
        %1997 = vmatpush2.msra.mxu0 0.0
        %1998 = vmatprep.mubr.f32.mxu0 0.0
        %1999 = vmatmul.mubr.f32.gmra.mxu0 %v1930
        %v2000 = vpop.f32.mrf.mxu0
        %v2001 = vadd.f32 0.0, %v2000
        %v2002 = vpop.f32.mrf.mxu0
        %2003 = vdwg.mxu0
        %v2005 = vsel %vm411, %v1924, 0
        %v2007 = vsel %vm415, %v1923, 0
        %2009 = vmatprep.subr.mxu0 0.0
        %2010 = vmatpush1.msra.mxu0 0.0
        %2011 = vmatprep.subr.mxu0 0.0
        %2012 = vmatpush1.msra.mxu0 0.0
        %2013 = vmatprep.subr.mxu0 0.0
        %2014 = vmatpush1.msra.mxu0 0.0
        %2015 = vmatprep.subr.mxu0 0.0
        %2016 = vmatpush1.msra.mxu0 0.0
        %2017 = vmatprep.subr.mxu0 0.0
        %2018 = vmatpush1.msra.mxu0 0.0
        %2019 = vmatprep.subr.mxu0 0.0
        %2020 = vmatpush1.msra.mxu0 0.0
        %2021 = vmatprep.subr.mxu0 0.0
        %2022 = vmatpush1.msra.mxu0 0.0
        %2023 = vmatprep.subr.mxu0 0.0
        %2024 = vmatpush1.msra.mxu0 0.0
        %2025 = vmatprep.subr.mxu0 0.0
        %2026 = vmatpush1.msra.mxu0 0.0
        %2027 = vmatprep.subr.mxu0 0.0
        %2028 = vmatpush1.msra.mxu0 0.0
        %2029 = vmatprep.subr.mxu0 0.0
        %2030 = vmatpush1.msra.mxu0 0.0
        %2031 = vmatprep.subr.mxu0 0.0
        %2032 = vmatpush1.msra.mxu0 0.0
        %2033 = vmatprep.subr.mxu0 0.0
        %2034 = vmatpush1.msra.mxu0 0.0
        %2035 = vmatprep.subr.mxu0 0.0
        %2036 = vmatpush1.msra.mxu0 0.0
        %2037 = vmatprep.subr.mxu0 0.0
        %2038 = vmatpush1.msra.mxu0 0.0
        %2039 = vmatprep.subr.mxu0 0.0
        %2040 = vmatpush1.msra.mxu0 %v2007
        %2041 = vmatprep.subr.mxu0 0.0
        %2042 = vmatpush2.msra.mxu0 0.0
        %2043 = vmatprep.subr.mxu0 0.0
        %2044 = vmatpush2.msra.mxu0 0.0
        %2045 = vmatprep.subr.mxu0 0.0
        %2046 = vmatpush2.msra.mxu0 0.0
        %2047 = vmatprep.subr.mxu0 0.0
        %2048 = vmatpush2.msra.mxu0 0.0
        %2049 = vmatprep.subr.mxu0 0.0
        %2050 = vmatpush2.msra.mxu0 0.0
        %2051 = vmatprep.subr.mxu0 0.0
        %2052 = vmatpush2.msra.mxu0 0.0
        %2053 = vmatprep.subr.mxu0 0.0
        %2054 = vmatpush2.msra.mxu0 0.0
        %2055 = vmatprep.subr.mxu0 0.0
        %2056 = vmatpush2.msra.mxu0 0.0
        %2057 = vmatprep.subr.mxu0 0.0
        %2058 = vmatpush2.msra.mxu0 0.0
        %2059 = vmatprep.subr.mxu0 0.0
        %2060 = vmatpush2.msra.mxu0 0.0
        %2061 = vmatprep.subr.mxu0 0.0
        %2062 = vmatpush2.msra.mxu0 0.0
        %2063 = vmatprep.subr.mxu0 0.0
        %2064 = vmatpush2.msra.mxu0 0.0
        %2065 = vmatprep.subr.mxu0 0.0
        %2066 = vmatpush2.msra.mxu0 0.0
        %2067 = vmatprep.subr.mxu0 0.0
        %2068 = vmatpush2.msra.mxu0 0.0
        %2069 = vmatprep.subr.mxu0 0.0
        %2070 = vmatpush2.msra.mxu0 0.0
        %2071 = vmatprep.subr.mxu0 0.0
        %2072 = vmatpush2.msra.mxu0 0.0
        %2073 = vmatprep.mubr.f32.mxu0 0.0
        %2074 = vmatmul.mubr.f32.gmra.mxu0 %v2005
        %v2075 = vpop.f32.mrf.mxu0
        %v2076 = vadd.f32 %v2001, %v2075
        %v2077 = vpop.f32.mrf.mxu0
        %2078 = vdwg.mxu0
        %v2079 = vld [vmem:[%s563] sm:$0xff]
        %2080 = vrot.lane.b32.xlu0 %v1923, 122
        %v2081 = vpop.permute.xlu0 %2080
        %v2083 = vsel %vm411, %v2079, 0
        %v2085 = vsel %vm415, %v2081, 0
        %2087 = vmatprep.subr.mxu0 0.0
        %2088 = vmatpush1.msra.mxu0 0.0
        %2089 = vmatprep.subr.mxu0 0.0
        %2090 = vmatpush1.msra.mxu0 0.0
        %2091 = vmatprep.subr.mxu0 0.0
        %2092 = vmatpush1.msra.mxu0 0.0
        %2093 = vmatprep.subr.mxu0 0.0
        %2094 = vmatpush1.msra.mxu0 0.0
        %2095 = vmatprep.subr.mxu0 0.0
        %2096 = vmatpush1.msra.mxu0 0.0
        %2097 = vmatprep.subr.mxu0 0.0
        %2098 = vmatpush1.msra.mxu0 0.0
        %2099 = vmatprep.subr.mxu0 0.0
        %2100 = vmatpush1.msra.mxu0 0.0
        %2101 = vmatprep.subr.mxu0 0.0
        %2102 = vmatpush1.msra.mxu0 0.0
        %2103 = vmatprep.subr.mxu0 0.0
        %2104 = vmatpush1.msra.mxu0 0.0
        %2105 = vmatprep.subr.mxu0 0.0
        %2106 = vmatpush1.msra.mxu0 0.0
        %2107 = vmatprep.subr.mxu0 0.0
        %2108 = vmatpush1.msra.mxu0 0.0
        %2109 = vmatprep.subr.mxu0 0.0
        %2110 = vmatpush1.msra.mxu0 0.0
        %2111 = vmatprep.subr.mxu0 0.0
        %2112 = vmatpush1.msra.mxu0 0.0
        %2113 = vmatprep.subr.mxu0 0.0
        %2114 = vmatpush1.msra.mxu0 0.0
        %2115 = vmatprep.subr.mxu0 0.0
        %2116 = vmatpush1.msra.mxu0 0.0
        %2117 = vmatprep.subr.mxu0 0.0
        %2118 = vmatpush1.msra.mxu0 %v2085
        %2119 = vmatprep.subr.mxu0 0.0
        %2120 = vmatpush2.msra.mxu0 0.0
        %2121 = vmatprep.subr.mxu0 0.0
        %2122 = vmatpush2.msra.mxu0 0.0
        %2123 = vmatprep.subr.mxu0 0.0
        %2124 = vmatpush2.msra.mxu0 0.0
        %2125 = vmatprep.subr.mxu0 0.0
        %2126 = vmatpush2.msra.mxu0 0.0
        %2127 = vmatprep.subr.mxu0 0.0
        %2128 = vmatpush2.msra.mxu0 0.0
        %2129 = vmatprep.subr.mxu0 0.0
        %2130 = vmatpush2.msra.mxu0 0.0
        %2131 = vmatprep.subr.mxu0 0.0
        %2132 = vmatpush2.msra.mxu0 0.0
        %2133 = vmatprep.subr.mxu0 0.0
        %2134 = vmatpush2.msra.mxu0 0.0
        %2135 = vmatprep.subr.mxu0 0.0
        %2136 = vmatpush2.msra.mxu0 0.0
        %2137 = vmatprep.subr.mxu0 0.0
        %2138 = vmatpush2.msra.mxu0 0.0
        %2139 = vmatprep.subr.mxu0 0.0
        %2140 = vmatpush2.msra.mxu0 0.0
        %2141 = vmatprep.subr.mxu0 0.0
        %2142 = vmatpush2.msra.mxu0 0.0
        %2143 = vmatprep.subr.mxu0 0.0
        %2144 = vmatpush2.msra.mxu0 0.0
        %2145 = vmatprep.subr.mxu0 0.0
        %2146 = vmatpush2.msra.mxu0 0.0
        %2147 = vmatprep.subr.mxu0 0.0
        %2148 = vmatpush2.msra.mxu0 0.0
        %2149 = vmatprep.subr.mxu0 0.0
        %2150 = vmatpush2.msra.mxu0 0.0
        %2151 = vmatprep.mubr.f32.mxu0 0.0
        %2152 = vmatmul.mubr.f32.gmra.mxu0 %v2083
        %v2153 = vpop.f32.mrf.mxu0
        %v2154 = vadd.f32 0.0, %v2153
        %v2155 = vpop.f32.mrf.mxu0
        %2156 = vdwg.mxu0
        %v2157 = vadd.f32 %v2076, %v2154
        %v2158 = vld [vmem:[%s3] sm:$0x1]
        %v2160 = vlaneseq
        %v2161 = vshrl.u32 %v2160, 7
        %v2162 = vsub.s32 0, %v2161
        %v2163 = vrot.slane %v2158, %v2162
        %v2165 = vmul.f32 %v2157, %v2163
        %v2166 = vld [vmem:[%s651] sm:$0xff]
        %v2167 = vld [vmem:[%s653] sm:$0xff]
        %2168 = vrot.lane.b32.xlu0 %v1923, 124
        %v2169 = vpop.permute.xlu0 %2168
        %v2171 = vsel %vm411, %v2167, 0
        %v2173 = vsel %vm415, %v2169, 0
        %2175 = vmatprep.subr.mxu0 0.0
        %2176 = vmatpush1.msra.mxu0 0.0
        %2177 = vmatprep.subr.mxu0 0.0
        %2178 = vmatpush1.msra.mxu0 0.0
        %2179 = vmatprep.subr.mxu0 0.0
        %2180 = vmatpush1.msra.mxu0 0.0
        %2181 = vmatprep.subr.mxu0 0.0
        %2182 = vmatpush1.msra.mxu0 0.0
        %2183 = vmatprep.subr.mxu0 0.0
        %2184 = vmatpush1.msra.mxu0 0.0
        %2185 = vmatprep.subr.mxu0 0.0
        %2186 = vmatpush1.msra.mxu0 0.0
        %2187 = vmatprep.subr.mxu0 0.0
        %2188 = vmatpush1.msra.mxu0 0.0
        %2189 = vmatprep.subr.mxu0 0.0
        %2190 = vmatpush1.msra.mxu0 0.0
        %2191 = vmatprep.subr.mxu0 0.0
        %2192 = vmatpush1.msra.mxu0 0.0
        %2193 = vmatprep.subr.mxu0 0.0
        %2194 = vmatpush1.msra.mxu0 0.0
        %2195 = vmatprep.subr.mxu0 0.0
        %2196 = vmatpush1.msra.mxu0 0.0
        %2197 = vmatprep.subr.mxu0 0.0
        %2198 = vmatpush1.msra.mxu0 0.0
        %2199 = vmatprep.subr.mxu0 0.0
        %2200 = vmatpush1.msra.mxu0 0.0
        %2201 = vmatprep.subr.mxu0 0.0
        %2202 = vmatpush1.msra.mxu0 0.0
        %2203 = vmatprep.subr.mxu0 0.0
        %2204 = vmatpush1.msra.mxu0 0.0
        %2205 = vmatprep.subr.mxu0 0.0
        %2206 = vmatpush1.msra.mxu0 %v2173
        %2207 = vmatprep.subr.mxu0 0.0
        %2208 = vmatpush2.msra.mxu0 0.0
        %2209 = vmatprep.subr.mxu0 0.0
        %2210 = vmatpush2.msra.mxu0 0.0
        %2211 = vmatprep.subr.mxu0 0.0
        %2212 = vmatpush2.msra.mxu0 0.0
        %2213 = vmatprep.subr.mxu0 0.0
        %2214 = vmatpush2.msra.mxu0 0.0
        %2215 = vmatprep.subr.mxu0 0.0
        %2216 = vmatpush2.msra.mxu0 0.0
        %2217 = vmatprep.subr.mxu0 0.0
        %2218 = vmatpush2.msra.mxu0 0.0
        %2219 = vmatprep.subr.mxu0 0.0
        %2220 = vmatpush2.msra.mxu0 0.0
        %2221 = vmatprep.subr.mxu0 0.0
        %2222 = vmatpush2.msra.mxu0 0.0
        %2223 = vmatprep.subr.mxu0 0.0
        %2224 = vmatpush2.msra.mxu0 0.0
        %2225 = vmatprep.subr.mxu0 0.0
        %2226 = vmatpush2.msra.mxu0 0.0
        %2227 = vmatprep.subr.mxu0 0.0
        %2228 = vmatpush2.msra.mxu0 0.0
        %2229 = vmatprep.subr.mxu0 0.0
        %2230 = vmatpush2.msra.mxu0 0.0
        %2231 = vmatprep.subr.mxu0 0.0
        %2232 = vmatpush2.msra.mxu0 0.0
        %2233 = vmatprep.subr.mxu0 0.0
        %2234 = vmatpush2.msra.mxu0 0.0
        %2235 = vmatprep.subr.mxu0 0.0
        %2236 = vmatpush2.msra.mxu0 0.0
        %2237 = vmatprep.subr.mxu0 0.0
        %2238 = vmatpush2.msra.mxu0 0.0
        %2239 = vmatprep.mubr.f32.mxu0 0.0
        %2240 = vmatmul.mubr.f32.gmra.mxu0 %v2171
        %v2241 = vpop.f32.mrf.mxu0
        %v2242 = vadd.f32 0.0, %v2241
        %v2243 = vpop.f32.mrf.mxu0
        %2244 = vdwg.mxu0
        %2245 = vrot.lane.b32.xlu0 %v1923, 127
        %v2246 = vpop.permute.xlu0 %2245
        %v2248 = vsel %vm411, %v2166, 0
        %v2250 = vsel %vm415, %v2246, 0
        %2252 = vmatprep.subr.mxu0 0.0
        %2253 = vmatpush1.msra.mxu0 0.0
        %2254 = vmatprep.subr.mxu0 0.0
        %2255 = vmatpush1.msra.mxu0 0.0
        %2256 = vmatprep.subr.mxu0 0.0
        %2257 = vmatpush1.msra.mxu0 0.0
        %2258 = vmatprep.subr.mxu0 0.0
        %2259 = vmatpush1.msra.mxu0 0.0
        %2260 = vmatprep.subr.mxu0 0.0
        %2261 = vmatpush1.msra.mxu0 0.0
        %2262 = vmatprep.subr.mxu0 0.0
        %2263 = vmatpush1.msra.mxu0 0.0
        %2264 = vmatprep.subr.mxu0 0.0
        %2265 = vmatpush1.msra.mxu0 0.0
        %2266 = vmatprep.subr.mxu0 0.0
        %2267 = vmatpush1.msra.mxu0 0.0
        %2268 = vmatprep.subr.mxu0 0.0
        %2269 = vmatpush1.msra.mxu0 0.0
        %2270 = vmatprep.subr.mxu0 0.0
        %2271 = vmatpush1.msra.mxu0 0.0
        %2272 = vmatprep.subr.mxu0 0.0
        %2273 = vmatpush1.msra.mxu0 0.0
        %2274 = vmatprep.subr.mxu0 0.0
        %2275 = vmatpush1.msra.mxu0 0.0
        %2276 = vmatprep.subr.mxu0 0.0
        %2277 = vmatpush1.msra.mxu0 0.0
        %2278 = vmatprep.subr.mxu0 0.0
        %2279 = vmatpush1.msra.mxu0 0.0
        %2280 = vmatprep.subr.mxu0 0.0
        %2281 = vmatpush1.msra.mxu0 0.0
        %2282 = vmatprep.subr.mxu0 0.0
        %2283 = vmatpush1.msra.mxu0 %v2250
        %2284 = vmatprep.subr.mxu0 0.0
        %2285 = vmatpush2.msra.mxu0 0.0
        %2286 = vmatprep.subr.mxu0 0.0
        %2287 = vmatpush2.msra.mxu0 0.0
        %2288 = vmatprep.subr.mxu0 0.0
        %2289 = vmatpush2.msra.mxu0 0.0
        %2290 = vmatprep.subr.mxu0 0.0
        %2291 = vmatpush2.msra.mxu0 0.0
        %2292 = vmatprep.subr.mxu0 0.0
        %2293 = vmatpush2.msra.mxu0 0.0
        %2294 = vmatprep.subr.mxu0 0.0
        %2295 = vmatpush2.msra.mxu0 0.0
        %2296 = vmatprep.subr.mxu0 0.0
        %2297 = vmatpush2.msra.mxu0 0.0
        %2298 = vmatprep.subr.mxu0 0.0
        %2299 = vmatpush2.msra.mxu0 0.0
        %2300 = vmatprep.subr.mxu0 0.0
        %2301 = vmatpush2.msra.mxu0 0.0
        %2302 = vmatprep.subr.mxu0 0.0
        %2303 = vmatpush2.msra.mxu0 0.0
        %2304 = vmatprep.subr.mxu0 0.0
        %2305 = vmatpush2.msra.mxu0 0.0
        %2306 = vmatprep.subr.mxu0 0.0
        %2307 = vmatpush2.msra.mxu0 0.0
        %2308 = vmatprep.subr.mxu0 0.0
        %2309 = vmatpush2.msra.mxu0 0.0
        %2310 = vmatprep.subr.mxu0 0.0
        %2311 = vmatpush2.msra.mxu0 0.0
        %2312 = vmatprep.subr.mxu0 0.0
        %2313 = vmatpush2.msra.mxu0 0.0
        %2314 = vmatprep.subr.mxu0 0.0
        %2315 = vmatpush2.msra.mxu0 0.0
        %2316 = vmatprep.mubr.f32.mxu0 0.0
        %2317 = vmatmul.mubr.f32.gmra.mxu0 %v2248
        %v2318 = vpop.f32.mrf.mxu0
        %v2319 = vadd.f32 %v2242, %v2318
        %v2320 = vpop.f32.mrf.mxu0
        %2321 = vdwg.mxu0
        %v2322 = vld [vmem:[%s809] sm:$0xff]
        %2323 = vrot.lane.b32.xlu0 %v1923, 121
        %v2324 = vpop.permute.xlu0 %2323
        %v2326 = vsel %vm411, %v2322, 0
        %v2328 = vsel %vm415, %v2324, 0
        %2330 = vmatprep.subr.mxu0 0.0
        %2331 = vmatpush1.msra.mxu0 0.0
        %2332 = vmatprep.subr.mxu0 0.0
        %2333 = vmatpush1.msra.mxu0 0.0
        %2334 = vmatprep.subr.mxu0 0.0
        %2335 = vmatpush1.msra.mxu0 0.0
        %2336 = vmatprep.subr.mxu0 0.0
        %2337 = vmatpush1.msra.mxu0 0.0
        %2338 = vmatprep.subr.mxu0 0.0
        %2339 = vmatpush1.msra.mxu0 0.0
        %2340 = vmatprep.subr.mxu0 0.0
        %2341 = vmatpush1.msra.mxu0 0.0
        %2342 = vmatprep.subr.mxu0 0.0
        %2343 = vmatpush1.msra.mxu0 0.0
        %2344 = vmatprep.subr.mxu0 0.0
        %2345 = vmatpush1.msra.mxu0 0.0
        %2346 = vmatprep.subr.mxu0 0.0
        %2347 = vmatpush1.msra.mxu0 0.0
        %2348 = vmatprep.subr.mxu0 0.0
        %2349 = vmatpush1.msra.mxu0 0.0
        %2350 = vmatprep.subr.mxu0 0.0
        %2351 = vmatpush1.msra.mxu0 0.0
        %2352 = vmatprep.subr.mxu0 0.0
        %2353 = vmatpush1.msra.mxu0 0.0
        %2354 = vmatprep.subr.mxu0 0.0
        %2355 = vmatpush1.msra.mxu0 0.0
        %2356 = vmatprep.subr.mxu0 0.0
        %2357 = vmatpush1.msra.mxu0 0.0
        %2358 = vmatprep.subr.mxu0 0.0
        %2359 = vmatpush1.msra.mxu0 0.0
        %2360 = vmatprep.subr.mxu0 0.0
        %2361 = vmatpush1.msra.mxu0 %v2328
        %2362 = vmatprep.subr.mxu0 0.0
        %2363 = vmatpush2.msra.mxu0 0.0
        %2364 = vmatprep.subr.mxu0 0.0
        %2365 = vmatpush2.msra.mxu0 0.0
        %2366 = vmatprep.subr.mxu0 0.0
        %2367 = vmatpush2.msra.mxu0 0.0
        %2368 = vmatprep.subr.mxu0 0.0
        %2369 = vmatpush2.msra.mxu0 0.0
        %2370 = vmatprep.subr.mxu0 0.0
        %2371 = vmatpush2.msra.mxu0 0.0
        %2372 = vmatprep.subr.mxu0 0.0
        %2373 = vmatpush2.msra.mxu0 0.0
        %2374 = vmatprep.subr.mxu0 0.0
        %2375 = vmatpush2.msra.mxu0 0.0
        %2376 = vmatprep.subr.mxu0 0.0
        %2377 = vmatpush2.msra.mxu0 0.0
        %2378 = vmatprep.subr.mxu0 0.0
        %2379 = vmatpush2.msra.mxu0 0.0
        %2380 = vmatprep.subr.mxu0 0.0
        %2381 = vmatpush2.msra.mxu0 0.0
        %2382 = vmatprep.subr.mxu0 0.0
        %2383 = vmatpush2.msra.mxu0 0.0
        %2384 = vmatprep.subr.mxu0 0.0
        %2385 = vmatpush2.msra.mxu0 0.0
        %2386 = vmatprep.subr.mxu0 0.0
        %2387 = vmatpush2.msra.mxu0 0.0
        %2388 = vmatprep.subr.mxu0 0.0
        %2389 = vmatpush2.msra.mxu0 0.0
        %2390 = vmatprep.subr.mxu0 0.0
        %2391 = vmatpush2.msra.mxu0 0.0
        %2392 = vmatprep.subr.mxu0 0.0
        %2393 = vmatpush2.msra.mxu0 0.0
        %2394 = vmatprep.mubr.f32.mxu0 0.0
        %2395 = vmatmul.mubr.f32.gmra.mxu0 %v2326
        %v2396 = vpop.f32.mrf.mxu0
        %v2397 = vadd.f32 0.0, %v2396
        %v2398 = vpop.f32.mrf.mxu0
        %2399 = vdwg.mxu0
        %v2400 = vadd.f32 %v2319, %v2397
        %v2401 = vadd.f32 %v2165, %v2400
        %v2402 = vld [vmem:[%s890] sm:$0xff]
        %v2403 = vld [vmem:[%s892] sm:$0xff]
        %2404 = vrot.lane.b32.xlu0 %v1923, 123
        %v2405 = vpop.permute.xlu0 %2404
        %v2407 = vsel %vm411, %v2403, 0
        %v2409 = vsel %vm415, %v2405, 0
        %2411 = vmatprep.subr.mxu0 0.0
        %2412 = vmatpush1.msra.mxu0 0.0
        %2413 = vmatprep.subr.mxu0 0.0
        %2414 = vmatpush1.msra.mxu0 0.0
        %2415 = vmatprep.subr.mxu0 0.0
        %2416 = vmatpush1.msra.mxu0 0.0
        %2417 = vmatprep.subr.mxu0 0.0
        %2418 = vmatpush1.msra.mxu0 0.0
        %2419 = vmatprep.subr.mxu0 0.0
        %2420 = vmatpush1.msra.mxu0 0.0
        %2421 = vmatprep.subr.mxu0 0.0
        %2422 = vmatpush1.msra.mxu0 0.0
        %2423 = vmatprep.subr.mxu0 0.0
        %2424 = vmatpush1.msra.mxu0 0.0
        %2425 = vmatprep.subr.mxu0 0.0
        %2426 = vmatpush1.msra.mxu0 0.0
        %2427 = vmatprep.subr.mxu0 0.0
        %2428 = vmatpush1.msra.mxu0 0.0
        %2429 = vmatprep.subr.mxu0 0.0
        %2430 = vmatpush1.msra.mxu0 0.0
        %2431 = vmatprep.subr.mxu0 0.0
        %2432 = vmatpush1.msra.mxu0 0.0
        %2433 = vmatprep.subr.mxu0 0.0
        %2434 = vmatpush1.msra.mxu0 0.0
        %2435 = vmatprep.subr.mxu0 0.0
        %2436 = vmatpush1.msra.mxu0 0.0
        %2437 = vmatprep.subr.mxu0 0.0
        %2438 = vmatpush1.msra.mxu0 0.0
        %2439 = vmatprep.subr.mxu0 0.0
        %2440 = vmatpush1.msra.mxu0 0.0
        %2441 = vmatprep.subr.mxu0 0.0
        %2442 = vmatpush1.msra.mxu0 %v2409
        %2443 = vmatprep.subr.mxu0 0.0
        %2444 = vmatpush2.msra.mxu0 0.0
        %2445 = vmatprep.subr.mxu0 0.0
        %2446 = vmatpush2.msra.mxu0 0.0
        %2447 = vmatprep.subr.mxu0 0.0
        %2448 = vmatpush2.msra.mxu0 0.0
        %2449 = vmatprep.subr.mxu0 0.0
        %2450 = vmatpush2.msra.mxu0 0.0
        %2451 = vmatprep.subr.mxu0 0.0
        %2452 = vmatpush2.msra.mxu0 0.0
        %2453 = vmatprep.subr.mxu0 0.0
        %2454 = vmatpush2.msra.mxu0 0.0
        %2455 = vmatprep.subr.mxu0 0.0
        %2456 = vmatpush2.msra.mxu0 0.0
        %2457 = vmatprep.subr.mxu0 0.0
        %2458 = vmatpush2.msra.mxu0 0.0
        %2459 = vmatprep.subr.mxu0 0.0
        %2460 = vmatpush2.msra.mxu0 0.0
        %2461 = vmatprep.subr.mxu0 0.0
        %2462 = vmatpush2.msra.mxu0 0.0
        %2463 = vmatprep.subr.mxu0 0.0
        %2464 = vmatpush2.msra.mxu0 0.0
        %2465 = vmatprep.subr.mxu0 0.0
        %2466 = vmatpush2.msra.mxu0 0.0
        %2467 = vmatprep.subr.mxu0 0.0
        %2468 = vmatpush2.msra.mxu0 0.0
        %2469 = vmatprep.subr.mxu0 0.0
        %2470 = vmatpush2.msra.mxu0 0.0
        %2471 = vmatprep.subr.mxu0 0.0
        %2472 = vmatpush2.msra.mxu0 0.0
        %2473 = vmatprep.subr.mxu0 0.0
        %2474 = vmatpush2.msra.mxu0 0.0
        %2475 = vmatprep.mubr.f32.mxu0 0.0
        %2476 = vmatmul.mubr.f32.gmra.mxu0 %v2407
        %v2477 = vpop.f32.mrf.mxu0
        %v2478 = vadd.f32 0.0, %v2477
        %v2479 = vpop.f32.mrf.mxu0
        %2480 = vdwg.mxu0
        %2481 = vrot.lane.b32.xlu0 %v1923, 126
        %v2482 = vpop.permute.xlu0 %2481
        %v2484 = vsel %vm411, %v2402, 0
        %v2486 = vsel %vm415, %v2482, 0
        %2488 = vmatprep.subr.mxu0 0.0
        %2489 = vmatpush1.msra.mxu0 0.0
        %2490 = vmatprep.subr.mxu0 0.0
        %2491 = vmatpush1.msra.mxu0 0.0
        %2492 = vmatprep.subr.mxu0 0.0
        %2493 = vmatpush1.msra.mxu0 0.0
        %2494 = vmatprep.subr.mxu0 0.0
        %2495 = vmatpush1.msra.mxu0 0.0
        %2496 = vmatprep.subr.mxu0 0.0
        %2497 = vmatpush1.msra.mxu0 0.0
        %2498 = vmatprep.subr.mxu0 0.0
        %2499 = vmatpush1.msra.mxu0 0.0
        %2500 = vmatprep.subr.mxu0 0.0
        %2501 = vmatpush1.msra.mxu0 0.0
        %2502 = vmatprep.subr.mxu0 0.0
        %2503 = vmatpush1.msra.mxu0 0.0
        %2504 = vmatprep.subr.mxu0 0.0
        %2505 = vmatpush1.msra.mxu0 0.0
        %2506 = vmatprep.subr.mxu0 0.0
        %2507 = vmatpush1.msra.mxu0 0.0
        %2508 = vmatprep.subr.mxu0 0.0
        %2509 = vmatpush1.msra.mxu0 0.0
        %2510 = vmatprep.subr.mxu0 0.0
        %2511 = vmatpush1.msra.mxu0 0.0
        %2512 = vmatprep.subr.mxu0 0.0
        %2513 = vmatpush1.msra.mxu0 0.0
        %2514 = vmatprep.subr.mxu0 0.0
        %2515 = vmatpush1.msra.mxu0 0.0
        %2516 = vmatprep.subr.mxu0 0.0
        %2517 = vmatpush1.msra.mxu0 0.0
        %2518 = vmatprep.subr.mxu0 0.0
        %2519 = vmatpush1.msra.mxu0 %v2486
        %2520 = vmatprep.subr.mxu0 0.0
        %2521 = vmatpush2.msra.mxu0 0.0
        %2522 = vmatprep.subr.mxu0 0.0
        %2523 = vmatpush2.msra.mxu0 0.0
        %2524 = vmatprep.subr.mxu0 0.0
        %2525 = vmatpush2.msra.mxu0 0.0
        %2526 = vmatprep.subr.mxu0 0.0
        %2527 = vmatpush2.msra.mxu0 0.0
        %2528 = vmatprep.subr.mxu0 0.0
        %2529 = vmatpush2.msra.mxu0 0.0
        %2530 = vmatprep.subr.mxu0 0.0
        %2531 = vmatpush2.msra.mxu0 0.0
        %2532 = vmatprep.subr.mxu0 0.0
        %2533 = vmatpush2.msra.mxu0 0.0
        %2534 = vmatprep.subr.mxu0 0.0
        %2535 = vmatpush2.msra.mxu0 0.0
        %2536 = vmatprep.subr.mxu0 0.0
        %2537 = vmatpush2.msra.mxu0 0.0
        %2538 = vmatprep.subr.mxu0 0.0
        %2539 = vmatpush2.msra.mxu0 0.0
        %2540 = vmatprep.subr.mxu0 0.0
        %2541 = vmatpush2.msra.mxu0 0.0
        %2542 = vmatprep.subr.mxu0 0.0
        %2543 = vmatpush2.msra.mxu0 0.0
        %2544 = vmatprep.subr.mxu0 0.0
        %2545 = vmatpush2.msra.mxu0 0.0
        %2546 = vmatprep.subr.mxu0 0.0
        %2547 = vmatpush2.msra.mxu0 0.0
        %2548 = vmatprep.subr.mxu0 0.0
        %2549 = vmatpush2.msra.mxu0 0.0
        %2550 = vmatprep.subr.mxu0 0.0
        %2551 = vmatpush2.msra.mxu0 0.0
        %2552 = vmatprep.mubr.f32.mxu0 0.0
        %2553 = vmatmul.mubr.f32.gmra.mxu0 %v2484
        %v2554 = vpop.f32.mrf.mxu0
        %v2555 = vadd.f32 %v2478, %v2554
        %v2556 = vpop.f32.mrf.mxu0
        %2557 = vdwg.mxu0
        %v2558 = vld [vmem:[%s1048] sm:$0xff]
        %2559 = vrot.lane.b32.xlu0 %v1923, 120
        %v2560 = vpop.permute.xlu0 %2559
        %v2562 = vsel %vm411, %v2558, 0
        %v2564 = vsel %vm415, %v2560, 0
        %2566 = vmatprep.subr.mxu0 0.0
        %2567 = vmatpush1.msra.mxu0 0.0
        %2568 = vmatprep.subr.mxu0 0.0
        %2569 = vmatpush1.msra.mxu0 0.0
        %2570 = vmatprep.subr.mxu0 0.0
        %2571 = vmatpush1.msra.mxu0 0.0
        %2572 = vmatprep.subr.mxu0 0.0
        %2573 = vmatpush1.msra.mxu0 0.0
        %2574 = vmatprep.subr.mxu0 0.0
        %2575 = vmatpush1.msra.mxu0 0.0
        %2576 = vmatprep.subr.mxu0 0.0
        %2577 = vmatpush1.msra.mxu0 0.0
        %2578 = vmatprep.subr.mxu0 0.0
        %2579 = vmatpush1.msra.mxu0 0.0
        %2580 = vmatprep.subr.mxu0 0.0
        %2581 = vmatpush1.msra.mxu0 0.0
        %2582 = vmatprep.subr.mxu0 0.0
        %2583 = vmatpush1.msra.mxu0 0.0
        %2584 = vmatprep.subr.mxu0 0.0
        %2585 = vmatpush1.msra.mxu0 0.0
        %2586 = vmatprep.subr.mxu0 0.0
        %2587 = vmatpush1.msra.mxu0 0.0
        %2588 = vmatprep.subr.mxu0 0.0
        %2589 = vmatpush1.msra.mxu0 0.0
        %2590 = vmatprep.subr.mxu0 0.0
        %2591 = vmatpush1.msra.mxu0 0.0
        %2592 = vmatprep.subr.mxu0 0.0
        %2593 = vmatpush1.msra.mxu0 0.0
        %2594 = vmatprep.subr.mxu0 0.0
        %2595 = vmatpush1.msra.mxu0 0.0
        %2596 = vmatprep.subr.mxu0 0.0
        %2597 = vmatpush1.msra.mxu0 %v2564
        %2598 = vmatprep.subr.mxu0 0.0
        %2599 = vmatpush2.msra.mxu0 0.0
        %2600 = vmatprep.subr.mxu0 0.0
        %2601 = vmatpush2.msra.mxu0 0.0
        %2602 = vmatprep.subr.mxu0 0.0
        %2603 = vmatpush2.msra.mxu0 0.0
        %2604 = vmatprep.subr.mxu0 0.0
        %2605 = vmatpush2.msra.mxu0 0.0
        %2606 = vmatprep.subr.mxu0 0.0
        %2607 = vmatpush2.msra.mxu0 0.0
        %2608 = vmatprep.subr.mxu0 0.0
        %2609 = vmatpush2.msra.mxu0 0.0
        %2610 = vmatprep.subr.mxu0 0.0
        %2611 = vmatpush2.msra.mxu0 0.0
        %2612 = vmatprep.subr.mxu0 0.0
        %2613 = vmatpush2.msra.mxu0 0.0
        %2614 = vmatprep.subr.mxu0 0.0
        %2615 = vmatpush2.msra.mxu0 0.0
        %2616 = vmatprep.subr.mxu0 0.0
        %2617 = vmatpush2.msra.mxu0 0.0
        %2618 = vmatprep.subr.mxu0 0.0
        %2619 = vmatpush2.msra.mxu0 0.0
        %2620 = vmatprep.subr.mxu0 0.0
        %2621 = vmatpush2.msra.mxu0 0.0
        %2622 = vmatprep.subr.mxu0 0.0
        %2623 = vmatpush2.msra.mxu0 0.0
        %2624 = vmatprep.subr.mxu0 0.0
        %2625 = vmatpush2.msra.mxu0 0.0
        %2626 = vmatprep.subr.mxu0 0.0
        %2627 = vmatpush2.msra.mxu0 0.0
        %2628 = vmatprep.subr.mxu0 0.0
        %2629 = vmatpush2.msra.mxu0 0.0
        %2630 = vmatprep.mubr.f32.mxu0 0.0
        %2631 = vmatmul.mubr.f32.gmra.mxu0 %v2562
        %v2632 = vpop.f32.mrf.mxu0
        %v2633 = vadd.f32 0.0, %v2632
        %v2634 = vpop.f32.mrf.mxu0
        %2635 = vdwg.mxu0
        %v2636 = vadd.f32 %v2555, %v2633
        %s2637 = scalar_lea.vmem %s3, 2
        %v2638 = vld [vmem:[%s2637] sm:$0x1]
        %v2640 = vlaneseq
        %v2641 = vshrl.u32 %v2640, 7
        %v2642 = vsub.s32 0, %v2641
        %v2643 = vrot.slane %v2638, %v2642
        %v2645 = vmul.f32 %v2636, %v2643
        %v2646 = vadd.f32 %v2401, %v2645
        %v2647 = vld [vmem:[%s7] sm:$0xff]
        %2649 = vset.pattern.permute.xlu0 0
        %2650 = vperm.xlu0 %2649, %v2647
        %v2651 = vpop.permute.xlu0 %2650
        %v2653 = vadd.f32 %v2646, %v2651
        %v2654 = vmul.f32 %v2653, 0.5
        %v2655 = vmul.f32 %v2653, 0.70710677
        %v2656 = vand.u32 2147483647, %v2655
        %v2657 = vmul.f32 %v2656, 0.3275911
        %v2658 = vadd.f32 %v2657, 1.0
        %v2659 = vrcp.pop %v2658
        %v2660 = vmul.f32 1.0, %v2659
        %v2661 = vmul.f32 %v2660, 1.0614054
        %v2662 = vadd.f32 %v2661, -1.4531521
        %v2663 = vmul.f32 %v2662, %v2660
        %v2664 = vadd.f32 %v2663, 1.4214138
        %v2665 = vmul.f32 %v2664, %v2660
        %v2666 = vadd.f32 %v2665, -0.28449672
        %v2667 = vmul.f32 %v2666, %v2660
        %v2668 = vadd.f32 %v2667, 0.2548296
        %v2669 = vmul.f32 %v2668, %v2660
        %v2670 = vsub.f32 0.0, %v2656
        %v2671 = vmul.f32 %v2670, %v2656
        %v2672 = vmul.f32 %v2671, 1.442695
        %v2673 = vpow.pop %v2672
        %v2674 = vmul.f32 %v2669, %v2673
        %v2675 = vsub.f32 1.0, %v2674
        %vm2676 = vcmp.ge.f32.partialorder %v2655, 0.0
        %v2677 = vsub.f32 0.0, %v2675
        %v2678 = vsel %vm2676, %v2675, %v2677
        %v2679 = vadd.f32 %v2678, 1.0
        %v2680 = vmul.f32 %v2654, %v2679
        %2681 = vst.msk [vmem:[#allocation2] sm:$0xff] %vm411, 0.0
        %vm2682 = vcmask 162944
        %2683 = vst.msk [vmem:[#allocation2] sm:$0xff] %vm2682, 0.0
        %2685 = vrot.lane.b32.xlu0 %v2680, 4
        %v2686 = vpop.permute.xlu0 %2685
        %vm2688 = vcmask 130080
        %2689 = vst.msk [vmem:[#allocation2] sm:$0xff] %vm2688, %v2686
        %v2690 = vld [vmem:[#allocation2] sm:$0xff]
        %v2691 = vld [vmem:[%s8] sm:$0xf]
        %v2692 = vld [vmem:[%s1184] sm:$0xf]
        %2694 = vrot.lane.b32.xlu0 %v2690, 125
        %v2695 = vpop.permute.xlu0 %2694
        %v2698 = vsel %vm1190, %v2692, 0
        %2700 = vmatprep.subr.mxu0 0.0
        %2701 = vmatpush1.msra.mxu0 0.0
        %2702 = vmatprep.subr.mxu0 0.0
        %2703 = vmatpush1.msra.mxu0 0.0
        %2704 = vmatprep.subr.mxu0 0.0
        %2705 = vmatpush1.msra.mxu0 0.0
        %2706 = vmatprep.subr.mxu0 0.0
        %2707 = vmatpush1.msra.mxu0 0.0
        %2708 = vmatprep.subr.mxu0 0.0
        %2709 = vmatpush1.msra.mxu0 0.0
        %2710 = vmatprep.subr.mxu0 0.0
        %2711 = vmatpush1.msra.mxu0 0.0
        %2712 = vmatprep.subr.mxu0 0.0
        %2713 = vmatpush1.msra.mxu0 0.0
        %2714 = vmatprep.subr.mxu0 0.0
        %2715 = vmatpush1.msra.mxu0 0.0
        %2716 = vmatprep.subr.mxu0 0.0
        %2717 = vmatpush1.msra.mxu0 0.0
        %2718 = vmatprep.subr.mxu0 0.0
        %2719 = vmatpush1.msra.mxu0 0.0
        %2720 = vmatprep.subr.mxu0 0.0
        %2721 = vmatpush1.msra.mxu0 0.0
        %2722 = vmatprep.subr.mxu0 0.0
        %2723 = vmatpush1.msra.mxu0 0.0
        %2724 = vmatprep.subr.mxu0 0.0
        %2725 = vmatpush1.msra.mxu0 0.0
        %2726 = vmatprep.subr.mxu0 0.0
        %2727 = vmatpush1.msra.mxu0 0.0
        %2728 = vmatprep.subr.mxu0 0.0
        %2729 = vmatpush1.msra.mxu0 0.0
        %2730 = vmatprep.subr.mxu0 0.0
        %2731 = vmatpush1.msra.mxu0 %v2695
        %2732 = vmatprep.subr.mxu0 0.0
        %2733 = vmatpush2.msra.mxu0 0.0
        %2734 = vmatprep.subr.mxu0 0.0
        %2735 = vmatpush2.msra.mxu0 0.0
        %2736 = vmatprep.subr.mxu0 0.0
        %2737 = vmatpush2.msra.mxu0 0.0
        %2738 = vmatprep.subr.mxu0 0.0
        %2739 = vmatpush2.msra.mxu0 0.0
        %2740 = vmatprep.subr.mxu0 0.0
        %2741 = vmatpush2.msra.mxu0 0.0
        %2742 = vmatprep.subr.mxu0 0.0
        %2743 = vmatpush2.msra.mxu0 0.0
        %2744 = vmatprep.subr.mxu0 0.0
        %2745 = vmatpush2.msra.mxu0 0.0
        %2746 = vmatprep.subr.mxu0 0.0
        %2747 = vmatpush2.msra.mxu0 0.0
        %2748 = vmatprep.subr.mxu0 0.0
        %2749 = vmatpush2.msra.mxu0 0.0
        %2750 = vmatprep.subr.mxu0 0.0
        %2751 = vmatpush2.msra.mxu0 0.0
        %2752 = vmatprep.subr.mxu0 0.0
        %2753 = vmatpush2.msra.mxu0 0.0
        %2754 = vmatprep.subr.mxu0 0.0
        %2755 = vmatpush2.msra.mxu0 0.0
        %2756 = vmatprep.subr.mxu0 0.0
        %2757 = vmatpush2.msra.mxu0 0.0
        %2758 = vmatprep.subr.mxu0 0.0
        %2759 = vmatpush2.msra.mxu0 0.0
        %2760 = vmatprep.subr.mxu0 0.0
        %2761 = vmatpush2.msra.mxu0 0.0
        %2762 = vmatprep.subr.mxu0 0.0
        %2763 = vmatpush2.msra.mxu0 0.0
        %2764 = vmatprep.mubr.f32.mxu0 0.0
        %2765 = vmatmul.mubr.f32.gmra.mxu0 %v2698
        %v2766 = vpop.f32.mrf.mxu0
        %v2767 = vadd.f32 0.0, %v2766
        %v2768 = vpop.f32.mrf.mxu0
        %2769 = vdwg.mxu0
        %v2771 = vsel %vm1190, %v2691, 0
        %2773 = vmatprep.subr.mxu0 0.0
        %2774 = vmatpush1.msra.mxu0 0.0
        %2775 = vmatprep.subr.mxu0 0.0
        %2776 = vmatpush1.msra.mxu0 0.0
        %2777 = vmatprep.subr.mxu0 0.0
        %2778 = vmatpush1.msra.mxu0 0.0
        %2779 = vmatprep.subr.mxu0 0.0
        %2780 = vmatpush1.msra.mxu0 0.0
        %2781 = vmatprep.subr.mxu0 0.0
        %2782 = vmatpush1.msra.mxu0 0.0
        %2783 = vmatprep.subr.mxu0 0.0
        %2784 = vmatpush1.msra.mxu0 0.0
        %2785 = vmatprep.subr.mxu0 0.0
        %2786 = vmatpush1.msra.mxu0 0.0
        %2787 = vmatprep.subr.mxu0 0.0
        %2788 = vmatpush1.msra.mxu0 0.0
        %2789 = vmatprep.subr.mxu0 0.0
        %2790 = vmatpush1.msra.mxu0 0.0
        %2791 = vmatprep.subr.mxu0 0.0
        %2792 = vmatpush1.msra.mxu0 0.0
        %2793 = vmatprep.subr.mxu0 0.0
        %2794 = vmatpush1.msra.mxu0 0.0
        %2795 = vmatprep.subr.mxu0 0.0
        %2796 = vmatpush1.msra.mxu0 0.0
        %2797 = vmatprep.subr.mxu0 0.0
        %2798 = vmatpush1.msra.mxu0 0.0
        %2799 = vmatprep.subr.mxu0 0.0
        %2800 = vmatpush1.msra.mxu0 0.0
        %2801 = vmatprep.subr.mxu0 0.0
        %2802 = vmatpush1.msra.mxu0 0.0
        %2803 = vmatprep.subr.mxu0 0.0
        %2804 = vmatpush1.msra.mxu0 %v2690
        %2805 = vmatprep.subr.mxu0 0.0
        %2806 = vmatpush2.msra.mxu0 0.0
        %2807 = vmatprep.subr.mxu0 0.0
        %2808 = vmatpush2.msra.mxu0 0.0
        %2809 = vmatprep.subr.mxu0 0.0
        %2810 = vmatpush2.msra.mxu0 0.0
        %2811 = vmatprep.subr.mxu0 0.0
        %2812 = vmatpush2.msra.mxu0 0.0
        %2813 = vmatprep.subr.mxu0 0.0
        %2814 = vmatpush2.msra.mxu0 0.0
        %2815 = vmatprep.subr.mxu0 0.0
        %2816 = vmatpush2.msra.mxu0 0.0
        %2817 = vmatprep.subr.mxu0 0.0
        %2818 = vmatpush2.msra.mxu0 0.0
        %2819 = vmatprep.subr.mxu0 0.0
        %2820 = vmatpush2.msra.mxu0 0.0
        %2821 = vmatprep.subr.mxu0 0.0
        %2822 = vmatpush2.msra.mxu0 0.0
        %2823 = vmatprep.subr.mxu0 0.0
        %2824 = vmatpush2.msra.mxu0 0.0
        %2825 = vmatprep.subr.mxu0 0.0
        %2826 = vmatpush2.msra.mxu0 0.0
        %2827 = vmatprep.subr.mxu0 0.0
        %2828 = vmatpush2.msra.mxu0 0.0
        %2829 = vmatprep.subr.mxu0 0.0
        %2830 = vmatpush2.msra.mxu0 0.0
        %2831 = vmatprep.subr.mxu0 0.0
        %2832 = vmatpush2.msra.mxu0 0.0
        %2833 = vmatprep.subr.mxu0 0.0
        %2834 = vmatpush2.msra.mxu0 0.0
        %2835 = vmatprep.subr.mxu0 0.0
        %2836 = vmatpush2.msra.mxu0 0.0
        %2837 = vmatprep.mubr.f32.mxu0 0.0
        %2838 = vmatmul.mubr.f32.gmra.mxu0 %v2771
        %v2839 = vpop.f32.mrf.mxu0
        %v2840 = vadd.f32 %v2767, %v2839
        %v2841 = vpop.f32.mrf.mxu0
        %2842 = vdwg.mxu0
        %v2843 = vld [vmem:[%s1337] sm:$0xf]
        %2844 = vrot.lane.b32.xlu0 %v2690, 122
        %v2845 = vpop.permute.xlu0 %2844
        %v2848 = vsel %vm1190, %v2843, 0
        %2850 = vmatprep.subr.mxu0 0.0
        %2851 = vmatpush1.msra.mxu0 0.0
        %2852 = vmatprep.subr.mxu0 0.0
        %2853 = vmatpush1.msra.mxu0 0.0
        %2854 = vmatprep.subr.mxu0 0.0
        %2855 = vmatpush1.msra.mxu0 0.0
        %2856 = vmatprep.subr.mxu0 0.0
        %2857 = vmatpush1.msra.mxu0 0.0
        %2858 = vmatprep.subr.mxu0 0.0
        %2859 = vmatpush1.msra.mxu0 0.0
        %2860 = vmatprep.subr.mxu0 0.0
        %2861 = vmatpush1.msra.mxu0 0.0
        %2862 = vmatprep.subr.mxu0 0.0
        %2863 = vmatpush1.msra.mxu0 0.0
        %2864 = vmatprep.subr.mxu0 0.0
        %2865 = vmatpush1.msra.mxu0 0.0
        %2866 = vmatprep.subr.mxu0 0.0
        %2867 = vmatpush1.msra.mxu0 0.0
        %2868 = vmatprep.subr.mxu0 0.0
        %2869 = vmatpush1.msra.mxu0 0.0
        %2870 = vmatprep.subr.mxu0 0.0
        %2871 = vmatpush1.msra.mxu0 0.0
        %2872 = vmatprep.subr.mxu0 0.0
        %2873 = vmatpush1.msra.mxu0 0.0
        %2874 = vmatprep.subr.mxu0 0.0
        %2875 = vmatpush1.msra.mxu0 0.0
        %2876 = vmatprep.subr.mxu0 0.0
        %2877 = vmatpush1.msra.mxu0 0.0
        %2878 = vmatprep.subr.mxu0 0.0
        %2879 = vmatpush1.msra.mxu0 0.0
        %2880 = vmatprep.subr.mxu0 0.0
        %2881 = vmatpush1.msra.mxu0 %v2845
        %2882 = vmatprep.subr.mxu0 0.0
        %2883 = vmatpush2.msra.mxu0 0.0
        %2884 = vmatprep.subr.mxu0 0.0
        %2885 = vmatpush2.msra.mxu0 0.0
        %2886 = vmatprep.subr.mxu0 0.0
        %2887 = vmatpush2.msra.mxu0 0.0
        %2888 = vmatprep.subr.mxu0 0.0
        %2889 = vmatpush2.msra.mxu0 0.0
        %2890 = vmatprep.subr.mxu0 0.0
        %2891 = vmatpush2.msra.mxu0 0.0
        %2892 = vmatprep.subr.mxu0 0.0
        %2893 = vmatpush2.msra.mxu0 0.0
        %2894 = vmatprep.subr.mxu0 0.0
        %2895 = vmatpush2.msra.mxu0 0.0
        %2896 = vmatprep.subr.mxu0 0.0
        %2897 = vmatpush2.msra.mxu0 0.0
        %2898 = vmatprep.subr.mxu0 0.0
        %2899 = vmatpush2.msra.mxu0 0.0
        %2900 = vmatprep.subr.mxu0 0.0
        %2901 = vmatpush2.msra.mxu0 0.0
        %2902 = vmatprep.subr.mxu0 0.0
        %2903 = vmatpush2.msra.mxu0 0.0
        %2904 = vmatprep.subr.mxu0 0.0
        %2905 = vmatpush2.msra.mxu0 0.0
        %2906 = vmatprep.subr.mxu0 0.0
        %2907 = vmatpush2.msra.mxu0 0.0
        %2908 = vmatprep.subr.mxu0 0.0
        %2909 = vmatpush2.msra.mxu0 0.0
        %2910 = vmatprep.subr.mxu0 0.0
        %2911 = vmatpush2.msra.mxu0 0.0
        %2912 = vmatprep.subr.mxu0 0.0
        %2913 = vmatpush2.msra.mxu0 0.0
        %2914 = vmatprep.mubr.f32.mxu0 0.0
        %2915 = vmatmul.mubr.f32.gmra.mxu0 %v2848
        %v2916 = vpop.f32.mrf.mxu0
        %v2917 = vadd.f32 0.0, %v2916
        %v2918 = vpop.f32.mrf.mxu0
        %2919 = vdwg.mxu0
        %v2920 = vadd.f32 %v2840, %v2917
        %v2921 = vld [vmem:[%s3] sm:$0x1]
        %v2923 = vlaneseq
        %v2924 = vshrl.u32 %v2923, 7
        %v2925 = vsub.s32 0, %v2924
        %v2926 = vrot.slane %v2921, %v2925
        %v2928 = vmul.f32 %v2920, %v2926
        %v2929 = vld [vmem:[%s1424] sm:$0xf]
        %v2930 = vld [vmem:[%s1426] sm:$0xf]
        %2931 = vrot.lane.b32.xlu0 %v2690, 124
        %v2932 = vpop.permute.xlu0 %2931
        %v2935 = vsel %vm1190, %v2930, 0
        %2937 = vmatprep.subr.mxu0 0.0
        %2938 = vmatpush1.msra.mxu0 0.0
        %2939 = vmatprep.subr.mxu0 0.0
        %2940 = vmatpush1.msra.mxu0 0.0
        %2941 = vmatprep.subr.mxu0 0.0
        %2942 = vmatpush1.msra.mxu0 0.0
        %2943 = vmatprep.subr.mxu0 0.0
        %2944 = vmatpush1.msra.mxu0 0.0
        %2945 = vmatprep.subr.mxu0 0.0
        %2946 = vmatpush1.msra.mxu0 0.0
        %2947 = vmatprep.subr.mxu0 0.0
        %2948 = vmatpush1.msra.mxu0 0.0
        %2949 = vmatprep.subr.mxu0 0.0
        %2950 = vmatpush1.msra.mxu0 0.0
        %2951 = vmatprep.subr.mxu0 0.0
        %2952 = vmatpush1.msra.mxu0 0.0
        %2953 = vmatprep.subr.mxu0 0.0
        %2954 = vmatpush1.msra.mxu0 0.0
        %2955 = vmatprep.subr.mxu0 0.0
        %2956 = vmatpush1.msra.mxu0 0.0
        %2957 = vmatprep.subr.mxu0 0.0
        %2958 = vmatpush1.msra.mxu0 0.0
        %2959 = vmatprep.subr.mxu0 0.0
        %2960 = vmatpush1.msra.mxu0 0.0
        %2961 = vmatprep.subr.mxu0 0.0
        %2962 = vmatpush1.msra.mxu0 0.0
        %2963 = vmatprep.subr.mxu0 0.0
        %2964 = vmatpush1.msra.mxu0 0.0
        %2965 = vmatprep.subr.mxu0 0.0
        %2966 = vmatpush1.msra.mxu0 0.0
        %2967 = vmatprep.subr.mxu0 0.0
        %2968 = vmatpush1.msra.mxu0 %v2932
        %2969 = vmatprep.subr.mxu0 0.0
        %2970 = vmatpush2.msra.mxu0 0.0
        %2971 = vmatprep.subr.mxu0 0.0
        %2972 = vmatpush2.msra.mxu0 0.0
        %2973 = vmatprep.subr.mxu0 0.0
        %2974 = vmatpush2.msra.mxu0 0.0
        %2975 = vmatprep.subr.mxu0 0.0
        %2976 = vmatpush2.msra.mxu0 0.0
        %2977 = vmatprep.subr.mxu0 0.0
        %2978 = vmatpush2.msra.mxu0 0.0
        %2979 = vmatprep.subr.mxu0 0.0
        %2980 = vmatpush2.msra.mxu0 0.0
        %2981 = vmatprep.subr.mxu0 0.0
        %2982 = vmatpush2.msra.mxu0 0.0
        %2983 = vmatprep.subr.mxu0 0.0
        %2984 = vmatpush2.msra.mxu0 0.0
        %2985 = vmatprep.subr.mxu0 0.0
        %2986 = vmatpush2.msra.mxu0 0.0
        %2987 = vmatprep.subr.mxu0 0.0
        %2988 = vmatpush2.msra.mxu0 0.0
        %2989 = vmatprep.subr.mxu0 0.0
        %2990 = vmatpush2.msra.mxu0 0.0
        %2991 = vmatprep.subr.mxu0 0.0
        %2992 = vmatpush2.msra.mxu0 0.0
        %2993 = vmatprep.subr.mxu0 0.0
        %2994 = vmatpush2.msra.mxu0 0.0
        %2995 = vmatprep.subr.mxu0 0.0
        %2996 = vmatpush2.msra.mxu0 0.0
        %2997 = vmatprep.subr.mxu0 0.0
        %2998 = vmatpush2.msra.mxu0 0.0
        %2999 = vmatprep.subr.mxu0 0.0
        %3000 = vmatpush2.msra.mxu0 0.0
        %3001 = vmatprep.mubr.f32.mxu0 0.0
        %3002 = vmatmul.mubr.f32.gmra.mxu0 %v2935
        %v3003 = vpop.f32.mrf.mxu0
        %v3004 = vadd.f32 0.0, %v3003
        %v3005 = vpop.f32.mrf.mxu0
        %3006 = vdwg.mxu0
        %3007 = vrot.lane.b32.xlu0 %v2690, 127
        %v3008 = vpop.permute.xlu0 %3007
        %v3011 = vsel %vm1190, %v2929, 0
        %3013 = vmatprep.subr.mxu0 0.0
        %3014 = vmatpush1.msra.mxu0 0.0
        %3015 = vmatprep.subr.mxu0 0.0
        %3016 = vmatpush1.msra.mxu0 0.0
        %3017 = vmatprep.subr.mxu0 0.0
        %3018 = vmatpush1.msra.mxu0 0.0
        %3019 = vmatprep.subr.mxu0 0.0
        %3020 = vmatpush1.msra.mxu0 0.0
        %3021 = vmatprep.subr.mxu0 0.0
        %3022 = vmatpush1.msra.mxu0 0.0
        %3023 = vmatprep.subr.mxu0 0.0
        %3024 = vmatpush1.msra.mxu0 0.0
        %3025 = vmatprep.subr.mxu0 0.0
        %3026 = vmatpush1.msra.mxu0 0.0
        %3027 = vmatprep.subr.mxu0 0.0
        %3028 = vmatpush1.msra.mxu0 0.0
        %3029 = vmatprep.subr.mxu0 0.0
        %3030 = vmatpush1.msra.mxu0 0.0
        %3031 = vmatprep.subr.mxu0 0.0
        %3032 = vmatpush1.msra.mxu0 0.0
        %3033 = vmatprep.subr.mxu0 0.0
        %3034 = vmatpush1.msra.mxu0 0.0
        %3035 = vmatprep.subr.mxu0 0.0
        %3036 = vmatpush1.msra.mxu0 0.0
        %3037 = vmatprep.subr.mxu0 0.0
        %3038 = vmatpush1.msra.mxu0 0.0
        %3039 = vmatprep.subr.mxu0 0.0
        %3040 = vmatpush1.msra.mxu0 0.0
        %3041 = vmatprep.subr.mxu0 0.0
        %3042 = vmatpush1.msra.mxu0 0.0
        %3043 = vmatprep.subr.mxu0 0.0
        %3044 = vmatpush1.msra.mxu0 %v3008
        %3045 = vmatprep.subr.mxu0 0.0
        %3046 = vmatpush2.msra.mxu0 0.0
        %3047 = vmatprep.subr.mxu0 0.0
        %3048 = vmatpush2.msra.mxu0 0.0
        %3049 = vmatprep.subr.mxu0 0.0
        %3050 = vmatpush2.msra.mxu0 0.0
        %3051 = vmatprep.subr.mxu0 0.0
        %3052 = vmatpush2.msra.mxu0 0.0
        %3053 = vmatprep.subr.mxu0 0.0
        %3054 = vmatpush2.msra.mxu0 0.0
        %3055 = vmatprep.subr.mxu0 0.0
        %3056 = vmatpush2.msra.mxu0 0.0
        %3057 = vmatprep.subr.mxu0 0.0
        %3058 = vmatpush2.msra.mxu0 0.0
        %3059 = vmatprep.subr.mxu0 0.0
        %3060 = vmatpush2.msra.mxu0 0.0
        %3061 = vmatprep.subr.mxu0 0.0
        %3062 = vmatpush2.msra.mxu0 0.0
        %3063 = vmatprep.subr.mxu0 0.0
        %3064 = vmatpush2.msra.mxu0 0.0
        %3065 = vmatprep.subr.mxu0 0.0
        %3066 = vmatpush2.msra.mxu0 0.0
        %3067 = vmatprep.subr.mxu0 0.0
        %3068 = vmatpush2.msra.mxu0 0.0
        %3069 = vmatprep.subr.mxu0 0.0
        %3070 = vmatpush2.msra.mxu0 0.0
        %3071 = vmatprep.subr.mxu0 0.0
        %3072 = vmatpush2.msra.mxu0 0.0
        %3073 = vmatprep.subr.mxu0 0.0
        %3074 = vmatpush2.msra.mxu0 0.0
        %3075 = vmatprep.subr.mxu0 0.0
        %3076 = vmatpush2.msra.mxu0 0.0
        %3077 = vmatprep.mubr.f32.mxu0 0.0
        %3078 = vmatmul.mubr.f32.gmra.mxu0 %v3011
        %v3079 = vpop.f32.mrf.mxu0
        %v3080 = vadd.f32 %v3004, %v3079
        %v3081 = vpop.f32.mrf.mxu0
        %3082 = vdwg.mxu0
        %v3083 = vld [vmem:[%s1580] sm:$0xf]
        %3084 = vrot.lane.b32.xlu0 %v2690, 121
        %v3085 = vpop.permute.xlu0 %3084
        %v3088 = vsel %vm1190, %v3083, 0
        %3090 = vmatprep.subr.mxu0 0.0
        %3091 = vmatpush1.msra.mxu0 0.0
        %3092 = vmatprep.subr.mxu0 0.0
        %3093 = vmatpush1.msra.mxu0 0.0
        %3094 = vmatprep.subr.mxu0 0.0
        %3095 = vmatpush1.msra.mxu0 0.0
        %3096 = vmatprep.subr.mxu0 0.0
        %3097 = vmatpush1.msra.mxu0 0.0
        %3098 = vmatprep.subr.mxu0 0.0
        %3099 = vmatpush1.msra.mxu0 0.0
        %3100 = vmatprep.subr.mxu0 0.0
        %3101 = vmatpush1.msra.mxu0 0.0
        %3102 = vmatprep.subr.mxu0 0.0
        %3103 = vmatpush1.msra.mxu0 0.0
        %3104 = vmatprep.subr.mxu0 0.0
        %3105 = vmatpush1.msra.mxu0 0.0
        %3106 = vmatprep.subr.mxu0 0.0
        %3107 = vmatpush1.msra.mxu0 0.0
        %3108 = vmatprep.subr.mxu0 0.0
        %3109 = vmatpush1.msra.mxu0 0.0
        %3110 = vmatprep.subr.mxu0 0.0
        %3111 = vmatpush1.msra.mxu0 0.0
        %3112 = vmatprep.subr.mxu0 0.0
        %3113 = vmatpush1.msra.mxu0 0.0
        %3114 = vmatprep.subr.mxu0 0.0
        %3115 = vmatpush1.msra.mxu0 0.0
        %3116 = vmatprep.subr.mxu0 0.0
        %3117 = vmatpush1.msra.mxu0 0.0
        %3118 = vmatprep.subr.mxu0 0.0
        %3119 = vmatpush1.msra.mxu0 0.0
        %3120 = vmatprep.subr.mxu0 0.0
        %3121 = vmatpush1.msra.mxu0 %v3085
        %3122 = vmatprep.subr.mxu0 0.0
        %3123 = vmatpush2.msra.mxu0 0.0
        %3124 = vmatprep.subr.mxu0 0.0
        %3125 = vmatpush2.msra.mxu0 0.0
        %3126 = vmatprep.subr.mxu0 0.0
        %3127 = vmatpush2.msra.mxu0 0.0
        %3128 = vmatprep.subr.mxu0 0.0
        %3129 = vmatpush2.msra.mxu0 0.0
        %3130 = vmatprep.subr.mxu0 0.0
        %3131 = vmatpush2.msra.mxu0 0.0
        %3132 = vmatprep.subr.mxu0 0.0
        %3133 = vmatpush2.msra.mxu0 0.0
        %3134 = vmatprep.subr.mxu0 0.0
        %3135 = vmatpush2.msra.mxu0 0.0
        %3136 = vmatprep.subr.mxu0 0.0
        %3137 = vmatpush2.msra.mxu0 0.0
        %3138 = vmatprep.subr.mxu0 0.0
        %3139 = vmatpush2.msra.mxu0 0.0
        %3140 = vmatprep.subr.mxu0 0.0
        %3141 = vmatpush2.msra.mxu0 0.0
        %3142 = vmatprep.subr.mxu0 0.0
        %3143 = vmatpush2.msra.mxu0 0.0
        %3144 = vmatprep.subr.mxu0 0.0
        %3145 = vmatpush2.msra.mxu0 0.0
        %3146 = vmatprep.subr.mxu0 0.0
        %3147 = vmatpush2.msra.mxu0 0.0
        %3148 = vmatprep.subr.mxu0 0.0
        %3149 = vmatpush2.msra.mxu0 0.0
        %3150 = vmatprep.subr.mxu0 0.0
        %3151 = vmatpush2.msra.mxu0 0.0
        %3152 = vmatprep.subr.mxu0 0.0
        %3153 = vmatpush2.msra.mxu0 0.0
        %3154 = vmatprep.mubr.f32.mxu0 0.0
        %3155 = vmatmul.mubr.f32.gmra.mxu0 %v3088
        %v3156 = vpop.f32.mrf.mxu0
        %v3157 = vadd.f32 0.0, %v3156
        %v3158 = vpop.f32.mrf.mxu0
        %3159 = vdwg.mxu0
        %v3160 = vadd.f32 %v3080, %v3157
        %v3161 = vadd.f32 %v2928, %v3160
        %v3162 = vld [vmem:[%s1660] sm:$0xf]
        %v3163 = vld [vmem:[%s1662] sm:$0xf]
        %3164 = vrot.lane.b32.xlu0 %v2690, 123
        %v3165 = vpop.permute.xlu0 %3164
        %v3168 = vsel %vm1190, %v3163, 0
        %3170 = vmatprep.subr.mxu0 0.0
        %3171 = vmatpush1.msra.mxu0 0.0
        %3172 = vmatprep.subr.mxu0 0.0
        %3173 = vmatpush1.msra.mxu0 0.0
        %3174 = vmatprep.subr.mxu0 0.0
        %3175 = vmatpush1.msra.mxu0 0.0
        %3176 = vmatprep.subr.mxu0 0.0
        %3177 = vmatpush1.msra.mxu0 0.0
        %3178 = vmatprep.subr.mxu0 0.0
        %3179 = vmatpush1.msra.mxu0 0.0
        %3180 = vmatprep.subr.mxu0 0.0
        %3181 = vmatpush1.msra.mxu0 0.0
        %3182 = vmatprep.subr.mxu0 0.0
        %3183 = vmatpush1.msra.mxu0 0.0
        %3184 = vmatprep.subr.mxu0 0.0
        %3185 = vmatpush1.msra.mxu0 0.0
        %3186 = vmatprep.subr.mxu0 0.0
        %3187 = vmatpush1.msra.mxu0 0.0
        %3188 = vmatprep.subr.mxu0 0.0
        %3189 = vmatpush1.msra.mxu0 0.0
        %3190 = vmatprep.subr.mxu0 0.0
        %3191 = vmatpush1.msra.mxu0 0.0
        %3192 = vmatprep.subr.mxu0 0.0
        %3193 = vmatpush1.msra.mxu0 0.0
        %3194 = vmatprep.subr.mxu0 0.0
        %3195 = vmatpush1.msra.mxu0 0.0
        %3196 = vmatprep.subr.mxu0 0.0
        %3197 = vmatpush1.msra.mxu0 0.0
        %3198 = vmatprep.subr.mxu0 0.0
        %3199 = vmatpush1.msra.mxu0 0.0
        %3200 = vmatprep.subr.mxu0 0.0
        %3201 = vmatpush1.msra.mxu0 %v3165
        %3202 = vmatprep.subr.mxu0 0.0
        %3203 = vmatpush2.msra.mxu0 0.0
        %3204 = vmatprep.subr.mxu0 0.0
        %3205 = vmatpush2.msra.mxu0 0.0
        %3206 = vmatprep.subr.mxu0 0.0
        %3207 = vmatpush2.msra.mxu0 0.0
        %3208 = vmatprep.subr.mxu0 0.0
        %3209 = vmatpush2.msra.mxu0 0.0
        %3210 = vmatprep.subr.mxu0 0.0
        %3211 = vmatpush2.msra.mxu0 0.0
        %3212 = vmatprep.subr.mxu0 0.0
        %3213 = vmatpush2.msra.mxu0 0.0
        %3214 = vmatprep.subr.mxu0 0.0
        %3215 = vmatpush2.msra.mxu0 0.0
        %3216 = vmatprep.subr.mxu0 0.0
        %3217 = vmatpush2.msra.mxu0 0.0
        %3218 = vmatprep.subr.mxu0 0.0
        %3219 = vmatpush2.msra.mxu0 0.0
        %3220 = vmatprep.subr.mxu0 0.0
        %3221 = vmatpush2.msra.mxu0 0.0
        %3222 = vmatprep.subr.mxu0 0.0
        %3223 = vmatpush2.msra.mxu0 0.0
        %3224 = vmatprep.subr.mxu0 0.0
        %3225 = vmatpush2.msra.mxu0 0.0
        %3226 = vmatprep.subr.mxu0 0.0
        %3227 = vmatpush2.msra.mxu0 0.0
        %3228 = vmatprep.subr.mxu0 0.0
        %3229 = vmatpush2.msra.mxu0 0.0
        %3230 = vmatprep.subr.mxu0 0.0
        %3231 = vmatpush2.msra.mxu0 0.0
        %3232 = vmatprep.subr.mxu0 0.0
        %3233 = vmatpush2.msra.mxu0 0.0
        %3234 = vmatprep.mubr.f32.mxu0 0.0
        %3235 = vmatmul.mubr.f32.gmra.mxu0 %v3168
        %v3236 = vpop.f32.mrf.mxu0
        %v3237 = vadd.f32 0.0, %v3236
        %v3238 = vpop.f32.mrf.mxu0
        %3239 = vdwg.mxu0
        %3240 = vrot.lane.b32.xlu0 %v2690, 126
        %v3241 = vpop.permute.xlu0 %3240
        %v3244 = vsel %vm1190, %v3162, 0
        %3246 = vmatprep.subr.mxu0 0.0
        %3247 = vmatpush1.msra.mxu0 0.0
        %3248 = vmatprep.subr.mxu0 0.0
        %3249 = vmatpush1.msra.mxu0 0.0
        %3250 = vmatprep.subr.mxu0 0.0
        %3251 = vmatpush1.msra.mxu0 0.0
        %3252 = vmatprep.subr.mxu0 0.0
        %3253 = vmatpush1.msra.mxu0 0.0
        %3254 = vmatprep.subr.mxu0 0.0
        %3255 = vmatpush1.msra.mxu0 0.0
        %3256 = vmatprep.subr.mxu0 0.0
        %3257 = vmatpush1.msra.mxu0 0.0
        %3258 = vmatprep.subr.mxu0 0.0
        %3259 = vmatpush1.msra.mxu0 0.0
        %3260 = vmatprep.subr.mxu0 0.0
        %3261 = vmatpush1.msra.mxu0 0.0
        %3262 = vmatprep.subr.mxu0 0.0
        %3263 = vmatpush1.msra.mxu0 0.0
        %3264 = vmatprep.subr.mxu0 0.0
        %3265 = vmatpush1.msra.mxu0 0.0
        %3266 = vmatprep.subr.mxu0 0.0
        %3267 = vmatpush1.msra.mxu0 0.0
        %3268 = vmatprep.subr.mxu0 0.0
        %3269 = vmatpush1.msra.mxu0 0.0
        %3270 = vmatprep.subr.mxu0 0.0
        %3271 = vmatpush1.msra.mxu0 0.0
        %3272 = vmatprep.subr.mxu0 0.0
        %3273 = vmatpush1.msra.mxu0 0.0
        %3274 = vmatprep.subr.mxu0 0.0
        %3275 = vmatpush1.msra.mxu0 0.0
        %3276 = vmatprep.subr.mxu0 0.0
        %3277 = vmatpush1.msra.mxu0 %v3241
        %3278 = vmatprep.subr.mxu0 0.0
        %3279 = vmatpush2.msra.mxu0 0.0
        %3280 = vmatprep.subr.mxu0 0.0
        %3281 = vmatpush2.msra.mxu0 0.0
        %3282 = vmatprep.subr.mxu0 0.0
        %3283 = vmatpush2.msra.mxu0 0.0
        %3284 = vmatprep.subr.mxu0 0.0
        %3285 = vmatpush2.msra.mxu0 0.0
        %3286 = vmatprep.subr.mxu0 0.0
        %3287 = vmatpush2.msra.mxu0 0.0
        %3288 = vmatprep.subr.mxu0 0.0
        %3289 = vmatpush2.msra.mxu0 0.0
        %3290 = vmatprep.subr.mxu0 0.0
        %3291 = vmatpush2.msra.mxu0 0.0
        %3292 = vmatprep.subr.mxu0 0.0
        %3293 = vmatpush2.msra.mxu0 0.0
        %3294 = vmatprep.subr.mxu0 0.0
        %3295 = vmatpush2.msra.mxu0 0.0
        %3296 = vmatprep.subr.mxu0 0.0
        %3297 = vmatpush2.msra.mxu0 0.0
        %3298 = vmatprep.subr.mxu0 0.0
        %3299 = vmatpush2.msra.mxu0 0.0
        %3300 = vmatprep.subr.mxu0 0.0
        %3301 = vmatpush2.msra.mxu0 0.0
        %3302 = vmatprep.subr.mxu0 0.0
        %3303 = vmatpush2.msra.mxu0 0.0
        %3304 = vmatprep.subr.mxu0 0.0
        %3305 = vmatpush2.msra.mxu0 0.0
        %3306 = vmatprep.subr.mxu0 0.0
        %3307 = vmatpush2.msra.mxu0 0.0
        %3308 = vmatprep.subr.mxu0 0.0
        %3309 = vmatpush2.msra.mxu0 0.0
        %3310 = vmatprep.mubr.f32.mxu0 0.0
        %3311 = vmatmul.mubr.f32.gmra.mxu0 %v3244
        %v3312 = vpop.f32.mrf.mxu0
        %v3313 = vadd.f32 %v3237, %v3312
        %v3314 = vpop.f32.mrf.mxu0
        %3315 = vdwg.mxu0
        %v3316 = vld [vmem:[%s1816] sm:$0xf]
        %3317 = vrot.lane.b32.xlu0 %v2690, 120
        %v3318 = vpop.permute.xlu0 %3317
        %v3321 = vsel %vm1190, %v3316, 0
        %3323 = vmatprep.subr.mxu0 0.0
        %3324 = vmatpush1.msra.mxu0 0.0
        %3325 = vmatprep.subr.mxu0 0.0
        %3326 = vmatpush1.msra.mxu0 0.0
        %3327 = vmatprep.subr.mxu0 0.0
        %3328 = vmatpush1.msra.mxu0 0.0
        %3329 = vmatprep.subr.mxu0 0.0
        %3330 = vmatpush1.msra.mxu0 0.0
        %3331 = vmatprep.subr.mxu0 0.0
        %3332 = vmatpush1.msra.mxu0 0.0
        %3333 = vmatprep.subr.mxu0 0.0
        %3334 = vmatpush1.msra.mxu0 0.0
        %3335 = vmatprep.subr.mxu0 0.0
        %3336 = vmatpush1.msra.mxu0 0.0
        %3337 = vmatprep.subr.mxu0 0.0
        %3338 = vmatpush1.msra.mxu0 0.0
        %3339 = vmatprep.subr.mxu0 0.0
        %3340 = vmatpush1.msra.mxu0 0.0
        %3341 = vmatprep.subr.mxu0 0.0
        %3342 = vmatpush1.msra.mxu0 0.0
        %3343 = vmatprep.subr.mxu0 0.0
        %3344 = vmatpush1.msra.mxu0 0.0
        %3345 = vmatprep.subr.mxu0 0.0
        %3346 = vmatpush1.msra.mxu0 0.0
        %3347 = vmatprep.subr.mxu0 0.0
        %3348 = vmatpush1.msra.mxu0 0.0
        %3349 = vmatprep.subr.mxu0 0.0
        %3350 = vmatpush1.msra.mxu0 0.0
        %3351 = vmatprep.subr.mxu0 0.0
        %3352 = vmatpush1.msra.mxu0 0.0
        %3353 = vmatprep.subr.mxu0 0.0
        %3354 = vmatpush1.msra.mxu0 %v3318
        %3355 = vmatprep.subr.mxu0 0.0
        %3356 = vmatpush2.msra.mxu0 0.0
        %3357 = vmatprep.subr.mxu0 0.0
        %3358 = vmatpush2.msra.mxu0 0.0
        %3359 = vmatprep.subr.mxu0 0.0
        %3360 = vmatpush2.msra.mxu0 0.0
        %3361 = vmatprep.subr.mxu0 0.0
        %3362 = vmatpush2.msra.mxu0 0.0
        %3363 = vmatprep.subr.mxu0 0.0
        %3364 = vmatpush2.msra.mxu0 0.0
        %3365 = vmatprep.subr.mxu0 0.0
        %3366 = vmatpush2.msra.mxu0 0.0
        %3367 = vmatprep.subr.mxu0 0.0
        %3368 = vmatpush2.msra.mxu0 0.0
        %3369 = vmatprep.subr.mxu0 0.0
        %3370 = vmatpush2.msra.mxu0 0.0
        %3371 = vmatprep.subr.mxu0 0.0
        %3372 = vmatpush2.msra.mxu0 0.0
        %3373 = vmatprep.subr.mxu0 0.0
        %3374 = vmatpush2.msra.mxu0 0.0
        %3375 = vmatprep.subr.mxu0 0.0
        %3376 = vmatpush2.msra.mxu0 0.0
        %3377 = vmatprep.subr.mxu0 0.0
        %3378 = vmatpush2.msra.mxu0 0.0
        %3379 = vmatprep.subr.mxu0 0.0
        %3380 = vmatpush2.msra.mxu0 0.0
        %3381 = vmatprep.subr.mxu0 0.0
        %3382 = vmatpush2.msra.mxu0 0.0
        %3383 = vmatprep.subr.mxu0 0.0
        %3384 = vmatpush2.msra.mxu0 0.0
        %3385 = vmatprep.subr.mxu0 0.0
        %3386 = vmatpush2.msra.mxu0 0.0
        %3387 = vmatprep.mubr.f32.mxu0 0.0
        %3388 = vmatmul.mubr.f32.gmra.mxu0 %v3321
        %v3389 = vpop.f32.mrf.mxu0
        %v3390 = vadd.f32 0.0, %v3389
        %v3391 = vpop.f32.mrf.mxu0
        %3392 = vdwg.mxu0
        %v3393 = vadd.f32 %v3313, %v3390
        %v3394 = vld [vmem:[%s2637] sm:$0x1]
        %v3396 = vlaneseq
        %v3397 = vshrl.u32 %v3396, 7
        %v3398 = vsub.s32 0, %v3397
        %v3399 = vrot.slane %v3394, %v3398
        %v3401 = vmul.f32 %v3393, %v3399
        %v3402 = vadd.f32 %v3161, %v3401
        %v3403 = vld [vmem:[%s9] sm:$0xf]
        %3405 = vset.pattern.permute.xlu0 0
        %3406 = vperm.xlu0 %3405, %v3403
        %v3407 = vpop.permute.xlu0 %3406
        %v3409 = vadd.f32 %v3402, %v3407
        %v3410 = vld [vmem:[%s402] sm:$0x1]
        %v3412 = vlaneseq
        %v3413 = vshrl.u32 %v3412, 7
        %v3414 = vsub.s32 0, %v3413
        %v3415 = vrot.slane %v3410, %v3414
        %3416 = vset.pattern.permute.xlu0 1
        %3417 = vperm.xlu0 %3416, %v3415
        %v3418 = vpop.permute.xlu0 %3417
        %v3420 = vmul.f32 %v3418, %v3409
        %v3421 = vadd.f32 %v1922, %v3420
        %vm3422 = vcmask 76800
        %3423 = vst.msk [vmem:[%s387] sm:$0xf] %vm3422, %v3421
        %s3424 = sand.u32 %s262, 1
        %s3425 = scalar_lea.sflag [#allocation4], %s3424
        %s3426 = sand.u32 %s262, 1
        %s3427 = smul.addr %s3426, 4
        %s3428 = scalar_lea.vmem [#allocation3], %s3427
        // Predicated region
        $region61: #{_timesblock_fused.1} parent=59 // pred_check
          %p3429 = pneg %p272
        $region62: #{_timesblock_fused.1} parent=59 // pred_check_branch
          %3431 = sbr.rel (%p3429) target = $region64
        $region63: #{_timesblock_fused.1} parent=59 // pred_region
          %s3433 = ssub.s32 64, 64
          %3434 = vsyncadd %s3425, %s3433
          %s3435 = smul.addr %s24, 64
          %s3436 = scalar_lea.hbm %s10, %s3435
          %s3438 = sshll.u32 %s3428, 4
          %s3439 = int_to_ptr.vmem [resolvable:$true] %s3438
          %3441 = dma.vmem_to_hbm [thread:$0]  %s3439, 64, %s3436, %s3425
        $region64: #{_timesblock_fused.1} parent=59 // pred_fallthru
          _
      $region60: #{_timesblock_fused.1} parent=5 // pred_fallthru
        _
      %p3442 = scmp.le.s32.totalorder 2, %s19
      // Predicated region
      $region65: #{_timesblock_fused.1} parent=5 // pred_check
        %p3443 = pneg %p3442
      $region66: #{_timesblock_fused.1} parent=5 // pred_check_branch
        %3445 = sbr.rel (%p3443) target = $region68
      $region67: #{_timesblock_fused.1} parent=5 // pred_region
        %s3446 = ssub.s32 %s19, 2
        // Predicated region
        $region69: #{_timesblock_fused.1} parent=67 // pred_check
          %p3447 = pneg %p278
        $region70: #{_timesblock_fused.1} parent=67 // pred_check_branch
          %3449 = sbr.rel (%p3447) target = $region72
        $region71: #{_timesblock_fused.1} parent=67 // pred_region
          %s3450 = sand.u32 %s263, 1
          %s3451 = scalar_lea.sflag [#allocation4], %s3450
          %s3452 = sand.u32 %s263, 1
          %s3453 = smul.addr %s3452, 4
          %s3454 = scalar_lea.vmem [#allocation3], %s3453
          %3455 = dma.done %s3451, 64
        $region72: #{_timesblock_fused.1} parent=67 // pred_fallthru
          _
      $region68: #{_timesblock_fused.1} parent=5 // pred_fallthru
        _
    $region6: #{_timesblock_fused.1} parent=1 // loop_footer
      %s23 = sadd.s32 1, %s19
    $region7: #{_timesblock_fused.1} parent=1 // loop_footer_branch
      %18 = sbr.rel target = $region3
    $region8: #{_timesblock_fused.1} parent=1 // loop_exit
      _
    %3456 = vsyncpa [#allocation4], 1
    %s3457 = scalar_lea.sflag [#allocation4], 1
    %3458 = vsyncpa %s3457, 1

</llo_original>
